<compile_context>
chip_gen: v7x
topology: tpu7x:2x2x1
jax: 0.10.0
libtpu: 0.0.40
codegen_flags: <defaults>
</compile_context>

<pallas_src>
import math

import jax
import jax.numpy as jnp
from jax.experimental import pallas as pl
from jax.experimental.pallas import tpu as pltpu

# ---- small synthetic config consistent with the module's __init__/forward ----
VOCAB = 100
MAX_POS = 32
TYPE_VOCAB = 2
HIDDEN = 32            # bert.config.hidden_size
N_LAYERS = 2
N_HEADS = 2
HEAD_DIM = HIDDEN // N_HEADS
INTERMEDIATE = 64
NUM_ASPECTS = 5
ASPECT_DIM = 16        # aspect_embedding_dim
SENT_DIM = 32          # fc_sentiment = nn.Linear(1, 32)
NUM_LABELS = 3
LN_EPS = 1e-12

# vecs-row layout (all small vectors packed into one (rows, 128) f32 array)
_ROW_EMB_G, _ROW_EMB_B = 0, 1
_LAYER_BASE = 2          # 8 rows per layer: bqkv, bo, ln1_g, ln1_b, b1, b2, ln2_g, ln2_b
_ROWS_PER_LAYER = 8
_HEAD_BASE = _LAYER_BASE + N_LAYERS * _ROWS_PER_LAYER   # pool_b, fc_sent_w, fc_sent_b, cls_b


# ---------------- fused forward kernel ----------------
def _fused_forward_kernel(emb_ref, mask_ref, aspect_ref, sent_ref,
                          wqkv_ref, wo_ref, w1_ref, w2_ref,
                          vecs_ref, pool_w_ref, wc_ref,
                          logits_ref):
    B, S = mask_ref.shape
    H = HIDDEN
    dh = HEAD_DIM
    f32 = jnp.float32
    bf16 = jnp.bfloat16

    def vrow(r, w):                       # (1, w) f32, static slice of the packed vector array
        return vecs_ref[r:r + 1, 0:w]

    def layernorm(x, g, b):
        mu = jnp.mean(x, axis=-1, keepdims=True)
        var = jnp.mean((x - mu) ** 2, axis=-1, keepdims=True)
        return (x - mu) * jax.lax.rsqrt(var + LN_EPS) * g + b

    def bdot(x, w):                       # bf16 MXU operands, f32 accumulate
        return jnp.dot(x.astype(bf16), w, preferred_element_type=f32)

    # ---- embeddings: table sums done in glue; LayerNorm here ----
    h = layernorm(emb_ref[...], vrow(_ROW_EMB_G, H), vrow(_ROW_EMB_B, H))

    # additive attention mask from the (B, S) mask
    neg_mask = (1.0 - mask_ref[...]) * -10000.0                       # (B, S)

    # ---- transformer encoder layers (post-LN BERT), fully unrolled (static) ----
    for l in range(N_LAYERS):
        base = _LAYER_BASE + l * _ROWS_PER_LAYER
        # fused QKV projection: one (B*S, H) @ (H, 3H) matmul; 1/sqrt(dh) pre-folded into wq/bq.
        qkv = bdot(h, wqkv_ref[l]) + vrow(base + 0, 3 * H)            # (B*S, 3H) f32

        ctx_heads = []
        for hd in range(N_HEADS):
            c0 = hd * dh
            q = qkv[:, c0:c0 + dh].reshape(B, S, dh)
            k = qkv[:, H + c0:H + c0 + dh].reshape(B, S, dh)
            v = qkv[:, 2 * H + c0:2 * H + c0 + dh].reshape(B, S, dh)
            s = jnp.einsum('bqd,bkd->bqk', q, k,
                           preferred_element_type=f32)                # (B, S, S)
            s = s + neg_mask[:, None, :]
            s = s - jnp.max(s, axis=-1, keepdims=True)
            p = jnp.exp(s)
            p = p * pl.reciprocal(jnp.sum(p, axis=-1, keepdims=True), approx=True)
            ctx = jnp.einsum('bqk,bkd->bqd', p, v,
                             preferred_element_type=f32)              # (B, S, dh)
            ctx_heads.append(ctx.reshape(B * S, dh))
        # merge heads, then ONE output-projection matmul per layer
        ctx_all = jnp.concatenate(ctx_heads, axis=-1)                 # (B*S, H)
        attn_out = bdot(ctx_all, wo_ref[l]) + vrow(base + 1, H)
        h = layernorm(attn_out + h, vrow(base + 2, H), vrow(base + 3, H))

        ff = bdot(h, w1_ref[l]) + vrow(base + 4, INTERMEDIATE)
        # TODO(synk): HF BERT uses exact erf-GELU; tanh-approx GELU kept for robust Mosaic lowering.
        ff = jax.nn.gelu(ff, approximate=True)
        ff = bdot(ff, w2_ref[l]) + vrow(base + 5, H)
        h = layernorm(ff + h, vrow(base + 6, H), vrow(base + 7, H))

    # ---- pooler + aspect/sentiment classification head (dropout = identity in eval) ----
    hb = _HEAD_BASE
    cls = h.reshape(B, S, H)[:, 0:1, :].reshape(B, H)                 # all [CLS] rows at once
    pooled = jnp.tanh(jnp.dot(cls, pool_w_ref[...], preferred_element_type=f32)
                      + vrow(hb + 0, H))                              # (B, H)
    # fc_sentiment: Linear(1, 32) == broadcasted outer product
    sent_emb = sent_ref[...] * vrow(hb + 1, SENT_DIM) + vrow(hb + 2, SENT_DIM)   # (B, 32)
    # classifier(concat(cls, aspect, sent_emb)) as a sum of partial matmuls
    logits = (jnp.dot(pooled, wc_ref[0:H, :], preferred_element_type=f32)
              + jnp.dot(aspect_ref[...], wc_ref[H:H + ASPECT_DIM, :],
                        preferred_element_type=f32)
              + jnp.dot(sent_emb, wc_ref[H + ASPECT_DIM:H + ASPECT_DIM + SENT_DIM, :],
                        preferred_element_type=f32)
              + vrow(hb + 3, NUM_LABELS))
    logits_ref[...] = logits                                          # single full-block store


# ---------------- parameters (deterministic synthetic init, PyTorch-like layout) ----------------
def init_params(key):
    keys = iter(jax.random.split(key, 64))

    def nrm(shape, scale=0.02):
        return (scale * jax.random.normal(next(keys), shape)).astype(jnp.float32)

    p = {
        "word_emb": nrm((VOCAB, HIDDEN)),
        "pos_emb": nrm((MAX_POS, HIDDEN)),
        "type_emb": nrm((TYPE_VOCAB, HIDDEN)),
        "emb_ln_g": jnp.ones((HIDDEN,), jnp.float32),
        "emb_ln_b": jnp.zeros((HIDDEN,), jnp.float32),
        "pool_w": nrm((HIDDEN, HIDDEN)),
        "pool_b": jnp.zeros((HIDDEN,), jnp.float32),
        "aspect_emb": nrm((NUM_ASPECTS, ASPECT_DIM), scale=1.0),
        "fc_sent_w": nrm((1, SENT_DIM), scale=1.0),
        "fc_sent_b": jnp.zeros((SENT_DIM,), jnp.float32),
        "cls_w": nrm((HIDDEN + ASPECT_DIM + SENT_DIM, NUM_LABELS), scale=0.1),
        "cls_b": jnp.zeros((NUM_LABELS,), jnp.float32),
        "layers": [],
    }
    for _ in range(N_LAYERS):
        p["layers"].append({
            "wq": nrm((HIDDEN, HIDDEN)), "bq": jnp.zeros((HIDDEN,), jnp.float32),
            "wk": nrm((HIDDEN, HIDDEN)), "bk": jnp.zeros((HIDDEN,), jnp.float32),
            "wv": nrm((HIDDEN, HIDDEN)), "bv": jnp.zeros((HIDDEN,), jnp.float32),
            "wo": nrm((HIDDEN, HIDDEN)), "bo": jnp.zeros((HIDDEN,), jnp.float32),
            "ln1_g": jnp.ones((HIDDEN,), jnp.float32),
            "ln1_b": jnp.zeros((HIDDEN,), jnp.float32),
            "w1": nrm((HIDDEN, INTERMEDIATE)), "b1": jnp.zeros((INTERMEDIATE,), jnp.float32),
            "w2": nrm((INTERMEDIATE, HIDDEN)), "b2": jnp.zeros((HIDDEN,), jnp.float32),
            "ln2_g": jnp.ones((HIDDEN,), jnp.float32),
            "ln2_b": jnp.zeros((HIDDEN,), jnp.float32),
        })
    return p


def pack_params(p):
    """Pack PyTorch-style params into a handful of kernel-ready buffers (done once)."""
    scale = 1.0 / math.sqrt(HEAD_DIM)
    layers = p["layers"]

    def pad_row(v):
        v = jnp.asarray(v, jnp.float32).reshape(-1)
        return jnp.pad(v, (0, 128 - v.shape[0]))

    # one (rows, 128) f32 buffer holding every bias / LN / head vector
    rows = [pad_row(p["emb_ln_g"]), pad_row(p["emb_ln_b"])]
    for lp in layers:
        rows += [
            pad_row(jnp.concatenate([lp["bq"] * scale, lp["bk"], lp["bv"]])),
            pad_row(lp["bo"]),
            pad_row(lp["ln1_g"]), pad_row(lp["ln1_b"]),
            pad_row(lp["b1"]), pad_row(lp["b2"]),
            pad_row(lp["ln2_g"]), pad_row(lp["ln2_b"]),
        ]
    rows += [pad_row(p["pool_b"]), pad_row(p["fc_sent_w"]),
             pad_row(p["fc_sent_b"]), pad_row(p["cls_b"])]
    while len(rows) % 8:
        rows.append(jnp.zeros((128,), jnp.float32))
    vecs = jnp.stack(rows)

    return {
        "word_emb": p["word_emb"], "pos_emb": p["pos_emb"], "type_emb": p["type_emb"],
        "aspect_emb": p["aspect_emb"],
        # fused QKV weight with attention scale folded into wq (free, exact); bf16 MXU operands
        "wqkv": jnp.stack([jnp.concatenate([lp["wq"] * scale, lp["wk"], lp["wv"]], axis=1)
                           for lp in layers]).astype(jnp.bfloat16),
        "wo": jnp.stack([lp["wo"] for lp in layers]).astype(jnp.bfloat16),
        "w1": jnp.stack([lp["w1"] for lp in layers]).astype(jnp.bfloat16),
        "w2": jnp.stack([lp["w2"] for lp in layers]).astype(jnp.bfloat16),
        "vecs": vecs,
        "pool_w": p["pool_w"],
        "wc": p["cls_w"],
    }


# ---------------- pallas_call plumbing (tiny model -> single fused full-array block) ----------------
def _full_spec(shape):
    nd = len(shape)
    return pl.BlockSpec(shape, lambda i, _nd=nd: (0,) * _nd)


@jax.jit
def aspect_bert_classifier_forward(packed, input_ids, attention_mask, token_type_ids,
                                   aspect_ids, sentiment_score):
    B, S = input_ids.shape
    H = HIDDEN

    # ---- glue: embedding-table gathers (no clean Pallas gather at this size) ----
    emb = (packed["word_emb"][input_ids]
           + packed["pos_emb"][jnp.arange(S)][None, :, :]
           + packed["type_emb"][token_type_ids]).reshape(B * S, H).astype(jnp.float32)
    mask = attention_mask.astype(jnp.float32)                             # (B, S)
    aspect_vec = packed["aspect_emb"][aspect_ids].astype(jnp.float32)     # (B, ASPECT_DIM)
    sent = sentiment_score.astype(jnp.float32).reshape(B, 1)              # unsqueeze(1)

    args = [emb, mask, aspect_vec, sent,
            packed["wqkv"], packed["wo"], packed["w1"], packed["w2"],
            packed["vecs"], packed["pool_w"], packed["wc"]]

    return pl.pallas_call(
        _fused_forward_kernel,
        grid=(1,),
        in_specs=[_full_spec(a.shape) for a in args],
        out_specs=_full_spec((B, NUM_LABELS)),
        out_shape=jax.ShapeDtypeStruct((B, NUM_LABELS), jnp.float32),
        compiler_params=pltpu.CompilerParams(dimension_semantics=("arbitrary",)),
    )(*args)


if __name__ == "__main__":
    key = jax.random.PRNGKey(0)
    pkey, dkey = jax.random.split(key)
    packed = pack_params(init_params(pkey))

    B, S = 2, 8
    k1, k2, k3 = jax.random.split(dkey, 3)
    input_ids = jax.random.randint(k1, (B, S), 0, VOCAB, dtype=jnp.int32)
    attention_mask = jnp.array([[1] * S, [1] * (S - 2) + [0, 0]], dtype=jnp.int32)
    token_type_ids = jnp.zeros((B, S), dtype=jnp.int32)
    aspect_ids = jax.random.randint(k2, (B,), 0, NUM_ASPECTS, dtype=jnp.int32)
    sentiment_score = jax.random.uniform(k3, (B,), minval=-1.0, maxval=1.0,
                                         dtype=jnp.float32)

    logits = aspect_bert_classifier_forward(packed, input_ids, attention_mask,
                                            token_type_ids, aspect_ids, sentiment_score)
    logits = jax.block_until_ready(logits)
    assert logits.shape == (B, NUM_LABELS)
    assert bool(jnp.all(jnp.isfinite(logits)))
    print("KERNEL_OK")
</pallas_src>

<mosaic_0001>
module attributes {stable_mosaic.version = 11 : i64} {
  func.func @_fused_forward_kernel(%arg0: i32, %arg1: memref<16x32xf32, #tpu.memory_space<vmem>>, %arg2: memref<2x8xf32, #tpu.memory_space<vmem>>, %arg3: memref<2x16xf32, #tpu.memory_space<vmem>>, %arg4: memref<2x1xf32, #tpu.memory_space<vmem>>, %arg5: memref<2x32x96xbf16, #tpu.memory_space<vmem>>, %arg6: memref<2x32x32xbf16, #tpu.memory_space<vmem>>, %arg7: memref<2x32x64xbf16, #tpu.memory_space<vmem>>, %arg8: memref<2x64x32xbf16, #tpu.memory_space<vmem>>, %arg9: memref<24x128xf32, #tpu.memory_space<vmem>>, %arg10: memref<32x32xf32, #tpu.memory_space<vmem>>, %arg11: memref<80x3xf32, #tpu.memory_space<vmem>>, %arg12: memref<2x3xf32, #tpu.memory_space<vmem>>) attributes {dimension_semantics = [#tpu.dimension_semantics<arbitrary>], iteration_bounds = array<i64: 1>, scalar_prefetch = 0 : i64, scratch_operands = 0 : i64, tpu.core_type = #tpu.core_type<tc>, window_params = [{pipeline_mode = #tpu.pipeline_mode<synchronous>, transform_indices = @transform_0, window_bounds = array<i64: 16, 32>}, {pipeline_mode = #tpu.pipeline_mode<synchronous>, transform_indices = @transform_1, window_bounds = array<i64: 2, 8>}, {pipeline_mode = #tpu.pipeline_mode<synchronous>, transform_indices = @transform_2, window_bounds = array<i64: 2, 16>}, {pipeline_mode = #tpu.pipeline_mode<synchronous>, transform_indices = @transform_3, window_bounds = array<i64: 2, 1>}, {pipeline_mode = #tpu.pipeline_mode<synchronous>, transform_indices = @transform_4, window_bounds = array<i64: 2, 32, 96>}, {pipeline_mode = #tpu.pipeline_mode<synchronous>, transform_indices = @transform_5, window_bounds = array<i64: 2, 32, 32>}, {pipeline_mode = #tpu.pipeline_mode<synchronous>, transform_indices = @transform_6, window_bounds = array<i64: 2, 32, 64>}, {pipeline_mode = #tpu.pipeline_mode<synchronous>, transform_indices = @transform_7, window_bounds = array<i64: 2, 64, 32>}, {pipeline_mode = #tpu.pipeline_mode<synchronous>, transform_indices = @transform_8, window_bounds = array<i64: 24, 128>}, {pipeline_mode = #tpu.pipeline_mode<synchronous>, transform_indices = @transform_9, window_bounds = array<i64: 32, 32>}, {pipeline_mode = #tpu.pipeline_mode<synchronous>, transform_indices = @transform_10, window_bounds = array<i64: 80, 3>}, {pipeline_mode = #tpu.pipeline_mode<synchronous>, transform_indices = @transform_11, window_bounds = array<i64: 2, 3>}]} {
    %c0 = arith.constant 0 : index
    %c0_0 = arith.constant 0 : index
    %0 = vector.load %arg1[%c0, %c0_0] : memref<16x32xf32, #tpu.memory_space<vmem>>, vector<16x32xf32>
    %c0_1 = arith.constant 0 : index
    %c0_2 = arith.constant 0 : index
    %1 = vector.load %arg9[%c0_1, %c0_2] : memref<24x128xf32, #tpu.memory_space<vmem>>, vector<1x32xf32>
    %c1 = arith.constant 1 : index
    %c0_3 = arith.constant 0 : index
    %2 = vector.load %arg9[%c1, %c0_3] : memref<24x128xf32, #tpu.memory_space<vmem>>, vector<1x32xf32>
    %cst = arith.constant dense<0.000000e+00> : vector<16xf32>
    %3 = vector.multi_reduction <add>, %0, %cst [1] : vector<16x32xf32> to vector<16xf32>
    %4 = vector.shape_cast %3 : vector<16xf32> to vector<16x1xf32>
    %cst_4 = arith.constant 3.200000e+01 : f32
    %5 = vector.broadcast %cst_4 : f32 to vector<16x1xf32>
    %6 = arith.divf %4, %5 : vector<16x1xf32>
    %7 = vector.broadcast %6 : vector<16x1xf32> to vector<16x32xf32>
    %8 = arith.subf %0, %7 : vector<16x32xf32>
    %9 = arith.mulf %8, %8 : vector<16x32xf32>
    %cst_5 = arith.constant dense<0.000000e+00> : vector<16xf32>
    %10 = vector.multi_reduction <add>, %9, %cst_5 [1] : vector<16x32xf32> to vector<16xf32>
    %11 = vector.shape_cast %10 : vector<16xf32> to vector<16x1xf32>
    %cst_6 = arith.constant 3.200000e+01 : f32
    %12 = vector.broadcast %cst_6 : f32 to vector<16x1xf32>
    %13 = arith.divf %11, %12 : vector<16x1xf32>
    %14 = vector.broadcast %6 : vector<16x1xf32> to vector<16x32xf32>
    %15 = arith.subf %0, %14 : vector<16x32xf32>
    %cst_7 = arith.constant 9.99999996E-13 : f32
    %16 = vector.broadcast %cst_7 : f32 to vector<16x1xf32>
    %17 = arith.addf %13, %16 : vector<16x1xf32>
    %18 = math.rsqrt %17 : vector<16x1xf32>
    %19 = vector.broadcast %18 : vector<16x1xf32> to vector<16x32xf32>
    %20 = arith.mulf %15, %19 : vector<16x32xf32>
    %21 = vector.broadcast %1 : vector<1x32xf32> to vector<16x32xf32>
    %22 = arith.mulf %20, %21 : vector<16x32xf32>
    %23 = vector.broadcast %2 : vector<1x32xf32> to vector<16x32xf32>
    %24 = arith.addf %22, %23 : vector<16x32xf32>
    %c0_8 = arith.constant 0 : index
    %c0_9 = arith.constant 0 : index
    %25 = vector.load %arg2[%c0_8, %c0_9] : memref<2x8xf32, #tpu.memory_space<vmem>>, vector<2x8xf32>
    %cst_10 = arith.constant 1.000000e+00 : f32
    %26 = vector.broadcast %cst_10 : f32 to vector<2x8xf32>
    %27 = arith.subf %26, %25 : vector<2x8xf32>
    %cst_11 = arith.constant -1.000000e+04 : f32
    %28 = vector.broadcast %cst_11 : f32 to vector<2x8xf32>
    %29 = arith.mulf %27, %28 : vector<2x8xf32>
    %c0_12 = arith.constant 0 : index
    %c0_13 = arith.constant 0 : index
    %c0_14 = arith.constant 0 : index
    %30 = vector.load %arg5[%c0_12, %c0_13, %c0_14] : memref<2x32x96xbf16, #tpu.memory_space<vmem>>, vector<1x32x96xbf16>
    %31 = vector.shape_cast %30 : vector<1x32x96xbf16> to vector<32x96xbf16>
    %32 = arith.truncf %24 : vector<16x32xf32> to vector<16x32xbf16>
    %cst_15 = arith.constant dense<0.000000e+00> : vector<16x96xf32>
    %33 = tpu.matmul %32, %31, %cst_15 {dimension_numbers = #tpu.dot_dimension_numbers<[1], [0], [0], [1], [0, 0, 1, 1], [], []>} : vector<16x32xbf16>, vector<32x96xbf16>, vector<16x96xf32> -> vector<16x96xf32>
    %c2 = arith.constant 2 : index
    %c0_16 = arith.constant 0 : index
    %34 = vector.load %arg9[%c2, %c0_16] : memref<24x128xf32, #tpu.memory_space<vmem>>, vector<1x96xf32>
    %35 = vector.broadcast %34 : vector<1x96xf32> to vector<16x96xf32>
    %36 = arith.addf %33, %35 : vector<16x96xf32>
    %37 = vector.extract_strided_slice %36 {offsets = [0, 0], sizes = [16, 16], strides = [1, 1]} : vector<16x96xf32> to vector<16x16xf32>
    %38 = vector.shape_cast %37 : vector<16x16xf32> to vector<2x8x16xf32>
    %39 = vector.extract_strided_slice %36 {offsets = [0, 32], sizes = [16, 16], strides = [1, 1]} : vector<16x96xf32> to vector<16x16xf32>
    %40 = vector.shape_cast %39 : vector<16x16xf32> to vector<2x8x16xf32>
    %41 = vector.extract_strided_slice %36 {offsets = [0, 64], sizes = [16, 16], strides = [1, 1]} : vector<16x96xf32> to vector<16x16xf32>
    %42 = vector.shape_cast %41 : vector<16x16xf32> to vector<2x8x16xf32>
    "tpu.trace_start"() <{level = 10 : i32, message = "bqd,bkd->bqk"}> : () -> ()
    %cst_17 = arith.constant dense<0.000000e+00> : vector<2x8x8xf32>
    %43 = tpu.matmul %38, %40, %cst_17 {dimension_numbers = #tpu.dot_dimension_numbers<[2], [2], [1], [1], [0, 0, 0, 1, 1, 1], [0], [0]>} : vector<2x8x16xf32>, vector<2x8x16xf32>, vector<2x8x8xf32> -> vector<2x8x8xf32>
    "tpu.trace_stop"() : () -> ()
    %44 = vector.shape_cast %29 : vector<2x8xf32> to vector<2x1x8xf32>
    %45 = vector.broadcast %44 : vector<2x1x8xf32> to vector<2x8x8xf32>
    %46 = arith.addf %43, %45 : vector<2x8x8xf32>
    %cst_18 = arith.constant dense<0xFF800000> : vector<2x8xf32>
    %47 = vector.multi_reduction <maximumf>, %46, %cst_18 [2] : vector<2x8x8xf32> to vector<2x8xf32>
    %48 = vector.shape_cast %47 : vector<2x8xf32> to vector<2x8x1xf32>
    %49 = vector.broadcast %48 : vector<2x8x1xf32> to vector<2x8x8xf32>
    %50 = arith.subf %46, %49 : vector<2x8x8xf32>
    %51 = math.exp %50 : vector<2x8x8xf32>
    %cst_19 = arith.constant dense<0.000000e+00> : vector<2x8xf32>
    %52 = vector.multi_reduction <add>, %51, %cst_19 [2] : vector<2x8x8xf32> to vector<2x8xf32>
    %53 = vector.shape_cast %52 : vector<2x8xf32> to vector<2x8x1xf32>
    %54 = tpu.reciprocal %53 {approx = true} : vector<2x8x1xf32> -> vector<2x8x1xf32>
    %55 = vector.broadcast %54 : vector<2x8x1xf32> to vector<2x8x8xf32>
    %56 = arith.mulf %51, %55 : vector<2x8x8xf32>
    "tpu.trace_start"() <{level = 10 : i32, message = "bqk,bkd->bqd"}> : () -> ()
    %cst_20 = arith.constant dense<0.000000e+00> : vector<2x8x16xf32>
    %57 = tpu.matmul %56, %42, %cst_20 {dimension_numbers = #tpu.dot_dimension_numbers<[2], [1], [1], [2], [0, 0, 0, 1, 1, 2], [0], [0]>} : vector<2x8x8xf32>, vector<2x8x16xf32>, vector<2x8x16xf32> -> vector<2x8x16xf32>
    "tpu.trace_stop"() : () -> ()
    %58 = vector.shape_cast %57 : vector<2x8x16xf32> to vector<16x16xf32>
    %59 = vector.extract_strided_slice %36 {offsets = [0, 16], sizes = [16, 16], strides = [1, 1]} : vector<16x96xf32> to vector<16x16xf32>
    %60 = vector.shape_cast %59 : vector<16x16xf32> to vector<2x8x16xf32>
    %61 = vector.extract_strided_slice %36 {offsets = [0, 48], sizes = [16, 16], strides = [1, 1]} : vector<16x96xf32> to vector<16x16xf32>
    %62 = vector.shape_cast %61 : vector<16x16xf32> to vector<2x8x16xf32>
    %63 = vector.extract_strided_slice %36 {offsets = [0, 80], sizes = [16, 16], strides = [1, 1]} : vector<16x96xf32> to vector<16x16xf32>
    %64 = vector.shape_cast %63 : vector<16x16xf32> to vector<2x8x16xf32>
    "tpu.trace_start"() <{level = 10 : i32, message = "bqd,bkd->bqk"}> : () -> ()
    %cst_21 = arith.constant dense<0.000000e+00> : vector<2x8x8xf32>
    %65 = tpu.matmul %60, %62, %cst_21 {dimension_numbers = #tpu.dot_dimension_numbers<[2], [2], [1], [1], [0, 0, 0, 1, 1, 1], [0], [0]>} : vector<2x8x16xf32>, vector<2x8x16xf32>, vector<2x8x8xf32> -> vector<2x8x8xf32>
    "tpu.trace_stop"() : () -> ()
    %66 = vector.shape_cast %29 : vector<2x8xf32> to vector<2x1x8xf32>
    %67 = vector.broadcast %66 : vector<2x1x8xf32> to vector<2x8x8xf32>
    %68 = arith.addf %65, %67 : vector<2x8x8xf32>
    %cst_22 = arith.constant dense<0xFF800000> : vector<2x8xf32>
    %69 = vector.multi_reduction <maximumf>, %68, %cst_22 [2] : vector<2x8x8xf32> to vector<2x8xf32>
    %70 = vector.shape_cast %69 : vector<2x8xf32> to vector<2x8x1xf32>
    %71 = vector.broadcast %70 : vector<2x8x1xf32> to vector<2x8x8xf32>
    %72 = arith.subf %68, %71 : vector<2x8x8xf32>
    %73 = math.exp %72 : vector<2x8x8xf32>
    %cst_23 = arith.constant dense<0.000000e+00> : vector<2x8xf32>
    %74 = vector.multi_reduction <add>, %73, %cst_23 [2] : vector<2x8x8xf32> to vector<2x8xf32>
    %75 = vector.shape_cast %74 : vector<2x8xf32> to vector<2x8x1xf32>
    %76 = tpu.reciprocal %75 {approx = true} : vector<2x8x1xf32> -> vector<2x8x1xf32>
    %77 = vector.broadcast %76 : vector<2x8x1xf32> to vector<2x8x8xf32>
    %78 = arith.mulf %73, %77 : vector<2x8x8xf32>
    "tpu.trace_start"() <{level = 10 : i32, message = "bqk,bkd->bqd"}> : () -> ()
    %cst_24 = arith.constant dense<0.000000e+00> : vector<2x8x16xf32>
    %79 = tpu.matmul %78, %64, %cst_24 {dimension_numbers = #tpu.dot_dimension_numbers<[2], [1], [1], [2], [0, 0, 0, 1, 1, 2], [0], [0]>} : vector<2x8x8xf32>, vector<2x8x16xf32>, vector<2x8x16xf32> -> vector<2x8x16xf32>
    "tpu.trace_stop"() : () -> ()
    %80 = vector.shape_cast %79 : vector<2x8x16xf32> to vector<16x16xf32>
    %81 = tpu.concatenate %58, %80 in 1 : vector<16x16xf32>, vector<16x16xf32> -> vector<16x32xf32>
    %c0_25 = arith.constant 0 : index
    %c0_26 = arith.constant 0 : index
    %c0_27 = arith.constant 0 : index
    %82 = vector.load %arg6[%c0_25, %c0_26, %c0_27] : memref<2x32x32xbf16, #tpu.memory_space<vmem>>, vector<1x32x32xbf16>
    %83 = vector.shape_cast %82 : vector<1x32x32xbf16> to vector<32x32xbf16>
    %84 = arith.truncf %81 : vector<16x32xf32> to vector<16x32xbf16>
    %cst_28 = arith.constant dense<0.000000e+00> : vector<16x32xf32>
    %85 = tpu.matmul %84, %83, %cst_28 {dimension_numbers = #tpu.dot_dimension_numbers<[1], [0], [0], [1], [0, 0, 1, 1], [], []>} : vector<16x32xbf16>, vector<32x32xbf16>, vector<16x32xf32> -> vector<16x32xf32>
    %c3 = arith.constant 3 : index
    %c0_29 = arith.constant 0 : index
    %86 = vector.load %arg9[%c3, %c0_29] : memref<24x128xf32, #tpu.memory_space<vmem>>, vector<1x32xf32>
    %87 = vector.broadcast %86 : vector<1x32xf32> to vector<16x32xf32>
    %88 = arith.addf %85, %87 : vector<16x32xf32>
    %89 = arith.addf %88, %24 : vector<16x32xf32>
    %c4 = arith.constant 4 : index
    %c0_30 = arith.constant 0 : index
    %90 = vector.load %arg9[%c4, %c0_30] : memref<24x128xf32, #tpu.memory_space<vmem>>, vector<1x32xf32>
    %c5 = arith.constant 5 : index
    %c0_31 = arith.constant 0 : index
    %91 = vector.load %arg9[%c5, %c0_31] : memref<24x128xf32, #tpu.memory_space<vmem>>, vector<1x32xf32>
    %cst_32 = arith.constant dense<0.000000e+00> : vector<16xf32>
    %92 = vector.multi_reduction <add>, %89, %cst_32 [1] : vector<16x32xf32> to vector<16xf32>
    %93 = vector.shape_cast %92 : vector<16xf32> to vector<16x1xf32>
    %cst_33 = arith.constant 3.200000e+01 : f32
    %94 = vector.broadcast %cst_33 : f32 to vector<16x1xf32>
    %95 = arith.divf %93, %94 : vector<16x1xf32>
    %96 = vector.broadcast %95 : vector<16x1xf32> to vector<16x32xf32>
    %97 = arith.subf %89, %96 : vector<16x32xf32>
    %98 = arith.mulf %97, %97 : vector<16x32xf32>
    %cst_34 = arith.constant dense<0.000000e+00> : vector<16xf32>
    %99 = vector.multi_reduction <add>, %98, %cst_34 [1] : vector<16x32xf32> to vector<16xf32>
    %100 = vector.shape_cast %99 : vector<16xf32> to vector<16x1xf32>
    %cst_35 = arith.constant 3.200000e+01 : f32
    %101 = vector.broadcast %cst_35 : f32 to vector<16x1xf32>
    %102 = arith.divf %100, %101 : vector<16x1xf32>
    %103 = vector.broadcast %95 : vector<16x1xf32> to vector<16x32xf32>
    %104 = arith.subf %89, %103 : vector<16x32xf32>
    %cst_36 = arith.constant 9.99999996E-13 : f32
    %105 = vector.broadcast %cst_36 : f32 to vector<16x1xf32>
    %106 = arith.addf %102, %105 : vector<16x1xf32>
    %107 = math.rsqrt %106 : vector<16x1xf32>
    %108 = vector.broadcast %107 : vector<16x1xf32> to vector<16x32xf32>
    %109 = arith.mulf %104, %108 : vector<16x32xf32>
    %110 = vector.broadcast %90 : vector<1x32xf32> to vector<16x32xf32>
    %111 = arith.mulf %109, %110 : vector<16x32xf32>
    %112 = vector.broadcast %91 : vector<1x32xf32> to vector<16x32xf32>
    %113 = arith.addf %111, %112 : vector<16x32xf32>
    %c0_37 = arith.constant 0 : index
    %c0_38 = arith.constant 0 : index
    %c0_39 = arith.constant 0 : index
    %114 = vector.load %arg7[%c0_37, %c0_38, %c0_39] : memref<2x32x64xbf16, #tpu.memory_space<vmem>>, vector<1x32x64xbf16>
    %115 = vector.shape_cast %114 : vector<1x32x64xbf16> to vector<32x64xbf16>
    %116 = arith.truncf %113 : vector<16x32xf32> to vector<16x32xbf16>
    %cst_40 = arith.constant dense<0.000000e+00> : vector<16x64xf32>
    %117 = tpu.matmul %116, %115, %cst_40 {dimension_numbers = #tpu.dot_dimension_numbers<[1], [0], [0], [1], [0, 0, 1, 1], [], []>} : vector<16x32xbf16>, vector<32x64xbf16>, vector<16x64xf32> -> vector<16x64xf32>
    %c6 = arith.constant 6 : index
    %c0_41 = arith.constant 0 : index
    %118 = vector.load %arg9[%c6, %c0_41] : memref<24x128xf32, #tpu.memory_space<vmem>>, vector<1x64xf32>
    %119 = vector.broadcast %118 : vector<1x64xf32> to vector<16x64xf32>
    %120 = arith.addf %117, %119 : vector<16x64xf32>
    %121 = arith.mulf %120, %120 : vector<16x64xf32>
    %122 = arith.mulf %120, %121 : vector<16x64xf32>
    %cst_42 = arith.constant 4.471500e-02 : f32
    %123 = vector.broadcast %cst_42 : f32 to vector<16x64xf32>
    %124 = arith.mulf %123, %122 : vector<16x64xf32>
    %125 = arith.addf %120, %124 : vector<16x64xf32>
    %cst_43 = arith.constant 0.797884583 : f32
    %126 = vector.broadcast %cst_43 : f32 to vector<16x64xf32>
    %127 = arith.mulf %126, %125 : vector<16x64xf32>
    %128 = math.tanh %127 : vector<16x64xf32>
    %cst_44 = arith.constant 1.000000e+00 : f32
    %129 = vector.broadcast %cst_44 : f32 to vector<16x64xf32>
    %130 = arith.addf %129, %128 : vector<16x64xf32>
    %cst_45 = arith.constant 5.000000e-01 : f32
    %131 = vector.broadcast %cst_45 : f32 to vector<16x64xf32>
    %132 = arith.mulf %131, %130 : vector<16x64xf32>
    %133 = arith.mulf %120, %132 : vector<16x64xf32>
    %c0_46 = arith.constant 0 : index
    %c0_47 = arith.constant 0 : index
    %c0_48 = arith.constant 0 : index
    %134 = vector.load %arg8[%c0_46, %c0_47, %c0_48] : memref<2x64x32xbf16, #tpu.memory_space<vmem>>, vector<1x64x32xbf16>
    %135 = vector.shape_cast %134 : vector<1x64x32xbf16> to vector<64x32xbf16>
    %136 = arith.truncf %133 : vector<16x64xf32> to vector<16x64xbf16>
    %cst_49 = arith.constant dense<0.000000e+00> : vector<16x32xf32>
    %137 = tpu.matmul %136, %135, %cst_49 {dimension_numbers = #tpu.dot_dimension_numbers<[1], [0], [0], [1], [0, 0, 1, 1], [], []>} : vector<16x64xbf16>, vector<64x32xbf16>, vector<16x32xf32> -> vector<16x32xf32>
    %c7 = arith.constant 7 : index
    %c0_50 = arith.constant 0 : index
    %138 = vector.load %arg9[%c7, %c0_50] : memref<24x128xf32, #tpu.memory_space<vmem>>, vector<1x32xf32>
    %139 = vector.broadcast %138 : vector<1x32xf32> to vector<16x32xf32>
    %140 = arith.addf %137, %139 : vector<16x32xf32>
    %141 = arith.addf %140, %113 : vector<16x32xf32>
    %c8 = arith.constant 8 : index
    %c0_51 = arith.constant 0 : index
    %142 = vector.load %arg9[%c8, %c0_51] : memref<24x128xf32, #tpu.memory_space<vmem>>, vector<1x32xf32>
    %c9 = arith.constant 9 : index
    %c0_52 = arith.constant 0 : index
    %143 = vector.load %arg9[%c9, %c0_52] : memref<24x128xf32, #tpu.memory_space<vmem>>, vector<1x32xf32>
    %cst_53 = arith.constant dense<0.000000e+00> : vector<16xf32>
    %144 = vector.multi_reduction <add>, %141, %cst_53 [1] : vector<16x32xf32> to vector<16xf32>
    %145 = vector.shape_cast %144 : vector<16xf32> to vector<16x1xf32>
    %cst_54 = arith.constant 3.200000e+01 : f32
    %146 = vector.broadcast %cst_54 : f32 to vector<16x1xf32>
    %147 = arith.divf %145, %146 : vector<16x1xf32>
    %148 = vector.broadcast %147 : vector<16x1xf32> to vector<16x32xf32>
    %149 = arith.subf %141, %148 : vector<16x32xf32>
    %150 = arith.mulf %149, %149 : vector<16x32xf32>
    %cst_55 = arith.constant dense<0.000000e+00> : vector<16xf32>
    %151 = vector.multi_reduction <add>, %150, %cst_55 [1] : vector<16x32xf32> to vector<16xf32>
    %152 = vector.shape_cast %151 : vector<16xf32> to vector<16x1xf32>
    %cst_56 = arith.constant 3.200000e+01 : f32
    %153 = vector.broadcast %cst_56 : f32 to vector<16x1xf32>
    %154 = arith.divf %152, %153 : vector<16x1xf32>
    %155 = vector.broadcast %147 : vector<16x1xf32> to vector<16x32xf32>
    %156 = arith.subf %141, %155 : vector<16x32xf32>
    %cst_57 = arith.constant 9.99999996E-13 : f32
    %157 = vector.broadcast %cst_57 : f32 to vector<16x1xf32>
    %158 = arith.addf %154, %157 : vector<16x1xf32>
    %159 = math.rsqrt %158 : vector<16x1xf32>
    %160 = vector.broadcast %159 : vector<16x1xf32> to vector<16x32xf32>
    %161 = arith.mulf %156, %160 : vector<16x32xf32>
    %162 = vector.broadcast %142 : vector<1x32xf32> to vector<16x32xf32>
    %163 = arith.mulf %161, %162 : vector<16x32xf32>
    %164 = vector.broadcast %143 : vector<1x32xf32> to vector<16x32xf32>
    %165 = arith.addf %163, %164 : vector<16x32xf32>
    %c1_58 = arith.constant 1 : index
    %c0_59 = arith.constant 0 : index
    %c0_60 = arith.constant 0 : index
    %166 = vector.load %arg5[%c1_58, %c0_59, %c0_60] : memref<2x32x96xbf16, #tpu.memory_space<vmem>>, vector<1x32x96xbf16>
    %167 = vector.shape_cast %166 : vector<1x32x96xbf16> to vector<32x96xbf16>
    %168 = arith.truncf %165 : vector<16x32xf32> to vector<16x32xbf16>
    %cst_61 = arith.constant dense<0.000000e+00> : vector<16x96xf32>
    %169 = tpu.matmul %168, %167, %cst_61 {dimension_numbers = #tpu.dot_dimension_numbers<[1], [0], [0], [1], [0, 0, 1, 1], [], []>} : vector<16x32xbf16>, vector<32x96xbf16>, vector<16x96xf32> -> vector<16x96xf32>
    %c10 = arith.constant 10 : index
    %c0_62 = arith.constant 0 : index
    %170 = vector.load %arg9[%c10, %c0_62] : memref<24x128xf32, #tpu.memory_space<vmem>>, vector<1x96xf32>
    %171 = vector.broadcast %170 : vector<1x96xf32> to vector<16x96xf32>
    %172 = arith.addf %169, %171 : vector<16x96xf32>
    %173 = vector.extract_strided_slice %172 {offsets = [0, 0], sizes = [16, 16], strides = [1, 1]} : vector<16x96xf32> to vector<16x16xf32>
    %174 = vector.shape_cast %173 : vector<16x16xf32> to vector<2x8x16xf32>
    %175 = vector.extract_strided_slice %172 {offsets = [0, 32], sizes = [16, 16], strides = [1, 1]} : vector<16x96xf32> to vector<16x16xf32>
    %176 = vector.shape_cast %175 : vector<16x16xf32> to vector<2x8x16xf32>
    %177 = vector.extract_strided_slice %172 {offsets = [0, 64], sizes = [16, 16], strides = [1, 1]} : vector<16x96xf32> to vector<16x16xf32>
    %178 = vector.shape_cast %177 : vector<16x16xf32> to vector<2x8x16xf32>
    "tpu.trace_start"() <{level = 10 : i32, message = "bqd,bkd->bqk"}> : () -> ()
    %cst_63 = arith.constant dense<0.000000e+00> : vector<2x8x8xf32>
    %179 = tpu.matmul %174, %176, %cst_63 {dimension_numbers = #tpu.dot_dimension_numbers<[2], [2], [1], [1], [0, 0, 0, 1, 1, 1], [0], [0]>} : vector<2x8x16xf32>, vector<2x8x16xf32>, vector<2x8x8xf32> -> vector<2x8x8xf32>
    "tpu.trace_stop"() : () -> ()
    %180 = vector.shape_cast %29 : vector<2x8xf32> to vector<2x1x8xf32>
    %181 = vector.broadcast %180 : vector<2x1x8xf32> to vector<2x8x8xf32>
    %182 = arith.addf %179, %181 : vector<2x8x8xf32>
    %cst_64 = arith.constant dense<0xFF800000> : vector<2x8xf32>
    %183 = vector.multi_reduction <maximumf>, %182, %cst_64 [2] : vector<2x8x8xf32> to vector<2x8xf32>
    %184 = vector.shape_cast %183 : vector<2x8xf32> to vector<2x8x1xf32>
    %185 = vector.broadcast %184 : vector<2x8x1xf32> to vector<2x8x8xf32>
    %186 = arith.subf %182, %185 : vector<2x8x8xf32>
    %187 = math.exp %186 : vector<2x8x8xf32>
    %cst_65 = arith.constant dense<0.000000e+00> : vector<2x8xf32>
    %188 = vector.multi_reduction <add>, %187, %cst_65 [2] : vector<2x8x8xf32> to vector<2x8xf32>
    %189 = vector.shape_cast %188 : vector<2x8xf32> to vector<2x8x1xf32>
    %190 = tpu.reciprocal %189 {approx = true} : vector<2x8x1xf32> -> vector<2x8x1xf32>
    %191 = vector.broadcast %190 : vector<2x8x1xf32> to vector<2x8x8xf32>
    %192 = arith.mulf %187, %191 : vector<2x8x8xf32>
    "tpu.trace_start"() <{level = 10 : i32, message = "bqk,bkd->bqd"}> : () -> ()
    %cst_66 = arith.constant dense<0.000000e+00> : vector<2x8x16xf32>
    %193 = tpu.matmul %192, %178, %cst_66 {dimension_numbers = #tpu.dot_dimension_numbers<[2], [1], [1], [2], [0, 0, 0, 1, 1, 2], [0], [0]>} : vector<2x8x8xf32>, vector<2x8x16xf32>, vector<2x8x16xf32> -> vector<2x8x16xf32>
    "tpu.trace_stop"() : () -> ()
    %194 = vector.shape_cast %193 : vector<2x8x16xf32> to vector<16x16xf32>
    %195 = vector.extract_strided_slice %172 {offsets = [0, 16], sizes = [16, 16], strides = [1, 1]} : vector<16x96xf32> to vector<16x16xf32>
    %196 = vector.shape_cast %195 : vector<16x16xf32> to vector<2x8x16xf32>
    %197 = vector.extract_strided_slice %172 {offsets = [0, 48], sizes = [16, 16], strides = [1, 1]} : vector<16x96xf32> to vector<16x16xf32>
    %198 = vector.shape_cast %197 : vector<16x16xf32> to vector<2x8x16xf32>
    %199 = vector.extract_strided_slice %172 {offsets = [0, 80], sizes = [16, 16], strides = [1, 1]} : vector<16x96xf32> to vector<16x16xf32>
    %200 = vector.shape_cast %199 : vector<16x16xf32> to vector<2x8x16xf32>
    "tpu.trace_start"() <{level = 10 : i32, message = "bqd,bkd->bqk"}> : () -> ()
    %cst_67 = arith.constant dense<0.000000e+00> : vector<2x8x8xf32>
    %201 = tpu.matmul %196, %198, %cst_67 {dimension_numbers = #tpu.dot_dimension_numbers<[2], [2], [1], [1], [0, 0, 0, 1, 1, 1], [0], [0]>} : vector<2x8x16xf32>, vector<2x8x16xf32>, vector<2x8x8xf32> -> vector<2x8x8xf32>
    "tpu.trace_stop"() : () -> ()
    %202 = vector.shape_cast %29 : vector<2x8xf32> to vector<2x1x8xf32>
    %203 = vector.broadcast %202 : vector<2x1x8xf32> to vector<2x8x8xf32>
    %204 = arith.addf %201, %203 : vector<2x8x8xf32>
    %cst_68 = arith.constant dense<0xFF800000> : vector<2x8xf32>
    %205 = vector.multi_reduction <maximumf>, %204, %cst_68 [2] : vector<2x8x8xf32> to vector<2x8xf32>
    %206 = vector.shape_cast %205 : vector<2x8xf32> to vector<2x8x1xf32>
    %207 = vector.broadcast %206 : vector<2x8x1xf32> to vector<2x8x8xf32>
    %208 = arith.subf %204, %207 : vector<2x8x8xf32>
    %209 = math.exp %208 : vector<2x8x8xf32>
    %cst_69 = arith.constant dense<0.000000e+00> : vector<2x8xf32>
    %210 = vector.multi_reduction <add>, %209, %cst_69 [2] : vector<2x8x8xf32> to vector<2x8xf32>
    %211 = vector.shape_cast %210 : vector<2x8xf32> to vector<2x8x1xf32>
    %212 = tpu.reciprocal %211 {approx = true} : vector<2x8x1xf32> -> vector<2x8x1xf32>
    %213 = vector.broadcast %212 : vector<2x8x1xf32> to vector<2x8x8xf32>
    %214 = arith.mulf %209, %213 : vector<2x8x8xf32>
    "tpu.trace_start"() <{level = 10 : i32, message = "bqk,bkd->bqd"}> : () -> ()
    %cst_70 = arith.constant dense<0.000000e+00> : vector<2x8x16xf32>
    %215 = tpu.matmul %214, %200, %cst_70 {dimension_numbers = #tpu.dot_dimension_numbers<[2], [1], [1], [2], [0, 0, 0, 1, 1, 2], [0], [0]>} : vector<2x8x8xf32>, vector<2x8x16xf32>, vector<2x8x16xf32> -> vector<2x8x16xf32>
    "tpu.trace_stop"() : () -> ()
    %216 = vector.shape_cast %215 : vector<2x8x16xf32> to vector<16x16xf32>
    %217 = tpu.concatenate %194, %216 in 1 : vector<16x16xf32>, vector<16x16xf32> -> vector<16x32xf32>
    %c1_71 = arith.constant 1 : index
    %c0_72 = arith.constant 0 : index
    %c0_73 = arith.constant 0 : index
    %218 = vector.load %arg6[%c1_71, %c0_72, %c0_73] : memref<2x32x32xbf16, #tpu.memory_space<vmem>>, vector<1x32x32xbf16>
    %219 = vector.shape_cast %218 : vector<1x32x32xbf16> to vector<32x32xbf16>
    %220 = arith.truncf %217 : vector<16x32xf32> to vector<16x32xbf16>
    %cst_74 = arith.constant dense<0.000000e+00> : vector<16x32xf32>
    %221 = tpu.matmul %220, %219, %cst_74 {dimension_numbers = #tpu.dot_dimension_numbers<[1], [0], [0], [1], [0, 0, 1, 1], [], []>} : vector<16x32xbf16>, vector<32x32xbf16>, vector<16x32xf32> -> vector<16x32xf32>
    %c11 = arith.constant 11 : index
    %c0_75 = arith.constant 0 : index
    %222 = vector.load %arg9[%c11, %c0_75] : memref<24x128xf32, #tpu.memory_space<vmem>>, vector<1x32xf32>
    %223 = vector.broadcast %222 : vector<1x32xf32> to vector<16x32xf32>
    %224 = arith.addf %221, %223 : vector<16x32xf32>
    %225 = arith.addf %224, %165 : vector<16x32xf32>
    %c12 = arith.constant 12 : index
    %c0_76 = arith.constant 0 : index
    %226 = vector.load %arg9[%c12, %c0_76] : memref<24x128xf32, #tpu.memory_space<vmem>>, vector<1x32xf32>
    %c13 = arith.constant 13 : index
    %c0_77 = arith.constant 0 : index
    %227 = vector.load %arg9[%c13, %c0_77] : memref<24x128xf32, #tpu.memory_space<vmem>>, vector<1x32xf32>
    %cst_78 = arith.constant dense<0.000000e+00> : vector<16xf32>
    %228 = vector.multi_reduction <add>, %225, %cst_78 [1] : vector<16x32xf32> to vector<16xf32>
    %229 = vector.shape_cast %228 : vector<16xf32> to vector<16x1xf32>
    %cst_79 = arith.constant 3.200000e+01 : f32
    %230 = vector.broadcast %cst_79 : f32 to vector<16x1xf32>
    %231 = arith.divf %229, %230 : vector<16x1xf32>
    %232 = vector.broadcast %231 : vector<16x1xf32> to vector<16x32xf32>
    %233 = arith.subf %225, %232 : vector<16x32xf32>
    %234 = arith.mulf %233, %233 : vector<16x32xf32>
    %cst_80 = arith.constant dense<0.000000e+00> : vector<16xf32>
    %235 = vector.multi_reduction <add>, %234, %cst_80 [1] : vector<16x32xf32> to vector<16xf32>
    %236 = vector.shape_cast %235 : vector<16xf32> to vector<16x1xf32>
    %cst_81 = arith.constant 3.200000e+01 : f32
    %237 = vector.broadcast %cst_81 : f32 to vector<16x1xf32>
    %238 = arith.divf %236, %237 : vector<16x1xf32>
    %239 = vector.broadcast %231 : vector<16x1xf32> to vector<16x32xf32>
    %240 = arith.subf %225, %239 : vector<16x32xf32>
    %cst_82 = arith.constant 9.99999996E-13 : f32
    %241 = vector.broadcast %cst_82 : f32 to vector<16x1xf32>
    %242 = arith.addf %238, %241 : vector<16x1xf32>
    %243 = math.rsqrt %242 : vector<16x1xf32>
    %244 = vector.broadcast %243 : vector<16x1xf32> to vector<16x32xf32>
    %245 = arith.mulf %240, %244 : vector<16x32xf32>
    %246 = vector.broadcast %226 : vector<1x32xf32> to vector<16x32xf32>
    %247 = arith.mulf %245, %246 : vector<16x32xf32>
    %248 = vector.broadcast %227 : vector<1x32xf32> to vector<16x32xf32>
    %249 = arith.addf %247, %248 : vector<16x32xf32>
    %c1_83 = arith.constant 1 : index
    %c0_84 = arith.constant 0 : index
    %c0_85 = arith.constant 0 : index
    %250 = vector.load %arg7[%c1_83, %c0_84, %c0_85] : memref<2x32x64xbf16, #tpu.memory_space<vmem>>, vector<1x32x64xbf16>
    %251 = vector.shape_cast %250 : vector<1x32x64xbf16> to vector<32x64xbf16>
    %252 = arith.truncf %249 : vector<16x32xf32> to vector<16x32xbf16>
    %cst_86 = arith.constant dense<0.000000e+00> : vector<16x64xf32>
    %253 = tpu.matmul %252, %251, %cst_86 {dimension_numbers = #tpu.dot_dimension_numbers<[1], [0], [0], [1], [0, 0, 1, 1], [], []>} : vector<16x32xbf16>, vector<32x64xbf16>, vector<16x64xf32> -> vector<16x64xf32>
    %c14 = arith.constant 14 : index
    %c0_87 = arith.constant 0 : index
    %254 = vector.load %arg9[%c14, %c0_87] : memref<24x128xf32, #tpu.memory_space<vmem>>, vector<1x64xf32>
    %255 = vector.broadcast %254 : vector<1x64xf32> to vector<16x64xf32>
    %256 = arith.addf %253, %255 : vector<16x64xf32>
    %257 = arith.mulf %256, %256 : vector<16x64xf32>
    %258 = arith.mulf %256, %257 : vector<16x64xf32>
    %cst_88 = arith.constant 4.471500e-02 : f32
    %259 = vector.broadcast %cst_88 : f32 to vector<16x64xf32>
    %260 = arith.mulf %259, %258 : vector<16x64xf32>
    %261 = arith.addf %256, %260 : vector<16x64xf32>
    %cst_89 = arith.constant 0.797884583 : f32
    %262 = vector.broadcast %cst_89 : f32 to vector<16x64xf32>
    %263 = arith.mulf %262, %261 : vector<16x64xf32>
    %264 = math.tanh %263 : vector<16x64xf32>
    %cst_90 = arith.constant 1.000000e+00 : f32
    %265 = vector.broadcast %cst_90 : f32 to vector<16x64xf32>
    %266 = arith.addf %265, %264 : vector<16x64xf32>
    %cst_91 = arith.constant 5.000000e-01 : f32
    %267 = vector.broadcast %cst_91 : f32 to vector<16x64xf32>
    %268 = arith.mulf %267, %266 : vector<16x64xf32>
    %269 = arith.mulf %256, %268 : vector<16x64xf32>
    %c1_92 = arith.constant 1 : index
    %c0_93 = arith.constant 0 : index
    %c0_94 = arith.constant 0 : index
    %270 = vector.load %arg8[%c1_92, %c0_93, %c0_94] : memref<2x64x32xbf16, #tpu.memory_space<vmem>>, vector<1x64x32xbf16>
    %271 = vector.shape_cast %270 : vector<1x64x32xbf16> to vector<64x32xbf16>
    %272 = arith.truncf %269 : vector<16x64xf32> to vector<16x64xbf16>
    %cst_95 = arith.constant dense<0.000000e+00> : vector<16x32xf32>
    %273 = tpu.matmul %272, %271, %cst_95 {dimension_numbers = #tpu.dot_dimension_numbers<[1], [0], [0], [1], [0, 0, 1, 1], [], []>} : vector<16x64xbf16>, vector<64x32xbf16>, vector<16x32xf32> -> vector<16x32xf32>
    %c15 = arith.constant 15 : index
    %c0_96 = arith.constant 0 : index
    %274 = vector.load %arg9[%c15, %c0_96] : memref<24x128xf32, #tpu.memory_space<vmem>>, vector<1x32xf32>
    %275 = vector.broadcast %274 : vector<1x32xf32> to vector<16x32xf32>
    %276 = arith.addf %273, %275 : vector<16x32xf32>
    %277 = arith.addf %276, %249 : vector<16x32xf32>
    %c16 = arith.constant 16 : index
    %c0_97 = arith.constant 0 : index
    %278 = vector.load %arg9[%c16, %c0_97] : memref<24x128xf32, #tpu.memory_space<vmem>>, vector<1x32xf32>
    %c17 = arith.constant 17 : index
    %c0_98 = arith.constant 0 : index
    %279 = vector.load %arg9[%c17, %c0_98] : memref<24x128xf32, #tpu.memory_space<vmem>>, vector<1x32xf32>
    %cst_99 = arith.constant dense<0.000000e+00> : vector<16xf32>
    %280 = vector.multi_reduction <add>, %277, %cst_99 [1] : vector<16x32xf32> to vector<16xf32>
    %281 = vector.shape_cast %280 : vector<16xf32> to vector<16x1xf32>
    %cst_100 = arith.constant 3.200000e+01 : f32
    %282 = vector.broadcast %cst_100 : f32 to vector<16x1xf32>
    %283 = arith.divf %281, %282 : vector<16x1xf32>
    %284 = vector.broadcast %283 : vector<16x1xf32> to vector<16x32xf32>
    %285 = arith.subf %277, %284 : vector<16x32xf32>
    %286 = arith.mulf %285, %285 : vector<16x32xf32>
    %cst_101 = arith.constant dense<0.000000e+00> : vector<16xf32>
    %287 = vector.multi_reduction <add>, %286, %cst_101 [1] : vector<16x32xf32> to vector<16xf32>
    %288 = vector.shape_cast %287 : vector<16xf32> to vector<16x1xf32>
    %cst_102 = arith.constant 3.200000e+01 : f32
    %289 = vector.broadcast %cst_102 : f32 to vector<16x1xf32>
    %290 = arith.divf %288, %289 : vector<16x1xf32>
    %291 = vector.broadcast %283 : vector<16x1xf32> to vector<16x32xf32>
    %292 = arith.subf %277, %291 : vector<16x32xf32>
    %cst_103 = arith.constant 9.99999996E-13 : f32
    %293 = vector.broadcast %cst_103 : f32 to vector<16x1xf32>
    %294 = arith.addf %290, %293 : vector<16x1xf32>
    %295 = math.rsqrt %294 : vector<16x1xf32>
    %296 = vector.broadcast %295 : vector<16x1xf32> to vector<16x32xf32>
    %297 = arith.mulf %292, %296 : vector<16x32xf32>
    %298 = vector.broadcast %278 : vector<1x32xf32> to vector<16x32xf32>
    %299 = arith.mulf %297, %298 : vector<16x32xf32>
    %300 = vector.broadcast %279 : vector<1x32xf32> to vector<16x32xf32>
    %301 = arith.addf %299, %300 : vector<16x32xf32>
    %302 = vector.shape_cast %301 : vector<16x32xf32> to vector<2x8x32xf32>
    %303 = vector.extract_strided_slice %302 {offsets = [0, 0, 0], sizes = [2, 1, 32], strides = [1, 1, 1]} : vector<2x8x32xf32> to vector<2x1x32xf32>
    %304 = vector.shape_cast %303 : vector<2x1x32xf32> to vector<2x32xf32>
    %c0_104 = arith.constant 0 : index
    %c0_105 = arith.constant 0 : index
    %305 = vector.load %arg10[%c0_104, %c0_105] : memref<32x32xf32, #tpu.memory_space<vmem>>, vector<32x32xf32>
    %cst_106 = arith.constant dense<0.000000e+00> : vector<2x32xf32>
    %306 = tpu.matmul %304, %305, %cst_106 {dimension_numbers = #tpu.dot_dimension_numbers<[1], [0], [0], [1], [0, 0, 1, 1], [], []>} : vector<2x32xf32>, vector<32x32xf32>, vector<2x32xf32> -> vector<2x32xf32>
    %c18 = arith.constant 18 : index
    %c0_107 = arith.constant 0 : index
    %307 = vector.load %arg9[%c18, %c0_107] : memref<24x128xf32, #tpu.memory_space<vmem>>, vector<1x32xf32>
    %308 = vector.broadcast %307 : vector<1x32xf32> to vector<2x32xf32>
    %309 = arith.addf %306, %308 : vector<2x32xf32>
    %310 = math.tanh %309 : vector<2x32xf32>
    %c0_108 = arith.constant 0 : index
    %c0_109 = arith.constant 0 : index
    %311 = vector.load %arg4[%c0_108, %c0_109] : memref<2x1xf32, #tpu.memory_space<vmem>>, vector<2x1xf32>
    %c19 = arith.constant 19 : index
    %c0_110 = arith.constant 0 : index
    %312 = vector.load %arg9[%c19, %c0_110] : memref<24x128xf32, #tpu.memory_space<vmem>>, vector<1x32xf32>
    %313 = vector.broadcast %311 : vector<2x1xf32> to vector<2x32xf32>
    %314 = vector.broadcast %312 : vector<1x32xf32> to vector<2x32xf32>
    %315 = arith.mulf %313, %314 : vector<2x32xf32>
    %c20 = arith.constant 20 : index
    %c0_111 = arith.constant 0 : index
    %316 = vector.load %arg9[%c20, %c0_111] : memref<24x128xf32, #tpu.memory_space<vmem>>, vector<1x32xf32>
    %317 = vector.broadcast %316 : vector<1x32xf32> to vector<2x32xf32>
    %318 = arith.addf %315, %317 : vector<2x32xf32>
    %c0_112 = arith.constant 0 : index
    %c0_113 = arith.constant 0 : index
    %319 = vector.load %arg11[%c0_112, %c0_113] : memref<80x3xf32, #tpu.memory_space<vmem>>, vector<32x3xf32>
    %cst_114 = arith.constant dense<0.000000e+00> : vector<2x3xf32>
    %320 = tpu.matmul %310, %319, %cst_114 {dimension_numbers = #tpu.dot_dimension_numbers<[1], [0], [0], [1], [0, 0, 1, 1], [], []>} : vector<2x32xf32>, vector<32x3xf32>, vector<2x3xf32> -> vector<2x3xf32>
    %c0_115 = arith.constant 0 : index
    %c0_116 = arith.constant 0 : index
    %321 = vector.load %arg3[%c0_115, %c0_116] : memref<2x16xf32, #tpu.memory_space<vmem>>, vector<2x16xf32>
    %c32 = arith.constant 32 : index
    %c0_117 = arith.constant 0 : index
    %322 = vector.load %arg11[%c32, %c0_117] : memref<80x3xf32, #tpu.memory_space<vmem>>, vector<16x3xf32>
    %cst_118 = arith.constant dense<0.000000e+00> : vector<2x3xf32>
    %323 = tpu.matmul %321, %322, %cst_118 {dimension_numbers = #tpu.dot_dimension_numbers<[1], [0], [0], [1], [0, 0, 1, 1], [], []>} : vector<2x16xf32>, vector<16x3xf32>, vector<2x3xf32> -> vector<2x3xf32>
    %324 = arith.addf %320, %323 : vector<2x3xf32>
    %c48 = arith.constant 48 : index
    %c0_119 = arith.constant 0 : index
    %325 = vector.load %arg11[%c48, %c0_119] : memref<80x3xf32, #tpu.memory_space<vmem>>, vector<32x3xf32>
    %cst_120 = arith.constant dense<0.000000e+00> : vector<2x3xf32>
    %326 = tpu.matmul %318, %325, %cst_120 {dimension_numbers = #tpu.dot_dimension_numbers<[1], [0], [0], [1], [0, 0, 1, 1], [], []>} : vector<2x32xf32>, vector<32x3xf32>, vector<2x3xf32> -> vector<2x3xf32>
    %327 = arith.addf %324, %326 : vector<2x3xf32>
    %c21 = arith.constant 21 : index
    %c0_121 = arith.constant 0 : index
    %328 = vector.load %arg9[%c21, %c0_121] : memref<24x128xf32, #tpu.memory_space<vmem>>, vector<1x3xf32>
    %329 = vector.broadcast %328 : vector<1x3xf32> to vector<2x3xf32>
    %330 = arith.addf %327, %329 : vector<2x3xf32>
    %c0_122 = arith.constant 0 : index
    %c0_123 = arith.constant 0 : index
    %331 = vector.load %arg12[%c0_122, %c0_123] : memref<2x3xf32, #tpu.memory_space<vmem>>, vector<2x3xf32>
    tpu.vector_store %arg12[%c0_122, %c0_123], %330 {strides = array<i32>} : memref<2x3xf32, #tpu.memory_space<vmem>>, vector<2x3xf32>,
    return
  }
  func.func @transform_0(%arg0: i32) -> (i32, i32) {
    %c0_i32 = arith.constant 0 : i32
    %c0_i32_0 = arith.constant 0 : i32
    %c0_i32_1 = arith.constant 0 : i32
    return %c0_i32, %c0_i32_0 : i32, i32
  }
  func.func @transform_1(%arg0: i32) -> (i32, i32) {
    %c0_i32 = arith.constant 0 : i32
    %c0_i32_0 = arith.constant 0 : i32
    %c0_i32_1 = arith.constant 0 : i32
    return %c0_i32, %c0_i32_0 : i32, i32
  }
  func.func @transform_2(%arg0: i32) -> (i32, i32) {
    %c0_i32 = arith.constant 0 : i32
    %c0_i32_0 = arith.constant 0 : i32
    %c0_i32_1 = arith.constant 0 : i32
    return %c0_i32, %c0_i32_0 : i32, i32
  }
  func.func @transform_3(%arg0: i32) -> (i32, i32) {
    %c0_i32 = arith.constant 0 : i32
    %c0_i32_0 = arith.constant 0 : i32
    %c0_i32_1 = arith.constant 0 : i32
    return %c0_i32, %c0_i32_0 : i32, i32
  }
  func.func @transform_4(%arg0: i32) -> (i32, i32, i32) {
    %c0_i32 = arith.constant 0 : i32
    %c0_i32_0 = arith.constant 0 : i32
    %c0_i32_1 = arith.constant 0 : i32
    %c0_i32_2 = arith.constant 0 : i32
    return %c0_i32, %c0_i32_0, %c0_i32_1 : i32, i32, i32
  }
  func.func @transform_5(%arg0: i32) -> (i32, i32, i32) {
    %c0_i32 = arith.constant 0 : i32
    %c0_i32_0 = arith.constant 0 : i32
    %c0_i32_1 = arith.constant 0 : i32
    %c0_i32_2 = arith.constant 0 : i32
    return %c0_i32, %c0_i32_0, %c0_i32_1 : i32, i32, i32
  }
  func.func @transform_6(%arg0: i32) -> (i32, i32, i32) {
    %c0_i32 = arith.constant 0 : i32
    %c0_i32_0 = arith.constant 0 : i32
    %c0_i32_1 = arith.constant 0 : i32
    %c0_i32_2 = arith.constant 0 : i32
    return %c0_i32, %c0_i32_0, %c0_i32_1 : i32, i32, i32
  }
  func.func @transform_7(%arg0: i32) -> (i32, i32, i32) {
    %c0_i32 = arith.constant 0 : i32
    %c0_i32_0 = arith.constant 0 : i32
    %c0_i32_1 = arith.constant 0 : i32
    %c0_i32_2 = arith.constant 0 : i32
    return %c0_i32, %c0_i32_0, %c0_i32_1 : i32, i32, i32
  }
  func.func @transform_8(%arg0: i32) -> (i32, i32) {
    %c0_i32 = arith.constant 0 : i32
    %c0_i32_0 = arith.constant 0 : i32
    %c0_i32_1 = arith.constant 0 : i32
    return %c0_i32, %c0_i32_0 : i32, i32
  }
  func.func @transform_9(%arg0: i32) -> (i32, i32) {
    %c0_i32 = arith.constant 0 : i32
    %c0_i32_0 = arith.constant 0 : i32
    %c0_i32_1 = arith.constant 0 : i32
    return %c0_i32, %c0_i32_0 : i32, i32
  }
  func.func @transform_10(%arg0: i32) -> (i32, i32) {
    %c0_i32 = arith.constant 0 : i32
    %c0_i32_0 = arith.constant 0 : i32
    %c0_i32_1 = arith.constant 0 : i32
    return %c0_i32, %c0_i32_0 : i32, i32
  }
  func.func @transform_11(%arg0: i32) -> (i32, i32) {
    %c0_i32 = arith.constant 0 : i32
    %c0_i32_0 = arith.constant 0 : i32
    %c0_i32_1 = arith.constant 0 : i32
    return %c0_i32, %c0_i32_0 : i32, i32
  }
}

</mosaic_0001>

<llo_original>
// kernel: aspect_bert_classifier_forward.1
$region0: #{aspect_bert_classifier_forward.1}
  #allocation0 [shape = 'u32[]', space=smem, size = 0x4, offset = 0x4, fixed_abs, tag = 'smem constant byte address 0x4 - core index']
  #allocation1 [shape = 'u32[144,128]{1,0:T(1,128)}', space=vmem, size = 0x12000, scoped, tag = 'internal scratch']
  %s0 = inlined_call_operand.vmem [shape: f32[16,32], index: 0, kind: input, shape index: {}]
  %s1 = inlined_call_operand.vmem [shape: f32[2,8], index: 1, kind: input, shape index: {}]
  %s2 = inlined_call_operand.vmem [shape: f32[2,16], index: 2, kind: input, shape index: {}]
  %s3 = inlined_call_operand.vmem [shape: f32[2,1], index: 3, kind: input, shape index: {}]
  %s4 = inlined_call_operand.vmem [shape: bf16[2,32,96], index: 4, kind: input, shape index: {}]
  %s5 = inlined_call_operand.vmem [shape: bf16[2,32,32], index: 5, kind: input, shape index: {}]
  %s6 = inlined_call_operand.vmem [shape: bf16[2,32,64], index: 6, kind: input, shape index: {}]
  %s7 = inlined_call_operand.vmem [shape: bf16[2,64,32], index: 7, kind: input, shape index: {}]
  %s8 = inlined_call_operand.vmem [shape: f32[24,128], index: 8, kind: input, shape index: {}]
  %s9 = inlined_call_operand.vmem [shape: f32[32,32], index: 9, kind: input, shape index: {}]
  %s10 = inlined_call_operand.vmem [shape: f32[80,3], index: 10, kind: input, shape index: {}]
  %s11 = inlined_call_operand.hbm [shape: f32[2,3], index: 11, kind: output, shape index: {}]
  %s12 = sld [smem:[#allocation0]]
  $region54: #{aspect_bert_classifier_forward.1} parent=0
    _
  %s14 = ssub.s32 1, %s12
  %s15 = scalar_select 0, %s14, %s12
  $region1: #{aspect_bert_classifier_forward.1} parent=0
    #allocation2 [shape = 'u8[1024]{0}', space=vmem, size = 0x400, scoped, tag = 'output window, operand 0, single buffered']
    #allocation3 [shape = 's32[1]{0}', space=sflag, size = 0x4, scoped, tag = 'scoped memory for aspect_bert_classifier_forward.1']
    %16 = vsyncpa [#allocation3], 0
    // Predicated region
    $region2: #{aspect_bert_classifier_forward.1} parent=1 // pred_check
      _
    $region3: #{aspect_bert_classifier_forward.1} parent=1 // pred_check_branch
      %18 = sbr.rel (0) target = $region5
    $region4: #{aspect_bert_classifier_forward.1} parent=1 // pred_region
      _
    $region5: #{aspect_bert_classifier_forward.1} parent=1 // pred_fallthru
      _
    // Predicated region
    $region6: #{aspect_bert_classifier_forward.1} parent=1 // pred_check
      _
    $region7: #{aspect_bert_classifier_forward.1} parent=1 // pred_check_branch
      %20 = sbr.rel (0) target = $region9
    $region8: #{aspect_bert_classifier_forward.1} parent=1 // pred_region
      _
    $region9: #{aspect_bert_classifier_forward.1} parent=1 // pred_fallthru
      _
    // Predicated region
    $region10: #{aspect_bert_classifier_forward.1} parent=1 // pred_check
      _
    $region11: #{aspect_bert_classifier_forward.1} parent=1 // pred_check_branch
      %22 = sbr.rel (0) target = $region13
    $region12: #{aspect_bert_classifier_forward.1} parent=1 // pred_region
      _
    $region13: #{aspect_bert_classifier_forward.1} parent=1 // pred_fallthru
      _
    // Predicated region
    $region14: #{aspect_bert_classifier_forward.1} parent=1 // pred_check
      _
    $region15: #{aspect_bert_classifier_forward.1} parent=1 // pred_check_branch
      %24 = sbr.rel (0) target = $region17
    $region16: #{aspect_bert_classifier_forward.1} parent=1 // pred_region
      _
    $region17: #{aspect_bert_classifier_forward.1} parent=1 // pred_fallthru
      _
    // Predicated region
    $region18: #{aspect_bert_classifier_forward.1} parent=1 // pred_check
      _
    $region19: #{aspect_bert_classifier_forward.1} parent=1 // pred_check_branch
      %26 = sbr.rel (0) target = $region21
    $region20: #{aspect_bert_classifier_forward.1} parent=1 // pred_region
      _
    $region21: #{aspect_bert_classifier_forward.1} parent=1 // pred_fallthru
      _
    // Predicated region
    $region22: #{aspect_bert_classifier_forward.1} parent=1 // pred_check
      _
    $region23: #{aspect_bert_classifier_forward.1} parent=1 // pred_check_branch
      %28 = sbr.rel (0) target = $region25
    $region24: #{aspect_bert_classifier_forward.1} parent=1 // pred_region
      _
    $region25: #{aspect_bert_classifier_forward.1} parent=1 // pred_fallthru
      _
    // Predicated region
    $region26: #{aspect_bert_classifier_forward.1} parent=1 // pred_check
      _
    $region27: #{aspect_bert_classifier_forward.1} parent=1 // pred_check_branch
      %30 = sbr.rel (0) target = $region29
    $region28: #{aspect_bert_classifier_forward.1} parent=1 // pred_region
      _
    $region29: #{aspect_bert_classifier_forward.1} parent=1 // pred_fallthru
      _
    // Predicated region
    $region30: #{aspect_bert_classifier_forward.1} parent=1 // pred_check
      _
    $region31: #{aspect_bert_classifier_forward.1} parent=1 // pred_check_branch
      %32 = sbr.rel (0) target = $region33
    $region32: #{aspect_bert_classifier_forward.1} parent=1 // pred_region
      _
    $region33: #{aspect_bert_classifier_forward.1} parent=1 // pred_fallthru
      _
    // Predicated region
    $region34: #{aspect_bert_classifier_forward.1} parent=1 // pred_check
      _
    $region35: #{aspect_bert_classifier_forward.1} parent=1 // pred_check_branch
      %34 = sbr.rel (0) target = $region37
    $region36: #{aspect_bert_classifier_forward.1} parent=1 // pred_region
      _
    $region37: #{aspect_bert_classifier_forward.1} parent=1 // pred_fallthru
      _
    // Predicated region
    $region38: #{aspect_bert_classifier_forward.1} parent=1 // pred_check
      _
    $region39: #{aspect_bert_classifier_forward.1} parent=1 // pred_check_branch
      %36 = sbr.rel (0) target = $region41
    $region40: #{aspect_bert_classifier_forward.1} parent=1 // pred_region
      _
    $region41: #{aspect_bert_classifier_forward.1} parent=1 // pred_fallthru
      _
    // Predicated region
    $region42: #{aspect_bert_classifier_forward.1} parent=1 // pred_check
      _
    $region43: #{aspect_bert_classifier_forward.1} parent=1 // pred_check_branch
      %38 = sbr.rel (0) target = $region45
    $region44: #{aspect_bert_classifier_forward.1} parent=1 // pred_region
      _
    $region45: #{aspect_bert_classifier_forward.1} parent=1 // pred_fallthru
      _
    %v40 = vld [vmem:[%s0] sm:$0xff]
    %v41 = vld [vmem:[%s0 + $0x8] sm:$0xff]
    %v42 = vld [vmem:[%s8] sm:$0x1]
    %v43 = vld [vmem:[%s8 + $0x1] sm:$0x1]
    %vm44 = vcmask 261120
    %v45 = vsel %vm44, %v40, 0.0
    %46 = vadd.xlane.f32.xlu0 %v45
    %v47 = vpop.xlane.xlu0 %46
    %v48 = vsel %vm44, %v41, 0.0
    %49 = vadd.xlane.f32.xlu0 %v48
    %v50 = vpop.xlane.xlu0 %49
    %v51 = vrcp.pop 32.0
    %v52 = vmul.f32 %v47, %v51
    %v53 = vmul.f32 %v50, %v51
    %v54 = vsub.f32 %v40, %v52
    %v55 = vsub.f32 %v41, %v53
    %v56 = vmul.f32 %v54, %v54
    %v57 = vmul.f32 %v55, %v55
    %v58 = vsel %vm44, %v56, 0.0
    %59 = vadd.xlane.f32.xlu0 %v58
    %v60 = vpop.xlane.xlu0 %59
    %v61 = vsel %vm44, %v57, 0.0
    %62 = vadd.xlane.f32.xlu0 %v61
    %v63 = vpop.xlane.xlu0 %62
    %v64 = vmul.f32 %v60, %v51
    %v65 = vmul.f32 %v63, %v51
    %v66 = vadd.f32 %v64, 1e-12
    %v67 = vadd.f32 %v65, 1e-12
    %v68 = vrsqrt.pop %v66
    %v69 = vrsqrt.pop %v67
    %v70 = vmul.f32 %v54, %v68
    %v71 = vmul.f32 %v55, %v69
    %v72 = vlaneseq
    %v73 = vshrl.u32 %v72, 7
    %v74 = vsub.s32 0, %v73
    %v75 = vrot.slane %v42, %v74
    %v76 = vmul.f32 %v70, %v75
    %v77 = vmul.f32 %v71, %v75
    %v78 = vlaneseq
    %v79 = vshrl.u32 %v78, 7
    %v80 = vsub.s32 0, %v79
    %v81 = vrot.slane %v43, %v80
    %v82 = vadd.f32 %v76, %v81
    %v83 = vadd.f32 %v77, %v81
    %v84 = vld [vmem:[%s1] sm:$0x3]
    %v85 = vsub.f32 1.0, %v84
    %v86 = vmul.f32 %v85, -10000.0
    %v87 = vld [vmem:[%s4] sm:$0xf]
    %v88 = vld [vmem:[%s4 + $0x4] sm:$0xf]
    %v89 = vld [vmem:[%s4 + $0x8] sm:$0xf]
    %v90 = vld [vmem:[%s4 + $0xc] sm:$0xf]
    %v91 = vpack.c.bf16 %v83, %v82
    %v92 = vld [vmem:[%s8 + $0x2] sm:$0x1]
    %v93 = vlaneseq
    %v94 = vshrl.u32 %v93, 7
    %v95 = vsub.s32 0, %v94
    %v96 = vrot.slane %v92, %v95
    %v101 = vunpack.c.l.b16 %v87
    %v102 = vunpack.c.l.b16 %v88
    %v103 = vunpack.c.l.b16 %v89
    %v104 = vunpack.c.l.b16 %v90
    %v105 = vpack.c.b16 %v102, %v101
    %v106 = vpack.c.b16 %v104, %v103
    %v110 = vsel %vm44, %v91, 0
    %112 = vmatprep.subr.bf16.mxu0 0
    %113 = vmatpush1.bf16.msra.mxu0 %v105
    %114 = vmatprep.subr.bf16.mxu0 0
    %115 = vmatpush1.bf16.msra.mxu0 %v106
    %116 = vmatprep.subr.bf16.mxu0 0
    %117 = vmatpush1.bf16.msra.mxu0 0
    %118 = vmatprep.subr.bf16.mxu0 0
    %119 = vmatpush1.bf16.msra.mxu0 0
    %120 = vmatprep.subr.bf16.mxu0 0
    %121 = vmatpush1.bf16.msra.mxu0 0
    %122 = vmatprep.subr.bf16.mxu0 0
    %123 = vmatpush1.bf16.msra.mxu0 0
    %124 = vmatprep.subr.bf16.mxu0 0
    %125 = vmatpush1.bf16.msra.mxu0 0
    %126 = vmatprep.subr.bf16.mxu0 0
    %127 = vmatpush1.bf16.msra.mxu0 0
    %128 = vmatprep.subr.bf16.mxu0 0
    %129 = vmatpush1.bf16.msra.mxu0 0
    %130 = vmatprep.subr.bf16.mxu0 0
    %131 = vmatpush1.bf16.msra.mxu0 0
    %132 = vmatprep.subr.bf16.mxu0 0
    %133 = vmatpush1.bf16.msra.mxu0 0
    %134 = vmatprep.subr.bf16.mxu0 0
    %135 = vmatpush1.bf16.msra.mxu0 0
    %136 = vmatprep.subr.bf16.mxu0 0
    %137 = vmatpush1.bf16.msra.mxu0 0
    %138 = vmatprep.subr.bf16.mxu0 0
    %139 = vmatpush1.bf16.msra.mxu0 0
    %140 = vmatprep.subr.bf16.mxu0 0
    %141 = vmatpush1.bf16.msra.mxu0 0
    %142 = vmatprep.subr.bf16.mxu0 0
    %143 = vmatpush1.bf16.msra.mxu0 0
    %144 = vmatprep.mubr.bf16.mxu0 0
    %145 = vmatmul.mubr.bf16.gmra.mrb[0].mxu0 %v110
    %v146 = vpop.f32.mrb[0].mxu0
    %v147 = vadd.f32 %v96, %v146
    %v148 = vpop.f32.mrb[0].mxu0
    %v149 = vpop.f32.mrb[0].mxu0
    %v150 = vadd.f32 %v96, %v149
    %v151 = vpop.f32.mrb[0].mxu0
    %152 = vdwg.mxu0
    %v155 = vunpack.c.l.s4 1966171168
    %v156 = vunpack.c.0.s8 %v155
    %v157 = vlaneseq
    %v158 = vshrl.u32 %v157, 7
    %v159 = vsub.s32 %v156, %v158
    %v160 = vrot.slane %v86, %v159
    %v161 = vcombine.high %v160, %v160
    %v163 = vunpack.c.l.s4 1966171168
    %v164 = vunpack.c.0.s8 %v163
    %v165 = vlaneseq
    %v166 = vshrl.u32 %v165, 7
    %v167 = vsub.s32 %v164, %v166
    %v168 = vrot.slane %v160, %v167
    %v170 = vunpack.c.l.s4 1966171168
    %v171 = vunpack.c.0.s8 %v170
    %v172 = vlaneseq
    %v173 = vshrl.u32 %v172, 7
    %v174 = vsub.s32 %v171, %v173
    %v175 = vrot.slane %v161, %v174
    %v176 = vlaneseq
    %v177 = vshrl.u32 %v176, 7
    %v178 = vsub.s32 0, %v177
    %v179 = vrot.slane %v168, %v178
    %v180 = vlaneseq
    %v181 = vshrl.u32 %v180, 7
    %v182 = vsub.s32 0, %v181
    %v183 = vrot.slane %v175, %v182
    %187 = vrot.lane.b32.xlu0 %v147, 96
    %v188 = vpop.permute.xlu0 %187
    %vm189 = vcmask 130048
    %v190 = vsel %vm189, %v147, 0
    %v192 = vsel %vm189, %v188, 0
    %194 = vmatprep.subr.mxu0 0.0
    %195 = vmatpush1.xpose.msra.mxu0 %v192
    %196 = vmatprep.subr.mxu0 0.0
    %197 = vmatpush1.xpose.msra.mxu0 0.0
    %198 = vmatprep.subr.mxu0 0.0
    %199 = vmatpush1.xpose.msra.mxu0 0.0
    %200 = vmatprep.subr.mxu0 0.0
    %201 = vmatpush1.xpose.msra.mxu0 0.0
    %202 = vmatprep.subr.mxu0 0.0
    %203 = vmatpush1.xpose.msra.mxu0 0.0
    %204 = vmatprep.subr.mxu0 0.0
    %205 = vmatpush1.xpose.msra.mxu0 0.0
    %206 = vmatprep.subr.mxu0 0.0
    %207 = vmatpush1.xpose.msra.mxu0 0.0
    %208 = vmatprep.subr.mxu0 0.0
    %209 = vmatpush1.xpose.msra.mxu0 0.0
    %210 = vmatprep.subr.mxu0 0.0
    %211 = vmatpush1.xpose.msra.mxu0 0.0
    %212 = vmatprep.subr.mxu0 0.0
    %213 = vmatpush1.xpose.msra.mxu0 0.0
    %214 = vmatprep.subr.mxu0 0.0
    %215 = vmatpush1.xpose.msra.mxu0 0.0
    %216 = vmatprep.subr.mxu0 0.0
    %217 = vmatpush1.xpose.msra.mxu0 0.0
    %218 = vmatprep.subr.mxu0 0.0
    %219 = vmatpush1.xpose.msra.mxu0 0.0
    %220 = vmatprep.subr.mxu0 0.0
    %221 = vmatpush1.xpose.msra.mxu0 0.0
    %222 = vmatprep.subr.mxu0 0.0
    %223 = vmatpush1.xpose.msra.mxu0 0.0
    %224 = vmatprep.subr.mxu0 0.0
    %225 = vmatpush1.xpose.msra.mxu0 0.0
    %226 = vmatprep.subr.mxu0 0.0
    %227 = vmatpush1.xpose.msra.mxu0 0.0
    %228 = vmatprep.subr.mxu0 0.0
    %229 = vmatpush1.xpose.msra.mxu0 0.0
    %230 = vmatprep.subr.mxu0 0.0
    %231 = vmatpush1.xpose.msra.mxu0 0.0
    %232 = vmatprep.subr.mxu0 0.0
    %233 = vmatpush1.xpose.msra.mxu0 0.0
    %234 = vmatprep.subr.mxu0 0.0
    %235 = vmatpush1.xpose.msra.mxu0 0.0
    %236 = vmatprep.subr.mxu0 0.0
    %237 = vmatpush1.xpose.msra.mxu0 0.0
    %238 = vmatprep.subr.mxu0 0.0
    %239 = vmatpush1.xpose.msra.mxu0 0.0
    %240 = vmatprep.subr.mxu0 0.0
    %241 = vmatpush1.xpose.msra.mxu0 0.0
    %242 = vmatprep.subr.mxu0 0.0
    %243 = vmatpush1.xpose.msra.mxu0 0.0
    %244 = vmatprep.subr.mxu0 0.0
    %245 = vmatpush1.xpose.msra.mxu0 0.0
    %246 = vmatprep.subr.mxu0 0.0
    %247 = vmatpush1.xpose.msra.mxu0 0.0
    %248 = vmatprep.subr.mxu0 0.0
    %249 = vmatpush1.xpose.msra.mxu0 0.0
    %250 = vmatprep.subr.mxu0 0.0
    %251 = vmatpush1.xpose.msra.mxu0 0.0
    %252 = vmatprep.subr.mxu0 0.0
    %253 = vmatpush1.xpose.msra.mxu0 0.0
    %254 = vmatprep.subr.mxu0 0.0
    %255 = vmatpush1.xpose.msra.mxu0 0.0
    %256 = vmatprep.subr.mxu0 0.0
    %257 = vmatpush1.xpose.msra.mxu0 0.0
    %258 = vmatprep.mubr.f32.mxu0 0.0
    %259 = vmatmul.mubr.f32.gmra.mrb[0].mxu0 %v190
    %v260 = vpop.f32.mrb[0].mxu0
    %v261 = vadd.f32 %v179, %v260
    %v262 = vpop.f32.mrb[0].mxu0
    %263 = vdwg.mxu0
    %265 = vrot.lane.b32.xlu0 %v150, 96
    %v266 = vpop.permute.xlu0 %265
    %v267 = vsel %vm189, %v150, 0
    %v269 = vsel %vm189, %v266, 0
    %271 = vmatprep.subr.mxu0 0.0
    %272 = vmatpush1.xpose.msra.mxu0 %v269
    %273 = vmatprep.subr.mxu0 0.0
    %274 = vmatpush1.xpose.msra.mxu0 0.0
    %275 = vmatprep.subr.mxu0 0.0
    %276 = vmatpush1.xpose.msra.mxu0 0.0
    %277 = vmatprep.subr.mxu0 0.0
    %278 = vmatpush1.xpose.msra.mxu0 0.0
    %279 = vmatprep.subr.mxu0 0.0
    %280 = vmatpush1.xpose.msra.mxu0 0.0
    %281 = vmatprep.subr.mxu0 0.0
    %282 = vmatpush1.xpose.msra.mxu0 0.0
    %283 = vmatprep.subr.mxu0 0.0
    %284 = vmatpush1.xpose.msra.mxu0 0.0
    %285 = vmatprep.subr.mxu0 0.0
    %286 = vmatpush1.xpose.msra.mxu0 0.0
    %287 = vmatprep.subr.mxu0 0.0
    %288 = vmatpush1.xpose.msra.mxu0 0.0
    %289 = vmatprep.subr.mxu0 0.0
    %290 = vmatpush1.xpose.msra.mxu0 0.0
    %291 = vmatprep.subr.mxu0 0.0
    %292 = vmatpush1.xpose.msra.mxu0 0.0
    %293 = vmatprep.subr.mxu0 0.0
    %294 = vmatpush1.xpose.msra.mxu0 0.0
    %295 = vmatprep.subr.mxu0 0.0
    %296 = vmatpush1.xpose.msra.mxu0 0.0
    %297 = vmatprep.subr.mxu0 0.0
    %298 = vmatpush1.xpose.msra.mxu0 0.0
    %299 = vmatprep.subr.mxu0 0.0
    %300 = vmatpush1.xpose.msra.mxu0 0.0
    %301 = vmatprep.subr.mxu0 0.0
    %302 = vmatpush1.xpose.msra.mxu0 0.0
    %303 = vmatprep.subr.mxu0 0.0
    %304 = vmatpush1.xpose.msra.mxu0 0.0
    %305 = vmatprep.subr.mxu0 0.0
    %306 = vmatpush1.xpose.msra.mxu0 0.0
    %307 = vmatprep.subr.mxu0 0.0
    %308 = vmatpush1.xpose.msra.mxu0 0.0
    %309 = vmatprep.subr.mxu0 0.0
    %310 = vmatpush1.xpose.msra.mxu0 0.0
    %311 = vmatprep.subr.mxu0 0.0
    %312 = vmatpush1.xpose.msra.mxu0 0.0
    %313 = vmatprep.subr.mxu0 0.0
    %314 = vmatpush1.xpose.msra.mxu0 0.0
    %315 = vmatprep.subr.mxu0 0.0
    %316 = vmatpush1.xpose.msra.mxu0 0.0
    %317 = vmatprep.subr.mxu0 0.0
    %318 = vmatpush1.xpose.msra.mxu0 0.0
    %319 = vmatprep.subr.mxu0 0.0
    %320 = vmatpush1.xpose.msra.mxu0 0.0
    %321 = vmatprep.subr.mxu0 0.0
    %322 = vmatpush1.xpose.msra.mxu0 0.0
    %323 = vmatprep.subr.mxu0 0.0
    %324 = vmatpush1.xpose.msra.mxu0 0.0
    %325 = vmatprep.subr.mxu0 0.0
    %326 = vmatpush1.xpose.msra.mxu0 0.0
    %327 = vmatprep.subr.mxu0 0.0
    %328 = vmatpush1.xpose.msra.mxu0 0.0
    %329 = vmatprep.subr.mxu0 0.0
    %330 = vmatpush1.xpose.msra.mxu0 0.0
    %331 = vmatprep.subr.mxu0 0.0
    %332 = vmatpush1.xpose.msra.mxu0 0.0
    %333 = vmatprep.subr.mxu0 0.0
    %334 = vmatpush1.xpose.msra.mxu0 0.0
    %335 = vmatprep.mubr.f32.mxu0 0.0
    %336 = vmatmul.mubr.f32.gmra.mrb[0].mxu0 %v267
    %v337 = vpop.f32.mrb[0].mxu0
    %v338 = vadd.f32 %v183, %v337
    %v339 = vpop.f32.mrb[0].mxu0
    %340 = vdwg.mxu0
    %vm341 = vcmask 64512
    %v342 = vsel %vm341, %v261, -inf
    %343 = vmax.xlane.f32.xlu0 %v342
    %v344 = vpop.xlane.xlu0 %343
    %v345 = vsel %vm341, %v338, -inf
    %346 = vmax.xlane.f32.xlu0 %v345
    %v347 = vpop.xlane.xlu0 %346
    %v348 = vsub.f32 %v261, %v344
    %v349 = vsub.f32 %v338, %v347
    %v350 = vmul.f32 %v348, 1.442695
    %v351 = vpow.pop %v350
    %v352 = vmul.f32 %v349, 1.442695
    %v353 = vpow.pop %v352
    %v354 = vsel %vm341, %v351, 0.0
    %355 = vadd.xlane.f32.xlu0 %v354
    %v356 = vpop.xlane.xlu0 %355
    %v357 = vsel %vm341, %v353, 0.0
    %358 = vadd.xlane.f32.xlu0 %v357
    %v359 = vpop.xlane.xlu0 %358
    %v360 = vrcp.pop %v356
    %v361 = vrcp.pop %v359
    %v362 = vmul.f32 %v351, %v360
    %v363 = vmul.f32 %v353, %v361
    %364 = vrot.lane.b32.xlu0 %v147, 64
    %v365 = vpop.permute.xlu0 %364
    %v368 = vsel %vm341, %v362, 0
    %370 = vmatprep.subr.mxu0 0.0
    %371 = vmatpush1.msra.mxu0 %v365
    %372 = vmatprep.subr.mxu0 0.0
    %373 = vmatpush1.msra.mxu0 0.0
    %374 = vmatprep.subr.mxu0 0.0
    %375 = vmatpush1.msra.mxu0 0.0
    %376 = vmatprep.subr.mxu0 0.0
    %377 = vmatpush1.msra.mxu0 0.0
    %378 = vmatprep.subr.mxu0 0.0
    %379 = vmatpush1.msra.mxu0 0.0
    %380 = vmatprep.subr.mxu0 0.0
    %381 = vmatpush1.msra.mxu0 0.0
    %382 = vmatprep.subr.mxu0 0.0
    %383 = vmatpush1.msra.mxu0 0.0
    %384 = vmatprep.subr.mxu0 0.0
    %385 = vmatpush1.msra.mxu0 0.0
    %386 = vmatprep.subr.mxu0 0.0
    %387 = vmatpush1.msra.mxu0 0.0
    %388 = vmatprep.subr.mxu0 0.0
    %389 = vmatpush1.msra.mxu0 0.0
    %390 = vmatprep.subr.mxu0 0.0
    %391 = vmatpush1.msra.mxu0 0.0
    %392 = vmatprep.subr.mxu0 0.0
    %393 = vmatpush1.msra.mxu0 0.0
    %394 = vmatprep.subr.mxu0 0.0
    %395 = vmatpush1.msra.mxu0 0.0
    %396 = vmatprep.subr.mxu0 0.0
    %397 = vmatpush1.msra.mxu0 0.0
    %398 = vmatprep.subr.mxu0 0.0
    %399 = vmatpush1.msra.mxu0 0.0
    %400 = vmatprep.subr.mxu0 0.0
    %401 = vmatpush1.msra.mxu0 0.0
    %402 = vmatprep.subr.mxu0 0.0
    %403 = vmatpush1.msra.mxu0 0.0
    %404 = vmatprep.subr.mxu0 0.0
    %405 = vmatpush1.msra.mxu0 0.0
    %406 = vmatprep.subr.mxu0 0.0
    %407 = vmatpush1.msra.mxu0 0.0
    %408 = vmatprep.subr.mxu0 0.0
    %409 = vmatpush1.msra.mxu0 0.0
    %410 = vmatprep.subr.mxu0 0.0
    %411 = vmatpush1.msra.mxu0 0.0
    %412 = vmatprep.subr.mxu0 0.0
    %413 = vmatpush1.msra.mxu0 0.0
    %414 = vmatprep.subr.mxu0 0.0
    %415 = vmatpush1.msra.mxu0 0.0
    %416 = vmatprep.subr.mxu0 0.0
    %417 = vmatpush1.msra.mxu0 0.0
    %418 = vmatprep.subr.mxu0 0.0
    %419 = vmatpush1.msra.mxu0 0.0
    %420 = vmatprep.subr.mxu0 0.0
    %421 = vmatpush1.msra.mxu0 0.0
    %422 = vmatprep.subr.mxu0 0.0
    %423 = vmatpush1.msra.mxu0 0.0
    %424 = vmatprep.subr.mxu0 0.0
    %425 = vmatpush1.msra.mxu0 0.0
    %426 = vmatprep.subr.mxu0 0.0
    %427 = vmatpush1.msra.mxu0 0.0
    %428 = vmatprep.subr.mxu0 0.0
    %429 = vmatpush1.msra.mxu0 0.0
    %430 = vmatprep.subr.mxu0 0.0
    %431 = vmatpush1.msra.mxu0 0.0
    %432 = vmatprep.subr.mxu0 0.0
    %433 = vmatpush1.msra.mxu0 0.0
    %434 = vmatprep.mubr.f32.mxu0 0.0
    %435 = vmatmul.mubr.f32.gmra.mrb[0].mxu0 %v368
    %v436 = vpop.f32.mrb[0].mxu0
    %v437 = vadd.f32 0.0, %v436
    %v438 = vpop.f32.mrb[0].mxu0
    %439 = vdwg.mxu0
    %440 = vrot.lane.b32.xlu0 %v150, 64
    %v441 = vpop.permute.xlu0 %440
    %v444 = vsel %vm341, %v363, 0
    %446 = vmatprep.subr.mxu0 0.0
    %447 = vmatpush1.msra.mxu0 %v441
    %448 = vmatprep.subr.mxu0 0.0
    %449 = vmatpush1.msra.mxu0 0.0
    %450 = vmatprep.subr.mxu0 0.0
    %451 = vmatpush1.msra.mxu0 0.0
    %452 = vmatprep.subr.mxu0 0.0
    %453 = vmatpush1.msra.mxu0 0.0
    %454 = vmatprep.subr.mxu0 0.0
    %455 = vmatpush1.msra.mxu0 0.0
    %456 = vmatprep.subr.mxu0 0.0
    %457 = vmatpush1.msra.mxu0 0.0
    %458 = vmatprep.subr.mxu0 0.0
    %459 = vmatpush1.msra.mxu0 0.0
    %460 = vmatprep.subr.mxu0 0.0
    %461 = vmatpush1.msra.mxu0 0.0
    %462 = vmatprep.subr.mxu0 0.0
    %463 = vmatpush1.msra.mxu0 0.0
    %464 = vmatprep.subr.mxu0 0.0
    %465 = vmatpush1.msra.mxu0 0.0
    %466 = vmatprep.subr.mxu0 0.0
    %467 = vmatpush1.msra.mxu0 0.0
    %468 = vmatprep.subr.mxu0 0.0
    %469 = vmatpush1.msra.mxu0 0.0
    %470 = vmatprep.subr.mxu0 0.0
    %471 = vmatpush1.msra.mxu0 0.0
    %472 = vmatprep.subr.mxu0 0.0
    %473 = vmatpush1.msra.mxu0 0.0
    %474 = vmatprep.subr.mxu0 0.0
    %475 = vmatpush1.msra.mxu0 0.0
    %476 = vmatprep.subr.mxu0 0.0
    %477 = vmatpush1.msra.mxu0 0.0
    %478 = vmatprep.subr.mxu0 0.0
    %479 = vmatpush1.msra.mxu0 0.0
    %480 = vmatprep.subr.mxu0 0.0
    %481 = vmatpush1.msra.mxu0 0.0
    %482 = vmatprep.subr.mxu0 0.0
    %483 = vmatpush1.msra.mxu0 0.0
    %484 = vmatprep.subr.mxu0 0.0
    %485 = vmatpush1.msra.mxu0 0.0
    %486 = vmatprep.subr.mxu0 0.0
    %487 = vmatpush1.msra.mxu0 0.0
    %488 = vmatprep.subr.mxu0 0.0
    %489 = vmatpush1.msra.mxu0 0.0
    %490 = vmatprep.subr.mxu0 0.0
    %491 = vmatpush1.msra.mxu0 0.0
    %492 = vmatprep.subr.mxu0 0.0
    %493 = vmatpush1.msra.mxu0 0.0
    %494 = vmatprep.subr.mxu0 0.0
    %495 = vmatpush1.msra.mxu0 0.0
    %496 = vmatprep.subr.mxu0 0.0
    %497 = vmatpush1.msra.mxu0 0.0
    %498 = vmatprep.subr.mxu0 0.0
    %499 = vmatpush1.msra.mxu0 0.0
    %500 = vmatprep.subr.mxu0 0.0
    %501 = vmatpush1.msra.mxu0 0.0
    %502 = vmatprep.subr.mxu0 0.0
    %503 = vmatpush1.msra.mxu0 0.0
    %504 = vmatprep.subr.mxu0 0.0
    %505 = vmatpush1.msra.mxu0 0.0
    %506 = vmatprep.subr.mxu0 0.0
    %507 = vmatpush1.msra.mxu0 0.0
    %508 = vmatprep.subr.mxu0 0.0
    %509 = vmatpush1.msra.mxu0 0.0
    %510 = vmatprep.mubr.f32.mxu0 0.0
    %511 = vmatmul.mubr.f32.gmra.mrb[0].mxu0 %v444
    %v512 = vpop.f32.mrb[0].mxu0
    %v513 = vadd.f32 0.0, %v512
    %v514 = vpop.f32.mrb[0].mxu0
    %515 = vdwg.mxu0
    %516 = vrot.lane.b32.xlu0 %v147, 112
    %v517 = vpop.permute.xlu0 %516
    %518 = vrot.lane.b32.xlu0 %v147, 80
    %v519 = vpop.permute.xlu0 %518
    %v520 = vsel %vm189, %v517, 0
    %v522 = vsel %vm189, %v519, 0
    %524 = vmatprep.subr.mxu0 0.0
    %525 = vmatpush1.xpose.msra.mxu0 %v522
    %526 = vmatprep.subr.mxu0 0.0
    %527 = vmatpush1.xpose.msra.mxu0 0.0
    %528 = vmatprep.subr.mxu0 0.0
    %529 = vmatpush1.xpose.msra.mxu0 0.0
    %530 = vmatprep.subr.mxu0 0.0
    %531 = vmatpush1.xpose.msra.mxu0 0.0
    %532 = vmatprep.subr.mxu0 0.0
    %533 = vmatpush1.xpose.msra.mxu0 0.0
    %534 = vmatprep.subr.mxu0 0.0
    %535 = vmatpush1.xpose.msra.mxu0 0.0
    %536 = vmatprep.subr.mxu0 0.0
    %537 = vmatpush1.xpose.msra.mxu0 0.0
    %538 = vmatprep.subr.mxu0 0.0
    %539 = vmatpush1.xpose.msra.mxu0 0.0
    %540 = vmatprep.subr.mxu0 0.0
    %541 = vmatpush1.xpose.msra.mxu0 0.0
    %542 = vmatprep.subr.mxu0 0.0
    %543 = vmatpush1.xpose.msra.mxu0 0.0
    %544 = vmatprep.subr.mxu0 0.0
    %545 = vmatpush1.xpose.msra.mxu0 0.0
    %546 = vmatprep.subr.mxu0 0.0
    %547 = vmatpush1.xpose.msra.mxu0 0.0
    %548 = vmatprep.subr.mxu0 0.0
    %549 = vmatpush1.xpose.msra.mxu0 0.0
    %550 = vmatprep.subr.mxu0 0.0
    %551 = vmatpush1.xpose.msra.mxu0 0.0
    %552 = vmatprep.subr.mxu0 0.0
    %553 = vmatpush1.xpose.msra.mxu0 0.0
    %554 = vmatprep.subr.mxu0 0.0
    %555 = vmatpush1.xpose.msra.mxu0 0.0
    %556 = vmatprep.subr.mxu0 0.0
    %557 = vmatpush1.xpose.msra.mxu0 0.0
    %558 = vmatprep.subr.mxu0 0.0
    %559 = vmatpush1.xpose.msra.mxu0 0.0
    %560 = vmatprep.subr.mxu0 0.0
    %561 = vmatpush1.xpose.msra.mxu0 0.0
    %562 = vmatprep.subr.mxu0 0.0
    %563 = vmatpush1.xpose.msra.mxu0 0.0
    %564 = vmatprep.subr.mxu0 0.0
    %565 = vmatpush1.xpose.msra.mxu0 0.0
    %566 = vmatprep.subr.mxu0 0.0
    %567 = vmatpush1.xpose.msra.mxu0 0.0
    %568 = vmatprep.subr.mxu0 0.0
    %569 = vmatpush1.xpose.msra.mxu0 0.0
    %570 = vmatprep.subr.mxu0 0.0
    %571 = vmatpush1.xpose.msra.mxu0 0.0
    %572 = vmatprep.subr.mxu0 0.0
    %573 = vmatpush1.xpose.msra.mxu0 0.0
    %574 = vmatprep.subr.mxu0 0.0
    %575 = vmatpush1.xpose.msra.mxu0 0.0
    %576 = vmatprep.subr.mxu0 0.0
    %577 = vmatpush1.xpose.msra.mxu0 0.0
    %578 = vmatprep.subr.mxu0 0.0
    %579 = vmatpush1.xpose.msra.mxu0 0.0
    %580 = vmatprep.subr.mxu0 0.0
    %581 = vmatpush1.xpose.msra.mxu0 0.0
    %582 = vmatprep.subr.mxu0 0.0
    %583 = vmatpush1.xpose.msra.mxu0 0.0
    %584 = vmatprep.subr.mxu0 0.0
    %585 = vmatpush1.xpose.msra.mxu0 0.0
    %586 = vmatprep.subr.mxu0 0.0
    %587 = vmatpush1.xpose.msra.mxu0 0.0
    %588 = vmatprep.mubr.f32.mxu0 0.0
    %589 = vmatmul.mubr.f32.gmra.mrb[0].mxu0 %v520
    %v590 = vpop.f32.mrb[0].mxu0
    %v591 = vadd.f32 %v179, %v590
    %v592 = vpop.f32.mrb[0].mxu0
    %593 = vdwg.mxu0
    %594 = vrot.lane.b32.xlu0 %v150, 112
    %v595 = vpop.permute.xlu0 %594
    %596 = vrot.lane.b32.xlu0 %v150, 80
    %v597 = vpop.permute.xlu0 %596
    %v598 = vsel %vm189, %v595, 0
    %v600 = vsel %vm189, %v597, 0
    %602 = vmatprep.subr.mxu0 0.0
    %603 = vmatpush1.xpose.msra.mxu0 %v600
    %604 = vmatprep.subr.mxu0 0.0
    %605 = vmatpush1.xpose.msra.mxu0 0.0
    %606 = vmatprep.subr.mxu0 0.0
    %607 = vmatpush1.xpose.msra.mxu0 0.0
    %608 = vmatprep.subr.mxu0 0.0
    %609 = vmatpush1.xpose.msra.mxu0 0.0
    %610 = vmatprep.subr.mxu0 0.0
    %611 = vmatpush1.xpose.msra.mxu0 0.0
    %612 = vmatprep.subr.mxu0 0.0
    %613 = vmatpush1.xpose.msra.mxu0 0.0
    %614 = vmatprep.subr.mxu0 0.0
    %615 = vmatpush1.xpose.msra.mxu0 0.0
    %616 = vmatprep.subr.mxu0 0.0
    %617 = vmatpush1.xpose.msra.mxu0 0.0
    %618 = vmatprep.subr.mxu0 0.0
    %619 = vmatpush1.xpose.msra.mxu0 0.0
    %620 = vmatprep.subr.mxu0 0.0
    %621 = vmatpush1.xpose.msra.mxu0 0.0
    %622 = vmatprep.subr.mxu0 0.0
    %623 = vmatpush1.xpose.msra.mxu0 0.0
    %624 = vmatprep.subr.mxu0 0.0
    %625 = vmatpush1.xpose.msra.mxu0 0.0
    %626 = vmatprep.subr.mxu0 0.0
    %627 = vmatpush1.xpose.msra.mxu0 0.0
    %628 = vmatprep.subr.mxu0 0.0
    %629 = vmatpush1.xpose.msra.mxu0 0.0
    %630 = vmatprep.subr.mxu0 0.0
    %631 = vmatpush1.xpose.msra.mxu0 0.0
    %632 = vmatprep.subr.mxu0 0.0
    %633 = vmatpush1.xpose.msra.mxu0 0.0
    %634 = vmatprep.subr.mxu0 0.0
    %635 = vmatpush1.xpose.msra.mxu0 0.0
    %636 = vmatprep.subr.mxu0 0.0
    %637 = vmatpush1.xpose.msra.mxu0 0.0
    %638 = vmatprep.subr.mxu0 0.0
    %639 = vmatpush1.xpose.msra.mxu0 0.0
    %640 = vmatprep.subr.mxu0 0.0
    %641 = vmatpush1.xpose.msra.mxu0 0.0
    %642 = vmatprep.subr.mxu0 0.0
    %643 = vmatpush1.xpose.msra.mxu0 0.0
    %644 = vmatprep.subr.mxu0 0.0
    %645 = vmatpush1.xpose.msra.mxu0 0.0
    %646 = vmatprep.subr.mxu0 0.0
    %647 = vmatpush1.xpose.msra.mxu0 0.0
    %648 = vmatprep.subr.mxu0 0.0
    %649 = vmatpush1.xpose.msra.mxu0 0.0
    %650 = vmatprep.subr.mxu0 0.0
    %651 = vmatpush1.xpose.msra.mxu0 0.0
    %652 = vmatprep.subr.mxu0 0.0
    %653 = vmatpush1.xpose.msra.mxu0 0.0
    %654 = vmatprep.subr.mxu0 0.0
    %655 = vmatpush1.xpose.msra.mxu0 0.0
    %656 = vmatprep.subr.mxu0 0.0
    %657 = vmatpush1.xpose.msra.mxu0 0.0
    %658 = vmatprep.subr.mxu0 0.0
    %659 = vmatpush1.xpose.msra.mxu0 0.0
    %660 = vmatprep.subr.mxu0 0.0
    %661 = vmatpush1.xpose.msra.mxu0 0.0
    %662 = vmatprep.subr.mxu0 0.0
    %663 = vmatpush1.xpose.msra.mxu0 0.0
    %664 = vmatprep.subr.mxu0 0.0
    %665 = vmatpush1.xpose.msra.mxu0 0.0
    %666 = vmatprep.mubr.f32.mxu0 0.0
    %667 = vmatmul.mubr.f32.gmra.mrb[0].mxu0 %v598
    %v668 = vpop.f32.mrb[0].mxu0
    %v669 = vadd.f32 %v183, %v668
    %v670 = vpop.f32.mrb[0].mxu0
    %671 = vdwg.mxu0
    %v672 = vsel %vm341, %v591, -inf
    %673 = vmax.xlane.f32.xlu0 %v672
    %v674 = vpop.xlane.xlu0 %673
    %v675 = vsel %vm341, %v669, -inf
    %676 = vmax.xlane.f32.xlu0 %v675
    %v677 = vpop.xlane.xlu0 %676
    %v678 = vsub.f32 %v591, %v674
    %v679 = vsub.f32 %v669, %v677
    %v680 = vmul.f32 %v678, 1.442695
    %v681 = vpow.pop %v680
    %v682 = vmul.f32 %v679, 1.442695
    %v683 = vpow.pop %v682
    %v684 = vsel %vm341, %v681, 0.0
    %685 = vadd.xlane.f32.xlu0 %v684
    %v686 = vpop.xlane.xlu0 %685
    %v687 = vsel %vm341, %v683, 0.0
    %688 = vadd.xlane.f32.xlu0 %v687
    %v689 = vpop.xlane.xlu0 %688
    %v690 = vrcp.pop %v686
    %v691 = vrcp.pop %v689
    %v692 = vmul.f32 %v681, %v690
    %v693 = vmul.f32 %v683, %v691
    %694 = vrot.lane.b32.xlu0 %v147, 48
    %v695 = vpop.permute.xlu0 %694
    %v698 = vsel %vm341, %v692, 0
    %700 = vmatprep.subr.mxu0 0.0
    %701 = vmatpush1.msra.mxu0 %v695
    %702 = vmatprep.subr.mxu0 0.0
    %703 = vmatpush1.msra.mxu0 0.0
    %704 = vmatprep.subr.mxu0 0.0
    %705 = vmatpush1.msra.mxu0 0.0
    %706 = vmatprep.subr.mxu0 0.0
    %707 = vmatpush1.msra.mxu0 0.0
    %708 = vmatprep.subr.mxu0 0.0
    %709 = vmatpush1.msra.mxu0 0.0
    %710 = vmatprep.subr.mxu0 0.0
    %711 = vmatpush1.msra.mxu0 0.0
    %712 = vmatprep.subr.mxu0 0.0
    %713 = vmatpush1.msra.mxu0 0.0
    %714 = vmatprep.subr.mxu0 0.0
    %715 = vmatpush1.msra.mxu0 0.0
    %716 = vmatprep.subr.mxu0 0.0
    %717 = vmatpush1.msra.mxu0 0.0
    %718 = vmatprep.subr.mxu0 0.0
    %719 = vmatpush1.msra.mxu0 0.0
    %720 = vmatprep.subr.mxu0 0.0
    %721 = vmatpush1.msra.mxu0 0.0
    %722 = vmatprep.subr.mxu0 0.0
    %723 = vmatpush1.msra.mxu0 0.0
    %724 = vmatprep.subr.mxu0 0.0
    %725 = vmatpush1.msra.mxu0 0.0
    %726 = vmatprep.subr.mxu0 0.0
    %727 = vmatpush1.msra.mxu0 0.0
    %728 = vmatprep.subr.mxu0 0.0
    %729 = vmatpush1.msra.mxu0 0.0
    %730 = vmatprep.subr.mxu0 0.0
    %731 = vmatpush1.msra.mxu0 0.0
    %732 = vmatprep.subr.mxu0 0.0
    %733 = vmatpush1.msra.mxu0 0.0
    %734 = vmatprep.subr.mxu0 0.0
    %735 = vmatpush1.msra.mxu0 0.0
    %736 = vmatprep.subr.mxu0 0.0
    %737 = vmatpush1.msra.mxu0 0.0
    %738 = vmatprep.subr.mxu0 0.0
    %739 = vmatpush1.msra.mxu0 0.0
    %740 = vmatprep.subr.mxu0 0.0
    %741 = vmatpush1.msra.mxu0 0.0
    %742 = vmatprep.subr.mxu0 0.0
    %743 = vmatpush1.msra.mxu0 0.0
    %744 = vmatprep.subr.mxu0 0.0
    %745 = vmatpush1.msra.mxu0 0.0
    %746 = vmatprep.subr.mxu0 0.0
    %747 = vmatpush1.msra.mxu0 0.0
    %748 = vmatprep.subr.mxu0 0.0
    %749 = vmatpush1.msra.mxu0 0.0
    %750 = vmatprep.subr.mxu0 0.0
    %751 = vmatpush1.msra.mxu0 0.0
    %752 = vmatprep.subr.mxu0 0.0
    %753 = vmatpush1.msra.mxu0 0.0
    %754 = vmatprep.subr.mxu0 0.0
    %755 = vmatpush1.msra.mxu0 0.0
    %756 = vmatprep.subr.mxu0 0.0
    %757 = vmatpush1.msra.mxu0 0.0
    %758 = vmatprep.subr.mxu0 0.0
    %759 = vmatpush1.msra.mxu0 0.0
    %760 = vmatprep.subr.mxu0 0.0
    %761 = vmatpush1.msra.mxu0 0.0
    %762 = vmatprep.subr.mxu0 0.0
    %763 = vmatpush1.msra.mxu0 0.0
    %764 = vmatprep.mubr.f32.mxu0 0.0
    %765 = vmatmul.mubr.f32.gmra.mrb[0].mxu0 %v698
    %v766 = vpop.f32.mrb[0].mxu0
    %v767 = vadd.f32 0.0, %v766
    %v768 = vpop.f32.mrb[0].mxu0
    %769 = vdwg.mxu0
    %770 = vrot.lane.b32.xlu0 %v150, 48
    %v771 = vpop.permute.xlu0 %770
    %v774 = vsel %vm341, %v693, 0
    %776 = vmatprep.subr.mxu0 0.0
    %777 = vmatpush1.msra.mxu0 %v771
    %778 = vmatprep.subr.mxu0 0.0
    %779 = vmatpush1.msra.mxu0 0.0
    %780 = vmatprep.subr.mxu0 0.0
    %781 = vmatpush1.msra.mxu0 0.0
    %782 = vmatprep.subr.mxu0 0.0
    %783 = vmatpush1.msra.mxu0 0.0
    %784 = vmatprep.subr.mxu0 0.0
    %785 = vmatpush1.msra.mxu0 0.0
    %786 = vmatprep.subr.mxu0 0.0
    %787 = vmatpush1.msra.mxu0 0.0
    %788 = vmatprep.subr.mxu0 0.0
    %789 = vmatpush1.msra.mxu0 0.0
    %790 = vmatprep.subr.mxu0 0.0
    %791 = vmatpush1.msra.mxu0 0.0
    %792 = vmatprep.subr.mxu0 0.0
    %793 = vmatpush1.msra.mxu0 0.0
    %794 = vmatprep.subr.mxu0 0.0
    %795 = vmatpush1.msra.mxu0 0.0
    %796 = vmatprep.subr.mxu0 0.0
    %797 = vmatpush1.msra.mxu0 0.0
    %798 = vmatprep.subr.mxu0 0.0
    %799 = vmatpush1.msra.mxu0 0.0
    %800 = vmatprep.subr.mxu0 0.0
    %801 = vmatpush1.msra.mxu0 0.0
    %802 = vmatprep.subr.mxu0 0.0
    %803 = vmatpush1.msra.mxu0 0.0
    %804 = vmatprep.subr.mxu0 0.0
    %805 = vmatpush1.msra.mxu0 0.0
    %806 = vmatprep.subr.mxu0 0.0
    %807 = vmatpush1.msra.mxu0 0.0
    %808 = vmatprep.subr.mxu0 0.0
    %809 = vmatpush1.msra.mxu0 0.0
    %810 = vmatprep.subr.mxu0 0.0
    %811 = vmatpush1.msra.mxu0 0.0
    %812 = vmatprep.subr.mxu0 0.0
    %813 = vmatpush1.msra.mxu0 0.0
    %814 = vmatprep.subr.mxu0 0.0
    %815 = vmatpush1.msra.mxu0 0.0
    %816 = vmatprep.subr.mxu0 0.0
    %817 = vmatpush1.msra.mxu0 0.0
    %818 = vmatprep.subr.mxu0 0.0
    %819 = vmatpush1.msra.mxu0 0.0
    %820 = vmatprep.subr.mxu0 0.0
    %821 = vmatpush1.msra.mxu0 0.0
    %822 = vmatprep.subr.mxu0 0.0
    %823 = vmatpush1.msra.mxu0 0.0
    %824 = vmatprep.subr.mxu0 0.0
    %825 = vmatpush1.msra.mxu0 0.0
    %826 = vmatprep.subr.mxu0 0.0
    %827 = vmatpush1.msra.mxu0 0.0
    %828 = vmatprep.subr.mxu0 0.0
    %829 = vmatpush1.msra.mxu0 0.0
    %830 = vmatprep.subr.mxu0 0.0
    %831 = vmatpush1.msra.mxu0 0.0
    %832 = vmatprep.subr.mxu0 0.0
    %833 = vmatpush1.msra.mxu0 0.0
    %834 = vmatprep.subr.mxu0 0.0
    %835 = vmatpush1.msra.mxu0 0.0
    %836 = vmatprep.subr.mxu0 0.0
    %837 = vmatpush1.msra.mxu0 0.0
    %838 = vmatprep.subr.mxu0 0.0
    %839 = vmatpush1.msra.mxu0 0.0
    %840 = vmatprep.mubr.f32.mxu0 0.0
    %841 = vmatmul.mubr.f32.gmra.mrb[0].mxu0 %v774
    %v842 = vpop.f32.mrb[0].mxu0
    %v843 = vadd.f32 0.0, %v842
    %v844 = vpop.f32.mrb[0].mxu0
    %845 = vdwg.mxu0
    %848 = vrot.lane.b32.xlu0 %v767, 16
    %v849 = vpop.permute.xlu0 %848
    %850 = vrot.lane.b32.xlu0 %v843, 16
    %v851 = vpop.permute.xlu0 %850
    %v854 = vsel %vm189, %v437, %v849
    %v855 = vsel %vm189, %v513, %v851
    %v856 = vld [vmem:[%s5] sm:$0xf]
    %v857 = vld [vmem:[%s5 + $0x4] sm:$0xf]
    %v858 = vld [vmem:[%s5 + $0x8] sm:$0xf]
    %v859 = vld [vmem:[%s5 + $0xc] sm:$0xf]
    %v860 = vpack.c.bf16 %v855, %v854
    %v861 = vld [vmem:[%s8 + $0x3] sm:$0x1]
    %v862 = vlaneseq
    %v863 = vshrl.u32 %v862, 7
    %v864 = vsub.s32 0, %v863
    %v865 = vrot.slane %v861, %v864
    %v870 = vunpack.c.l.b16 %v856
    %v871 = vunpack.c.l.b16 %v857
    %v872 = vunpack.c.l.b16 %v858
    %v873 = vunpack.c.l.b16 %v859
    %v874 = vpack.c.b16 %v871, %v870
    %v875 = vpack.c.b16 %v873, %v872
    %v879 = vsel %vm44, %v860, 0
    %881 = vmatprep.subr.bf16.mxu0 0
    %882 = vmatpush1.bf16.msra.mxu0 %v874
    %883 = vmatprep.subr.bf16.mxu0 0
    %884 = vmatpush1.bf16.msra.mxu0 %v875
    %885 = vmatprep.subr.bf16.mxu0 0
    %886 = vmatpush1.bf16.msra.mxu0 0
    %887 = vmatprep.subr.bf16.mxu0 0
    %888 = vmatpush1.bf16.msra.mxu0 0
    %889 = vmatprep.subr.bf16.mxu0 0
    %890 = vmatpush1.bf16.msra.mxu0 0
    %891 = vmatprep.subr.bf16.mxu0 0
    %892 = vmatpush1.bf16.msra.mxu0 0
    %893 = vmatprep.subr.bf16.mxu0 0
    %894 = vmatpush1.bf16.msra.mxu0 0
    %895 = vmatprep.subr.bf16.mxu0 0
    %896 = vmatpush1.bf16.msra.mxu0 0
    %897 = vmatprep.subr.bf16.mxu0 0
    %898 = vmatpush1.bf16.msra.mxu0 0
    %899 = vmatprep.subr.bf16.mxu0 0
    %900 = vmatpush1.bf16.msra.mxu0 0
    %901 = vmatprep.subr.bf16.mxu0 0
    %902 = vmatpush1.bf16.msra.mxu0 0
    %903 = vmatprep.subr.bf16.mxu0 0
    %904 = vmatpush1.bf16.msra.mxu0 0
    %905 = vmatprep.subr.bf16.mxu0 0
    %906 = vmatpush1.bf16.msra.mxu0 0
    %907 = vmatprep.subr.bf16.mxu0 0
    %908 = vmatpush1.bf16.msra.mxu0 0
    %909 = vmatprep.subr.bf16.mxu0 0
    %910 = vmatpush1.bf16.msra.mxu0 0
    %911 = vmatprep.subr.bf16.mxu0 0
    %912 = vmatpush1.bf16.msra.mxu0 0
    %913 = vmatprep.mubr.bf16.mxu0 0
    %914 = vmatmul.mubr.bf16.gmra.mrb[0].mxu0 %v879
    %v915 = vpop.f32.mrb[0].mxu0
    %v916 = vadd.f32 %v865, %v915
    %v917 = vpop.f32.mrb[0].mxu0
    %v918 = vpop.f32.mrb[0].mxu0
    %v919 = vadd.f32 %v865, %v918
    %v920 = vpop.f32.mrb[0].mxu0
    %921 = vdwg.mxu0
    %v922 = vadd.f32 %v916, %v82
    %v923 = vadd.f32 %v919, %v83
    %v924 = vld [vmem:[%s8 + $0x4] sm:$0x1]
    %v925 = vld [vmem:[%s8 + $0x5] sm:$0x1]
    %v926 = vsel %vm44, %v922, 0.0
    %927 = vadd.xlane.f32.xlu0 %v926
    %v928 = vpop.xlane.xlu0 %927
    %v929 = vsel %vm44, %v923, 0.0
    %930 = vadd.xlane.f32.xlu0 %v929
    %v931 = vpop.xlane.xlu0 %930
    %v932 = vmul.f32 %v928, %v51
    %v933 = vmul.f32 %v931, %v51
    %v934 = vsub.f32 %v922, %v932
    %v935 = vsub.f32 %v923, %v933
    %v936 = vmul.f32 %v934, %v934
    %v937 = vmul.f32 %v935, %v935
    %v938 = vsel %vm44, %v936, 0.0
    %939 = vadd.xlane.f32.xlu0 %v938
    %v940 = vpop.xlane.xlu0 %939
    %v941 = vsel %vm44, %v937, 0.0
    %942 = vadd.xlane.f32.xlu0 %v941
    %v943 = vpop.xlane.xlu0 %942
    %v944 = vmul.f32 %v940, %v51
    %v945 = vmul.f32 %v943, %v51
    %v946 = vadd.f32 %v944, 1e-12
    %v947 = vadd.f32 %v945, 1e-12
    %v948 = vrsqrt.pop %v946
    %v949 = vrsqrt.pop %v947
    %v950 = vmul.f32 %v934, %v948
    %v951 = vmul.f32 %v935, %v949
    %v952 = vlaneseq
    %v953 = vshrl.u32 %v952, 7
    %v954 = vsub.s32 0, %v953
    %v955 = vrot.slane %v924, %v954
    %v956 = vmul.f32 %v950, %v955
    %v957 = vmul.f32 %v951, %v955
    %v958 = vlaneseq
    %v959 = vshrl.u32 %v958, 7
    %v960 = vsub.s32 0, %v959
    %v961 = vrot.slane %v925, %v960
    %v962 = vadd.f32 %v956, %v961
    %v963 = vadd.f32 %v957, %v961
    %v964 = vld [vmem:[%s6] sm:$0xf]
    %v965 = vld [vmem:[%s6 + $0x4] sm:$0xf]
    %v966 = vld [vmem:[%s6 + $0x8] sm:$0xf]
    %v967 = vld [vmem:[%s6 + $0xc] sm:$0xf]
    %v968 = vpack.c.bf16 %v963, %v962
    %v969 = vld [vmem:[%s8 + $0x6] sm:$0x1]
    %v970 = vlaneseq
    %v971 = vshrl.u32 %v970, 7
    %v972 = vsub.s32 0, %v971
    %v973 = vrot.slane %v969, %v972
    %v978 = vunpack.c.l.b16 %v964
    %v979 = vunpack.c.l.b16 %v965
    %v980 = vunpack.c.l.b16 %v966
    %v981 = vunpack.c.l.b16 %v967
    %v982 = vpack.c.b16 %v979, %v978
    %v983 = vpack.c.b16 %v981, %v980
    %v987 = vsel %vm44, %v968, 0
    %989 = vmatprep.subr.bf16.mxu0 0
    %990 = vmatpush1.bf16.msra.mxu0 %v982
    %991 = vmatprep.subr.bf16.mxu0 0
    %992 = vmatpush1.bf16.msra.mxu0 %v983
    %993 = vmatprep.subr.bf16.mxu0 0
    %994 = vmatpush1.bf16.msra.mxu0 0
    %995 = vmatprep.subr.bf16.mxu0 0
    %996 = vmatpush1.bf16.msra.mxu0 0
    %997 = vmatprep.subr.bf16.mxu0 0
    %998 = vmatpush1.bf16.msra.mxu0 0
    %999 = vmatprep.subr.bf16.mxu0 0
    %1000 = vmatpush1.bf16.msra.mxu0 0
    %1001 = vmatprep.subr.bf16.mxu0 0
    %1002 = vmatpush1.bf16.msra.mxu0 0
    %1003 = vmatprep.subr.bf16.mxu0 0
    %1004 = vmatpush1.bf16.msra.mxu0 0
    %1005 = vmatprep.subr.bf16.mxu0 0
    %1006 = vmatpush1.bf16.msra.mxu0 0
    %1007 = vmatprep.subr.bf16.mxu0 0
    %1008 = vmatpush1.bf16.msra.mxu0 0
    %1009 = vmatprep.subr.bf16.mxu0 0
    %1010 = vmatpush1.bf16.msra.mxu0 0
    %1011 = vmatprep.subr.bf16.mxu0 0
    %1012 = vmatpush1.bf16.msra.mxu0 0
    %1013 = vmatprep.subr.bf16.mxu0 0
    %1014 = vmatpush1.bf16.msra.mxu0 0
    %1015 = vmatprep.subr.bf16.mxu0 0
    %1016 = vmatpush1.bf16.msra.mxu0 0
    %1017 = vmatprep.subr.bf16.mxu0 0
    %1018 = vmatpush1.bf16.msra.mxu0 0
    %1019 = vmatprep.subr.bf16.mxu0 0
    %1020 = vmatpush1.bf16.msra.mxu0 0
    %1021 = vmatprep.mubr.bf16.mxu0 0
    %1022 = vmatmul.mubr.bf16.gmra.mrb[0].mxu0 %v987
    %v1023 = vpop.f32.mrb[0].mxu0
    %v1024 = vadd.f32 %v973, %v1023
    %v1025 = vpop.f32.mrb[0].mxu0
    %v1026 = vpop.f32.mrb[0].mxu0
    %v1027 = vadd.f32 %v973, %v1026
    %v1028 = vpop.f32.mrb[0].mxu0
    %1029 = vdwg.mxu0
    %v1030 = vmul.f32 %v1024, %v1024
    %v1031 = vmul.f32 %v1027, %v1027
    %v1032 = vmul.f32 %v1024, %v1030
    %v1033 = vmul.f32 %v1027, %v1031
    %v1034 = vmul.f32 %v1032, 0.044715
    %v1035 = vmul.f32 %v1033, 0.044715
    %v1036 = vadd.f32 %v1024, %v1034
    %v1037 = vadd.f32 %v1027, %v1035
    %v1038 = vmul.f32 %v1036, 0.7978846
    %v1039 = vmul.f32 %v1037, 0.7978846
    %v1040 = vtanh.pop %v1038
    %v1041 = vtanh.pop %v1039
    %v1042 = vadd.f32 %v1040, 1.0
    %v1043 = vadd.f32 %v1041, 1.0
    %v1044 = vmul.f32 %v1042, 0.5
    %v1045 = vmul.f32 %v1043, 0.5
    %v1046 = vmul.f32 %v1024, %v1044
    %v1047 = vmul.f32 %v1027, %v1045
    %v1048 = vld [vmem:[%s7] sm:$0xf]
    %v1049 = vld [vmem:[%s7 + $0x4] sm:$0xf]
    %v1050 = vld [vmem:[%s7 + $0x8] sm:$0xf]
    %v1051 = vld [vmem:[%s7 + $0xc] sm:$0xf]
    %v1052 = vld [vmem:[%s7 + $0x10] sm:$0xf]
    %v1053 = vld [vmem:[%s7 + $0x14] sm:$0xf]
    %v1054 = vld [vmem:[%s7 + $0x18] sm:$0xf]
    %v1055 = vld [vmem:[%s7 + $0x1c] sm:$0xf]
    %v1056 = vpack.c.bf16 %v1047, %v1046
    %v1057 = vld [vmem:[%s8 + $0x7] sm:$0x1]
    %v1058 = vlaneseq
    %v1059 = vshrl.u32 %v1058, 7
    %v1060 = vsub.s32 0, %v1059
    %v1061 = vrot.slane %v1057, %v1060
    %v1070 = vunpack.c.l.b16 %v1048
    %v1071 = vunpack.c.l.b16 %v1049
    %v1072 = vunpack.c.l.b16 %v1050
    %v1073 = vunpack.c.l.b16 %v1051
    %v1074 = vunpack.c.l.b16 %v1052
    %v1075 = vunpack.c.l.b16 %v1053
    %v1076 = vunpack.c.l.b16 %v1054
    %v1077 = vunpack.c.l.b16 %v1055
    %v1078 = vpack.c.b16 %v1071, %v1070
    %v1079 = vpack.c.b16 %v1073, %v1072
    %v1080 = vpack.c.b16 %v1075, %v1074
    %v1081 = vpack.c.b16 %v1077, %v1076
    %vm1086 = vcmask 523264
    %v1088 = vsel %vm1086, %v1056, 0
    %1090 = vmatprep.subr.bf16.mxu0 0
    %1091 = vmatpush1.bf16.msra.mxu0 %v1078
    %1092 = vmatprep.subr.bf16.mxu0 0
    %1093 = vmatpush1.bf16.msra.mxu0 %v1079
    %1094 = vmatprep.subr.bf16.mxu0 0
    %1095 = vmatpush1.bf16.msra.mxu0 %v1080
    %1096 = vmatprep.subr.bf16.mxu0 0
    %1097 = vmatpush1.bf16.msra.mxu0 %v1081
    %1098 = vmatprep.subr.bf16.mxu0 0
    %1099 = vmatpush1.bf16.msra.mxu0 0
    %1100 = vmatprep.subr.bf16.mxu0 0
    %1101 = vmatpush1.bf16.msra.mxu0 0
    %1102 = vmatprep.subr.bf16.mxu0 0
    %1103 = vmatpush1.bf16.msra.mxu0 0
    %1104 = vmatprep.subr.bf16.mxu0 0
    %1105 = vmatpush1.bf16.msra.mxu0 0
    %1106 = vmatprep.subr.bf16.mxu0 0
    %1107 = vmatpush1.bf16.msra.mxu0 0
    %1108 = vmatprep.subr.bf16.mxu0 0
    %1109 = vmatpush1.bf16.msra.mxu0 0
    %1110 = vmatprep.subr.bf16.mxu0 0
    %1111 = vmatpush1.bf16.msra.mxu0 0
    %1112 = vmatprep.subr.bf16.mxu0 0
    %1113 = vmatpush1.bf16.msra.mxu0 0
    %1114 = vmatprep.subr.bf16.mxu0 0
    %1115 = vmatpush1.bf16.msra.mxu0 0
    %1116 = vmatprep.subr.bf16.mxu0 0
    %1117 = vmatpush1.bf16.msra.mxu0 0
    %1118 = vmatprep.subr.bf16.mxu0 0
    %1119 = vmatpush1.bf16.msra.mxu0 0
    %1120 = vmatprep.subr.bf16.mxu0 0
    %1121 = vmatpush1.bf16.msra.mxu0 0
    %1122 = vmatprep.mubr.bf16.mxu0 0
    %1123 = vmatmul.mubr.bf16.gmra.mrb[0].mxu0 %v1088
    %v1124 = vpop.f32.mrb[0].mxu0
    %v1125 = vadd.f32 %v1061, %v1124
    %v1126 = vpop.f32.mrb[0].mxu0
    %v1127 = vpop.f32.mrb[0].mxu0
    %v1128 = vadd.f32 %v1061, %v1127
    %v1129 = vpop.f32.mrb[0].mxu0
    %1130 = vdwg.mxu0
    %v1131 = vadd.f32 %v1125, %v962
    %v1132 = vadd.f32 %v1128, %v963
    %v1133 = vld [vmem:[%s8 + $0x8] sm:$0x1]
    %v1134 = vld [vmem:[%s8 + $0x9] sm:$0x1]
    %v1135 = vsel %vm44, %v1131, 0.0
    %1136 = vadd.xlane.f32.xlu0 %v1135
    %v1137 = vpop.xlane.xlu0 %1136
    %v1138 = vsel %vm44, %v1132, 0.0
    %1139 = vadd.xlane.f32.xlu0 %v1138
    %v1140 = vpop.xlane.xlu0 %1139
    %v1141 = vmul.f32 %v1137, %v51
    %v1142 = vmul.f32 %v1140, %v51
    %v1143 = vsub.f32 %v1131, %v1141
    %v1144 = vsub.f32 %v1132, %v1142
    %v1145 = vmul.f32 %v1143, %v1143
    %v1146 = vmul.f32 %v1144, %v1144
    %v1147 = vsel %vm44, %v1145, 0.0
    %1148 = vadd.xlane.f32.xlu0 %v1147
    %v1149 = vpop.xlane.xlu0 %1148
    %v1150 = vsel %vm44, %v1146, 0.0
    %1151 = vadd.xlane.f32.xlu0 %v1150
    %v1152 = vpop.xlane.xlu0 %1151
    %v1153 = vmul.f32 %v1149, %v51
    %v1154 = vmul.f32 %v1152, %v51
    %v1155 = vadd.f32 %v1153, 1e-12
    %v1156 = vadd.f32 %v1154, 1e-12
    %v1157 = vrsqrt.pop %v1155
    %v1158 = vrsqrt.pop %v1156
    %v1159 = vmul.f32 %v1143, %v1157
    %v1160 = vmul.f32 %v1144, %v1158
    %v1161 = vlaneseq
    %v1162 = vshrl.u32 %v1161, 7
    %v1163 = vsub.s32 0, %v1162
    %v1164 = vrot.slane %v1133, %v1163
    %v1165 = vmul.f32 %v1159, %v1164
    %v1166 = vmul.f32 %v1160, %v1164
    %v1167 = vlaneseq
    %v1168 = vshrl.u32 %v1167, 7
    %v1169 = vsub.s32 0, %v1168
    %v1170 = vrot.slane %v1134, %v1169
    %v1171 = vadd.f32 %v1165, %v1170
    %v1172 = vadd.f32 %v1166, %v1170
    %s1173 = scalar_lea.vmem %s4, 16
    %v1174 = vld [vmem:[%s1173] sm:$0xf]
    %v1175 = vld [vmem:[%s1173 + $0x4] sm:$0xf]
    %v1176 = vld [vmem:[%s1173 + $0x8] sm:$0xf]
    %v1177 = vld [vmem:[%s1173 + $0xc] sm:$0xf]
    %v1178 = vpack.c.bf16 %v1172, %v1171
    %v1179 = vld [vmem:[%s8 + $0xa] sm:$0x1]
    %v1180 = vlaneseq
    %v1181 = vshrl.u32 %v1180, 7
    %v1182 = vsub.s32 0, %v1181
    %v1183 = vrot.slane %v1179, %v1182
    %v1188 = vunpack.c.l.b16 %v1174
    %v1189 = vunpack.c.l.b16 %v1175
    %v1190 = vunpack.c.l.b16 %v1176
    %v1191 = vunpack.c.l.b16 %v1177
    %v1192 = vpack.c.b16 %v1189, %v1188
    %v1193 = vpack.c.b16 %v1191, %v1190
    %v1197 = vsel %vm44, %v1178, 0
    %1199 = vmatprep.subr.bf16.mxu0 0
    %1200 = vmatpush1.bf16.msra.mxu0 %v1192
    %1201 = vmatprep.subr.bf16.mxu0 0
    %1202 = vmatpush1.bf16.msra.mxu0 %v1193
    %1203 = vmatprep.subr.bf16.mxu0 0
    %1204 = vmatpush1.bf16.msra.mxu0 0
    %1205 = vmatprep.subr.bf16.mxu0 0
    %1206 = vmatpush1.bf16.msra.mxu0 0
    %1207 = vmatprep.subr.bf16.mxu0 0
    %1208 = vmatpush1.bf16.msra.mxu0 0
    %1209 = vmatprep.subr.bf16.mxu0 0
    %1210 = vmatpush1.bf16.msra.mxu0 0
    %1211 = vmatprep.subr.bf16.mxu0 0
    %1212 = vmatpush1.bf16.msra.mxu0 0
    %1213 = vmatprep.subr.bf16.mxu0 0
    %1214 = vmatpush1.bf16.msra.mxu0 0
    %1215 = vmatprep.subr.bf16.mxu0 0
    %1216 = vmatpush1.bf16.msra.mxu0 0
    %1217 = vmatprep.subr.bf16.mxu0 0
    %1218 = vmatpush1.bf16.msra.mxu0 0
    %1219 = vmatprep.subr.bf16.mxu0 0
    %1220 = vmatpush1.bf16.msra.mxu0 0
    %1221 = vmatprep.subr.bf16.mxu0 0
    %1222 = vmatpush1.bf16.msra.mxu0 0
    %1223 = vmatprep.subr.bf16.mxu0 0
    %1224 = vmatpush1.bf16.msra.mxu0 0
    %1225 = vmatprep.subr.bf16.mxu0 0
    %1226 = vmatpush1.bf16.msra.mxu0 0
    %1227 = vmatprep.subr.bf16.mxu0 0
    %1228 = vmatpush1.bf16.msra.mxu0 0
    %1229 = vmatprep.subr.bf16.mxu0 0
    %1230 = vmatpush1.bf16.msra.mxu0 0
    %1231 = vmatprep.mubr.bf16.mxu0 0
    %1232 = vmatmul.mubr.bf16.gmra.mrb[0].mxu0 %v1197
    %v1233 = vpop.f32.mrb[0].mxu0
    %v1234 = vadd.f32 %v1183, %v1233
    %v1235 = vpop.f32.mrb[0].mxu0
    %v1236 = vpop.f32.mrb[0].mxu0
    %v1237 = vadd.f32 %v1183, %v1236
    %v1238 = vpop.f32.mrb[0].mxu0
    %1239 = vdwg.mxu0
    %1241 = vrot.lane.b32.xlu0 %v1234, 96
    %v1242 = vpop.permute.xlu0 %1241
    %v1243 = vsel %vm189, %v1234, 0
    %v1245 = vsel %vm189, %v1242, 0
    %1247 = vmatprep.subr.mxu0 0.0
    %1248 = vmatpush1.xpose.msra.mxu0 %v1245
    %1249 = vmatprep.subr.mxu0 0.0
    %1250 = vmatpush1.xpose.msra.mxu0 0.0
    %1251 = vmatprep.subr.mxu0 0.0
    %1252 = vmatpush1.xpose.msra.mxu0 0.0
    %1253 = vmatprep.subr.mxu0 0.0
    %1254 = vmatpush1.xpose.msra.mxu0 0.0
    %1255 = vmatprep.subr.mxu0 0.0
    %1256 = vmatpush1.xpose.msra.mxu0 0.0
    %1257 = vmatprep.subr.mxu0 0.0
    %1258 = vmatpush1.xpose.msra.mxu0 0.0
    %1259 = vmatprep.subr.mxu0 0.0
    %1260 = vmatpush1.xpose.msra.mxu0 0.0
    %1261 = vmatprep.subr.mxu0 0.0
    %1262 = vmatpush1.xpose.msra.mxu0 0.0
    %1263 = vmatprep.subr.mxu0 0.0
    %1264 = vmatpush1.xpose.msra.mxu0 0.0
    %1265 = vmatprep.subr.mxu0 0.0
    %1266 = vmatpush1.xpose.msra.mxu0 0.0
    %1267 = vmatprep.subr.mxu0 0.0
    %1268 = vmatpush1.xpose.msra.mxu0 0.0
    %1269 = vmatprep.subr.mxu0 0.0
    %1270 = vmatpush1.xpose.msra.mxu0 0.0
    %1271 = vmatprep.subr.mxu0 0.0
    %1272 = vmatpush1.xpose.msra.mxu0 0.0
    %1273 = vmatprep.subr.mxu0 0.0
    %1274 = vmatpush1.xpose.msra.mxu0 0.0
    %1275 = vmatprep.subr.mxu0 0.0
    %1276 = vmatpush1.xpose.msra.mxu0 0.0
    %1277 = vmatprep.subr.mxu0 0.0
    %1278 = vmatpush1.xpose.msra.mxu0 0.0
    %1279 = vmatprep.subr.mxu0 0.0
    %1280 = vmatpush1.xpose.msra.mxu0 0.0
    %1281 = vmatprep.subr.mxu0 0.0
    %1282 = vmatpush1.xpose.msra.mxu0 0.0
    %1283 = vmatprep.subr.mxu0 0.0
    %1284 = vmatpush1.xpose.msra.mxu0 0.0
    %1285 = vmatprep.subr.mxu0 0.0
    %1286 = vmatpush1.xpose.msra.mxu0 0.0
    %1287 = vmatprep.subr.mxu0 0.0
    %1288 = vmatpush1.xpose.msra.mxu0 0.0
    %1289 = vmatprep.subr.mxu0 0.0
    %1290 = vmatpush1.xpose.msra.mxu0 0.0
    %1291 = vmatprep.subr.mxu0 0.0
    %1292 = vmatpush1.xpose.msra.mxu0 0.0
    %1293 = vmatprep.subr.mxu0 0.0
    %1294 = vmatpush1.xpose.msra.mxu0 0.0
    %1295 = vmatprep.subr.mxu0 0.0
    %1296 = vmatpush1.xpose.msra.mxu0 0.0
    %1297 = vmatprep.subr.mxu0 0.0
    %1298 = vmatpush1.xpose.msra.mxu0 0.0
    %1299 = vmatprep.subr.mxu0 0.0
    %1300 = vmatpush1.xpose.msra.mxu0 0.0
    %1301 = vmatprep.subr.mxu0 0.0
    %1302 = vmatpush1.xpose.msra.mxu0 0.0
    %1303 = vmatprep.subr.mxu0 0.0
    %1304 = vmatpush1.xpose.msra.mxu0 0.0
    %1305 = vmatprep.subr.mxu0 0.0
    %1306 = vmatpush1.xpose.msra.mxu0 0.0
    %1307 = vmatprep.subr.mxu0 0.0
    %1308 = vmatpush1.xpose.msra.mxu0 0.0
    %1309 = vmatprep.subr.mxu0 0.0
    %1310 = vmatpush1.xpose.msra.mxu0 0.0
    %1311 = vmatprep.mubr.f32.mxu0 0.0
    %1312 = vmatmul.mubr.f32.gmra.mrb[0].mxu0 %v1243
    %v1313 = vpop.f32.mrb[0].mxu0
    %v1314 = vadd.f32 %v179, %v1313
    %v1315 = vpop.f32.mrb[0].mxu0
    %1316 = vdwg.mxu0
    %1318 = vrot.lane.b32.xlu0 %v1237, 96
    %v1319 = vpop.permute.xlu0 %1318
    %v1320 = vsel %vm189, %v1237, 0
    %v1322 = vsel %vm189, %v1319, 0
    %1324 = vmatprep.subr.mxu0 0.0
    %1325 = vmatpush1.xpose.msra.mxu0 %v1322
    %1326 = vmatprep.subr.mxu0 0.0
    %1327 = vmatpush1.xpose.msra.mxu0 0.0
    %1328 = vmatprep.subr.mxu0 0.0
    %1329 = vmatpush1.xpose.msra.mxu0 0.0
    %1330 = vmatprep.subr.mxu0 0.0
    %1331 = vmatpush1.xpose.msra.mxu0 0.0
    %1332 = vmatprep.subr.mxu0 0.0
    %1333 = vmatpush1.xpose.msra.mxu0 0.0
    %1334 = vmatprep.subr.mxu0 0.0
    %1335 = vmatpush1.xpose.msra.mxu0 0.0
    %1336 = vmatprep.subr.mxu0 0.0
    %1337 = vmatpush1.xpose.msra.mxu0 0.0
    %1338 = vmatprep.subr.mxu0 0.0
    %1339 = vmatpush1.xpose.msra.mxu0 0.0
    %1340 = vmatprep.subr.mxu0 0.0
    %1341 = vmatpush1.xpose.msra.mxu0 0.0
    %1342 = vmatprep.subr.mxu0 0.0
    %1343 = vmatpush1.xpose.msra.mxu0 0.0
    %1344 = vmatprep.subr.mxu0 0.0
    %1345 = vmatpush1.xpose.msra.mxu0 0.0
    %1346 = vmatprep.subr.mxu0 0.0
    %1347 = vmatpush1.xpose.msra.mxu0 0.0
    %1348 = vmatprep.subr.mxu0 0.0
    %1349 = vmatpush1.xpose.msra.mxu0 0.0
    %1350 = vmatprep.subr.mxu0 0.0
    %1351 = vmatpush1.xpose.msra.mxu0 0.0
    %1352 = vmatprep.subr.mxu0 0.0
    %1353 = vmatpush1.xpose.msra.mxu0 0.0
    %1354 = vmatprep.subr.mxu0 0.0
    %1355 = vmatpush1.xpose.msra.mxu0 0.0
    %1356 = vmatprep.subr.mxu0 0.0
    %1357 = vmatpush1.xpose.msra.mxu0 0.0
    %1358 = vmatprep.subr.mxu0 0.0
    %1359 = vmatpush1.xpose.msra.mxu0 0.0
    %1360 = vmatprep.subr.mxu0 0.0
    %1361 = vmatpush1.xpose.msra.mxu0 0.0
    %1362 = vmatprep.subr.mxu0 0.0
    %1363 = vmatpush1.xpose.msra.mxu0 0.0
    %1364 = vmatprep.subr.mxu0 0.0
    %1365 = vmatpush1.xpose.msra.mxu0 0.0
    %1366 = vmatprep.subr.mxu0 0.0
    %1367 = vmatpush1.xpose.msra.mxu0 0.0
    %1368 = vmatprep.subr.mxu0 0.0
    %1369 = vmatpush1.xpose.msra.mxu0 0.0
    %1370 = vmatprep.subr.mxu0 0.0
    %1371 = vmatpush1.xpose.msra.mxu0 0.0
    %1372 = vmatprep.subr.mxu0 0.0
    %1373 = vmatpush1.xpose.msra.mxu0 0.0
    %1374 = vmatprep.subr.mxu0 0.0
    %1375 = vmatpush1.xpose.msra.mxu0 0.0
    %1376 = vmatprep.subr.mxu0 0.0
    %1377 = vmatpush1.xpose.msra.mxu0 0.0
    %1378 = vmatprep.subr.mxu0 0.0
    %1379 = vmatpush1.xpose.msra.mxu0 0.0
    %1380 = vmatprep.subr.mxu0 0.0
    %1381 = vmatpush1.xpose.msra.mxu0 0.0
    %1382 = vmatprep.subr.mxu0 0.0
    %1383 = vmatpush1.xpose.msra.mxu0 0.0
    %1384 = vmatprep.subr.mxu0 0.0
    %1385 = vmatpush1.xpose.msra.mxu0 0.0
    %1386 = vmatprep.subr.mxu0 0.0
    %1387 = vmatpush1.xpose.msra.mxu0 0.0
    %1388 = vmatprep.mubr.f32.mxu0 0.0
    %1389 = vmatmul.mubr.f32.gmra.mrb[0].mxu0 %v1320
    %v1390 = vpop.f32.mrb[0].mxu0
    %v1391 = vadd.f32 %v183, %v1390
    %v1392 = vpop.f32.mrb[0].mxu0
    %1393 = vdwg.mxu0
    %v1394 = vsel %vm341, %v1314, -inf
    %1395 = vmax.xlane.f32.xlu0 %v1394
    %v1396 = vpop.xlane.xlu0 %1395
    %v1397 = vsel %vm341, %v1391, -inf
    %1398 = vmax.xlane.f32.xlu0 %v1397
    %v1399 = vpop.xlane.xlu0 %1398
    %v1400 = vsub.f32 %v1314, %v1396
    %v1401 = vsub.f32 %v1391, %v1399
    %v1402 = vmul.f32 %v1400, 1.442695
    %v1403 = vpow.pop %v1402
    %v1404 = vmul.f32 %v1401, 1.442695
    %v1405 = vpow.pop %v1404
    %v1406 = vsel %vm341, %v1403, 0.0
    %1407 = vadd.xlane.f32.xlu0 %v1406
    %v1408 = vpop.xlane.xlu0 %1407
    %v1409 = vsel %vm341, %v1405, 0.0
    %1410 = vadd.xlane.f32.xlu0 %v1409
    %v1411 = vpop.xlane.xlu0 %1410
    %v1412 = vrcp.pop %v1408
    %v1413 = vrcp.pop %v1411
    %v1414 = vmul.f32 %v1403, %v1412
    %v1415 = vmul.f32 %v1405, %v1413
    %1416 = vrot.lane.b32.xlu0 %v1234, 64
    %v1417 = vpop.permute.xlu0 %1416
    %v1420 = vsel %vm341, %v1414, 0
    %1422 = vmatprep.subr.mxu0 0.0
    %1423 = vmatpush1.msra.mxu0 %v1417
    %1424 = vmatprep.subr.mxu0 0.0
    %1425 = vmatpush1.msra.mxu0 0.0
    %1426 = vmatprep.subr.mxu0 0.0
    %1427 = vmatpush1.msra.mxu0 0.0
    %1428 = vmatprep.subr.mxu0 0.0
    %1429 = vmatpush1.msra.mxu0 0.0
    %1430 = vmatprep.subr.mxu0 0.0
    %1431 = vmatpush1.msra.mxu0 0.0
    %1432 = vmatprep.subr.mxu0 0.0
    %1433 = vmatpush1.msra.mxu0 0.0
    %1434 = vmatprep.subr.mxu0 0.0
    %1435 = vmatpush1.msra.mxu0 0.0
    %1436 = vmatprep.subr.mxu0 0.0
    %1437 = vmatpush1.msra.mxu0 0.0
    %1438 = vmatprep.subr.mxu0 0.0
    %1439 = vmatpush1.msra.mxu0 0.0
    %1440 = vmatprep.subr.mxu0 0.0
    %1441 = vmatpush1.msra.mxu0 0.0
    %1442 = vmatprep.subr.mxu0 0.0
    %1443 = vmatpush1.msra.mxu0 0.0
    %1444 = vmatprep.subr.mxu0 0.0
    %1445 = vmatpush1.msra.mxu0 0.0
    %1446 = vmatprep.subr.mxu0 0.0
    %1447 = vmatpush1.msra.mxu0 0.0
    %1448 = vmatprep.subr.mxu0 0.0
    %1449 = vmatpush1.msra.mxu0 0.0
    %1450 = vmatprep.subr.mxu0 0.0
    %1451 = vmatpush1.msra.mxu0 0.0
    %1452 = vmatprep.subr.mxu0 0.0
    %1453 = vmatpush1.msra.mxu0 0.0
    %1454 = vmatprep.subr.mxu0 0.0
    %1455 = vmatpush1.msra.mxu0 0.0
    %1456 = vmatprep.subr.mxu0 0.0
    %1457 = vmatpush1.msra.mxu0 0.0
    %1458 = vmatprep.subr.mxu0 0.0
    %1459 = vmatpush1.msra.mxu0 0.0
    %1460 = vmatprep.subr.mxu0 0.0
    %1461 = vmatpush1.msra.mxu0 0.0
    %1462 = vmatprep.subr.mxu0 0.0
    %1463 = vmatpush1.msra.mxu0 0.0
    %1464 = vmatprep.subr.mxu0 0.0
    %1465 = vmatpush1.msra.mxu0 0.0
    %1466 = vmatprep.subr.mxu0 0.0
    %1467 = vmatpush1.msra.mxu0 0.0
    %1468 = vmatprep.subr.mxu0 0.0
    %1469 = vmatpush1.msra.mxu0 0.0
    %1470 = vmatprep.subr.mxu0 0.0
    %1471 = vmatpush1.msra.mxu0 0.0
    %1472 = vmatprep.subr.mxu0 0.0
    %1473 = vmatpush1.msra.mxu0 0.0
    %1474 = vmatprep.subr.mxu0 0.0
    %1475 = vmatpush1.msra.mxu0 0.0
    %1476 = vmatprep.subr.mxu0 0.0
    %1477 = vmatpush1.msra.mxu0 0.0
    %1478 = vmatprep.subr.mxu0 0.0
    %1479 = vmatpush1.msra.mxu0 0.0
    %1480 = vmatprep.subr.mxu0 0.0
    %1481 = vmatpush1.msra.mxu0 0.0
    %1482 = vmatprep.subr.mxu0 0.0
    %1483 = vmatpush1.msra.mxu0 0.0
    %1484 = vmatprep.subr.mxu0 0.0
    %1485 = vmatpush1.msra.mxu0 0.0
    %1486 = vmatprep.mubr.f32.mxu0 0.0
    %1487 = vmatmul.mubr.f32.gmra.mrb[0].mxu0 %v1420
    %v1488 = vpop.f32.mrb[0].mxu0
    %v1489 = vadd.f32 0.0, %v1488
    %v1490 = vpop.f32.mrb[0].mxu0
    %1491 = vdwg.mxu0
    %1492 = vrot.lane.b32.xlu0 %v1237, 64
    %v1493 = vpop.permute.xlu0 %1492
    %v1496 = vsel %vm341, %v1415, 0
    %1498 = vmatprep.subr.mxu0 0.0
    %1499 = vmatpush1.msra.mxu0 %v1493
    %1500 = vmatprep.subr.mxu0 0.0
    %1501 = vmatpush1.msra.mxu0 0.0
    %1502 = vmatprep.subr.mxu0 0.0
    %1503 = vmatpush1.msra.mxu0 0.0
    %1504 = vmatprep.subr.mxu0 0.0
    %1505 = vmatpush1.msra.mxu0 0.0
    %1506 = vmatprep.subr.mxu0 0.0
    %1507 = vmatpush1.msra.mxu0 0.0
    %1508 = vmatprep.subr.mxu0 0.0
    %1509 = vmatpush1.msra.mxu0 0.0
    %1510 = vmatprep.subr.mxu0 0.0
    %1511 = vmatpush1.msra.mxu0 0.0
    %1512 = vmatprep.subr.mxu0 0.0
    %1513 = vmatpush1.msra.mxu0 0.0
    %1514 = vmatprep.subr.mxu0 0.0
    %1515 = vmatpush1.msra.mxu0 0.0
    %1516 = vmatprep.subr.mxu0 0.0
    %1517 = vmatpush1.msra.mxu0 0.0
    %1518 = vmatprep.subr.mxu0 0.0
    %1519 = vmatpush1.msra.mxu0 0.0
    %1520 = vmatprep.subr.mxu0 0.0
    %1521 = vmatpush1.msra.mxu0 0.0
    %1522 = vmatprep.subr.mxu0 0.0
    %1523 = vmatpush1.msra.mxu0 0.0
    %1524 = vmatprep.subr.mxu0 0.0
    %1525 = vmatpush1.msra.mxu0 0.0
    %1526 = vmatprep.subr.mxu0 0.0
    %1527 = vmatpush1.msra.mxu0 0.0
    %1528 = vmatprep.subr.mxu0 0.0
    %1529 = vmatpush1.msra.mxu0 0.0
    %1530 = vmatprep.subr.mxu0 0.0
    %1531 = vmatpush1.msra.mxu0 0.0
    %1532 = vmatprep.subr.mxu0 0.0
    %1533 = vmatpush1.msra.mxu0 0.0
    %1534 = vmatprep.subr.mxu0 0.0
    %1535 = vmatpush1.msra.mxu0 0.0
    %1536 = vmatprep.subr.mxu0 0.0
    %1537 = vmatpush1.msra.mxu0 0.0
    %1538 = vmatprep.subr.mxu0 0.0
    %1539 = vmatpush1.msra.mxu0 0.0
    %1540 = vmatprep.subr.mxu0 0.0
    %1541 = vmatpush1.msra.mxu0 0.0
    %1542 = vmatprep.subr.mxu0 0.0
    %1543 = vmatpush1.msra.mxu0 0.0
    %1544 = vmatprep.subr.mxu0 0.0
    %1545 = vmatpush1.msra.mxu0 0.0
    %1546 = vmatprep.subr.mxu0 0.0
    %1547 = vmatpush1.msra.mxu0 0.0
    %1548 = vmatprep.subr.mxu0 0.0
    %1549 = vmatpush1.msra.mxu0 0.0
    %1550 = vmatprep.subr.mxu0 0.0
    %1551 = vmatpush1.msra.mxu0 0.0
    %1552 = vmatprep.subr.mxu0 0.0
    %1553 = vmatpush1.msra.mxu0 0.0
    %1554 = vmatprep.subr.mxu0 0.0
    %1555 = vmatpush1.msra.mxu0 0.0
    %1556 = vmatprep.subr.mxu0 0.0
    %1557 = vmatpush1.msra.mxu0 0.0
    %1558 = vmatprep.subr.mxu0 0.0
    %1559 = vmatpush1.msra.mxu0 0.0
    %1560 = vmatprep.subr.mxu0 0.0
    %1561 = vmatpush1.msra.mxu0 0.0
    %1562 = vmatprep.mubr.f32.mxu0 0.0
    %1563 = vmatmul.mubr.f32.gmra.mrb[0].mxu0 %v1496
    %v1564 = vpop.f32.mrb[0].mxu0
    %v1565 = vadd.f32 0.0, %v1564
    %v1566 = vpop.f32.mrb[0].mxu0
    %1567 = vdwg.mxu0
    %1568 = vrot.lane.b32.xlu0 %v1234, 112
    %v1569 = vpop.permute.xlu0 %1568
    %1570 = vrot.lane.b32.xlu0 %v1234, 80
    %v1571 = vpop.permute.xlu0 %1570
    %v1572 = vsel %vm189, %v1569, 0
    %v1574 = vsel %vm189, %v1571, 0
    %1576 = vmatprep.subr.mxu0 0.0
    %1577 = vmatpush1.xpose.msra.mxu0 %v1574
    %1578 = vmatprep.subr.mxu0 0.0
    %1579 = vmatpush1.xpose.msra.mxu0 0.0
    %1580 = vmatprep.subr.mxu0 0.0
    %1581 = vmatpush1.xpose.msra.mxu0 0.0
    %1582 = vmatprep.subr.mxu0 0.0
    %1583 = vmatpush1.xpose.msra.mxu0 0.0
    %1584 = vmatprep.subr.mxu0 0.0
    %1585 = vmatpush1.xpose.msra.mxu0 0.0
    %1586 = vmatprep.subr.mxu0 0.0
    %1587 = vmatpush1.xpose.msra.mxu0 0.0
    %1588 = vmatprep.subr.mxu0 0.0
    %1589 = vmatpush1.xpose.msra.mxu0 0.0
    %1590 = vmatprep.subr.mxu0 0.0
    %1591 = vmatpush1.xpose.msra.mxu0 0.0
    %1592 = vmatprep.subr.mxu0 0.0
    %1593 = vmatpush1.xpose.msra.mxu0 0.0
    %1594 = vmatprep.subr.mxu0 0.0
    %1595 = vmatpush1.xpose.msra.mxu0 0.0
    %1596 = vmatprep.subr.mxu0 0.0
    %1597 = vmatpush1.xpose.msra.mxu0 0.0
    %1598 = vmatprep.subr.mxu0 0.0
    %1599 = vmatpush1.xpose.msra.mxu0 0.0
    %1600 = vmatprep.subr.mxu0 0.0
    %1601 = vmatpush1.xpose.msra.mxu0 0.0
    %1602 = vmatprep.subr.mxu0 0.0
    %1603 = vmatpush1.xpose.msra.mxu0 0.0
    %1604 = vmatprep.subr.mxu0 0.0
    %1605 = vmatpush1.xpose.msra.mxu0 0.0
    %1606 = vmatprep.subr.mxu0 0.0
    %1607 = vmatpush1.xpose.msra.mxu0 0.0
    %1608 = vmatprep.subr.mxu0 0.0
    %1609 = vmatpush1.xpose.msra.mxu0 0.0
    %1610 = vmatprep.subr.mxu0 0.0
    %1611 = vmatpush1.xpose.msra.mxu0 0.0
    %1612 = vmatprep.subr.mxu0 0.0
    %1613 = vmatpush1.xpose.msra.mxu0 0.0
    %1614 = vmatprep.subr.mxu0 0.0
    %1615 = vmatpush1.xpose.msra.mxu0 0.0
    %1616 = vmatprep.subr.mxu0 0.0
    %1617 = vmatpush1.xpose.msra.mxu0 0.0
    %1618 = vmatprep.subr.mxu0 0.0
    %1619 = vmatpush1.xpose.msra.mxu0 0.0
    %1620 = vmatprep.subr.mxu0 0.0
    %1621 = vmatpush1.xpose.msra.mxu0 0.0
    %1622 = vmatprep.subr.mxu0 0.0
    %1623 = vmatpush1.xpose.msra.mxu0 0.0
    %1624 = vmatprep.subr.mxu0 0.0
    %1625 = vmatpush1.xpose.msra.mxu0 0.0
    %1626 = vmatprep.subr.mxu0 0.0
    %1627 = vmatpush1.xpose.msra.mxu0 0.0
    %1628 = vmatprep.subr.mxu0 0.0
    %1629 = vmatpush1.xpose.msra.mxu0 0.0
    %1630 = vmatprep.subr.mxu0 0.0
    %1631 = vmatpush1.xpose.msra.mxu0 0.0
    %1632 = vmatprep.subr.mxu0 0.0
    %1633 = vmatpush1.xpose.msra.mxu0 0.0
    %1634 = vmatprep.subr.mxu0 0.0
    %1635 = vmatpush1.xpose.msra.mxu0 0.0
    %1636 = vmatprep.subr.mxu0 0.0
    %1637 = vmatpush1.xpose.msra.mxu0 0.0
    %1638 = vmatprep.subr.mxu0 0.0
    %1639 = vmatpush1.xpose.msra.mxu0 0.0
    %1640 = vmatprep.mubr.f32.mxu0 0.0
    %1641 = vmatmul.mubr.f32.gmra.mrb[0].mxu0 %v1572
    %v1642 = vpop.f32.mrb[0].mxu0
    %v1643 = vadd.f32 %v179, %v1642
    %v1644 = vpop.f32.mrb[0].mxu0
    %1645 = vdwg.mxu0
    %1646 = vrot.lane.b32.xlu0 %v1237, 112
    %v1647 = vpop.permute.xlu0 %1646
    %1648 = vrot.lane.b32.xlu0 %v1237, 80
    %v1649 = vpop.permute.xlu0 %1648
    %v1650 = vsel %vm189, %v1647, 0
    %v1652 = vsel %vm189, %v1649, 0
    %1654 = vmatprep.subr.mxu0 0.0
    %1655 = vmatpush1.xpose.msra.mxu0 %v1652
    %1656 = vmatprep.subr.mxu0 0.0
    %1657 = vmatpush1.xpose.msra.mxu0 0.0
    %1658 = vmatprep.subr.mxu0 0.0
    %1659 = vmatpush1.xpose.msra.mxu0 0.0
    %1660 = vmatprep.subr.mxu0 0.0
    %1661 = vmatpush1.xpose.msra.mxu0 0.0
    %1662 = vmatprep.subr.mxu0 0.0
    %1663 = vmatpush1.xpose.msra.mxu0 0.0
    %1664 = vmatprep.subr.mxu0 0.0
    %1665 = vmatpush1.xpose.msra.mxu0 0.0
    %1666 = vmatprep.subr.mxu0 0.0
    %1667 = vmatpush1.xpose.msra.mxu0 0.0
    %1668 = vmatprep.subr.mxu0 0.0
    %1669 = vmatpush1.xpose.msra.mxu0 0.0
    %1670 = vmatprep.subr.mxu0 0.0
    %1671 = vmatpush1.xpose.msra.mxu0 0.0
    %1672 = vmatprep.subr.mxu0 0.0
    %1673 = vmatpush1.xpose.msra.mxu0 0.0
    %1674 = vmatprep.subr.mxu0 0.0
    %1675 = vmatpush1.xpose.msra.mxu0 0.0
    %1676 = vmatprep.subr.mxu0 0.0
    %1677 = vmatpush1.xpose.msra.mxu0 0.0
    %1678 = vmatprep.subr.mxu0 0.0
    %1679 = vmatpush1.xpose.msra.mxu0 0.0
    %1680 = vmatprep.subr.mxu0 0.0
    %1681 = vmatpush1.xpose.msra.mxu0 0.0
    %1682 = vmatprep.subr.mxu0 0.0
    %1683 = vmatpush1.xpose.msra.mxu0 0.0
    %1684 = vmatprep.subr.mxu0 0.0
    %1685 = vmatpush1.xpose.msra.mxu0 0.0
    %1686 = vmatprep.subr.mxu0 0.0
    %1687 = vmatpush1.xpose.msra.mxu0 0.0
    %1688 = vmatprep.subr.mxu0 0.0
    %1689 = vmatpush1.xpose.msra.mxu0 0.0
    %1690 = vmatprep.subr.mxu0 0.0
    %1691 = vmatpush1.xpose.msra.mxu0 0.0
    %1692 = vmatprep.subr.mxu0 0.0
    %1693 = vmatpush1.xpose.msra.mxu0 0.0
    %1694 = vmatprep.subr.mxu0 0.0
    %1695 = vmatpush1.xpose.msra.mxu0 0.0
    %1696 = vmatprep.subr.mxu0 0.0
    %1697 = vmatpush1.xpose.msra.mxu0 0.0
    %1698 = vmatprep.subr.mxu0 0.0
    %1699 = vmatpush1.xpose.msra.mxu0 0.0
    %1700 = vmatprep.subr.mxu0 0.0
    %1701 = vmatpush1.xpose.msra.mxu0 0.0
    %1702 = vmatprep.subr.mxu0 0.0
    %1703 = vmatpush1.xpose.msra.mxu0 0.0
    %1704 = vmatprep.subr.mxu0 0.0
    %1705 = vmatpush1.xpose.msra.mxu0 0.0
    %1706 = vmatprep.subr.mxu0 0.0
    %1707 = vmatpush1.xpose.msra.mxu0 0.0
    %1708 = vmatprep.subr.mxu0 0.0
    %1709 = vmatpush1.xpose.msra.mxu0 0.0
    %1710 = vmatprep.subr.mxu0 0.0
    %1711 = vmatpush1.xpose.msra.mxu0 0.0
    %1712 = vmatprep.subr.mxu0 0.0
    %1713 = vmatpush1.xpose.msra.mxu0 0.0
    %1714 = vmatprep.subr.mxu0 0.0
    %1715 = vmatpush1.xpose.msra.mxu0 0.0
    %1716 = vmatprep.subr.mxu0 0.0
    %1717 = vmatpush1.xpose.msra.mxu0 0.0
    %1718 = vmatprep.mubr.f32.mxu0 0.0
    %1719 = vmatmul.mubr.f32.gmra.mrb[0].mxu0 %v1650
    %v1720 = vpop.f32.mrb[0].mxu0
    %v1721 = vadd.f32 %v183, %v1720
    %v1722 = vpop.f32.mrb[0].mxu0
    %1723 = vdwg.mxu0
    %v1724 = vsel %vm341, %v1643, -inf
    %1725 = vmax.xlane.f32.xlu0 %v1724
    %v1726 = vpop.xlane.xlu0 %1725
    %v1727 = vsel %vm341, %v1721, -inf
    %1728 = vmax.xlane.f32.xlu0 %v1727
    %v1729 = vpop.xlane.xlu0 %1728
    %v1730 = vsub.f32 %v1643, %v1726
    %v1731 = vsub.f32 %v1721, %v1729
    %v1732 = vmul.f32 %v1730, 1.442695
    %v1733 = vpow.pop %v1732
    %v1734 = vmul.f32 %v1731, 1.442695
    %v1735 = vpow.pop %v1734
    %v1736 = vsel %vm341, %v1733, 0.0
    %1737 = vadd.xlane.f32.xlu0 %v1736
    %v1738 = vpop.xlane.xlu0 %1737
    %v1739 = vsel %vm341, %v1735, 0.0
    %1740 = vadd.xlane.f32.xlu0 %v1739
    %v1741 = vpop.xlane.xlu0 %1740
    %v1742 = vrcp.pop %v1738
    %v1743 = vrcp.pop %v1741
    %v1744 = vmul.f32 %v1733, %v1742
    %v1745 = vmul.f32 %v1735, %v1743
    %1746 = vrot.lane.b32.xlu0 %v1234, 48
    %v1747 = vpop.permute.xlu0 %1746
    %v1750 = vsel %vm341, %v1744, 0
    %1752 = vmatprep.subr.mxu0 0.0
    %1753 = vmatpush1.msra.mxu0 %v1747
    %1754 = vmatprep.subr.mxu0 0.0
    %1755 = vmatpush1.msra.mxu0 0.0
    %1756 = vmatprep.subr.mxu0 0.0
    %1757 = vmatpush1.msra.mxu0 0.0
    %1758 = vmatprep.subr.mxu0 0.0
    %1759 = vmatpush1.msra.mxu0 0.0
    %1760 = vmatprep.subr.mxu0 0.0
    %1761 = vmatpush1.msra.mxu0 0.0
    %1762 = vmatprep.subr.mxu0 0.0
    %1763 = vmatpush1.msra.mxu0 0.0
    %1764 = vmatprep.subr.mxu0 0.0
    %1765 = vmatpush1.msra.mxu0 0.0
    %1766 = vmatprep.subr.mxu0 0.0
    %1767 = vmatpush1.msra.mxu0 0.0
    %1768 = vmatprep.subr.mxu0 0.0
    %1769 = vmatpush1.msra.mxu0 0.0
    %1770 = vmatprep.subr.mxu0 0.0
    %1771 = vmatpush1.msra.mxu0 0.0
    %1772 = vmatprep.subr.mxu0 0.0
    %1773 = vmatpush1.msra.mxu0 0.0
    %1774 = vmatprep.subr.mxu0 0.0
    %1775 = vmatpush1.msra.mxu0 0.0
    %1776 = vmatprep.subr.mxu0 0.0
    %1777 = vmatpush1.msra.mxu0 0.0
    %1778 = vmatprep.subr.mxu0 0.0
    %1779 = vmatpush1.msra.mxu0 0.0
    %1780 = vmatprep.subr.mxu0 0.0
    %1781 = vmatpush1.msra.mxu0 0.0
    %1782 = vmatprep.subr.mxu0 0.0
    %1783 = vmatpush1.msra.mxu0 0.0
    %1784 = vmatprep.subr.mxu0 0.0
    %1785 = vmatpush1.msra.mxu0 0.0
    %1786 = vmatprep.subr.mxu0 0.0
    %1787 = vmatpush1.msra.mxu0 0.0
    %1788 = vmatprep.subr.mxu0 0.0
    %1789 = vmatpush1.msra.mxu0 0.0
    %1790 = vmatprep.subr.mxu0 0.0
    %1791 = vmatpush1.msra.mxu0 0.0
    %1792 = vmatprep.subr.mxu0 0.0
    %1793 = vmatpush1.msra.mxu0 0.0
    %1794 = vmatprep.subr.mxu0 0.0
    %1795 = vmatpush1.msra.mxu0 0.0
    %1796 = vmatprep.subr.mxu0 0.0
    %1797 = vmatpush1.msra.mxu0 0.0
    %1798 = vmatprep.subr.mxu0 0.0
    %1799 = vmatpush1.msra.mxu0 0.0
    %1800 = vmatprep.subr.mxu0 0.0
    %1801 = vmatpush1.msra.mxu0 0.0
    %1802 = vmatprep.subr.mxu0 0.0
    %1803 = vmatpush1.msra.mxu0 0.0
    %1804 = vmatprep.subr.mxu0 0.0
    %1805 = vmatpush1.msra.mxu0 0.0
    %1806 = vmatprep.subr.mxu0 0.0
    %1807 = vmatpush1.msra.mxu0 0.0
    %1808 = vmatprep.subr.mxu0 0.0
    %1809 = vmatpush1.msra.mxu0 0.0
    %1810 = vmatprep.subr.mxu0 0.0
    %1811 = vmatpush1.msra.mxu0 0.0
    %1812 = vmatprep.subr.mxu0 0.0
    %1813 = vmatpush1.msra.mxu0 0.0
    %1814 = vmatprep.subr.mxu0 0.0
    %1815 = vmatpush1.msra.mxu0 0.0
    %1816 = vmatprep.mubr.f32.mxu0 0.0
    %1817 = vmatmul.mubr.f32.gmra.mrb[0].mxu0 %v1750
    %v1818 = vpop.f32.mrb[0].mxu0
    %v1819 = vadd.f32 0.0, %v1818
    %v1820 = vpop.f32.mrb[0].mxu0
    %1821 = vdwg.mxu0
    %1822 = vrot.lane.b32.xlu0 %v1237, 48
    %v1823 = vpop.permute.xlu0 %1822
    %v1826 = vsel %vm341, %v1745, 0
    %1828 = vmatprep.subr.mxu0 0.0
    %1829 = vmatpush1.msra.mxu0 %v1823
    %1830 = vmatprep.subr.mxu0 0.0
    %1831 = vmatpush1.msra.mxu0 0.0
    %1832 = vmatprep.subr.mxu0 0.0
    %1833 = vmatpush1.msra.mxu0 0.0
    %1834 = vmatprep.subr.mxu0 0.0
    %1835 = vmatpush1.msra.mxu0 0.0
    %1836 = vmatprep.subr.mxu0 0.0
    %1837 = vmatpush1.msra.mxu0 0.0
    %1838 = vmatprep.subr.mxu0 0.0
    %1839 = vmatpush1.msra.mxu0 0.0
    %1840 = vmatprep.subr.mxu0 0.0
    %1841 = vmatpush1.msra.mxu0 0.0
    %1842 = vmatprep.subr.mxu0 0.0
    %1843 = vmatpush1.msra.mxu0 0.0
    %1844 = vmatprep.subr.mxu0 0.0
    %1845 = vmatpush1.msra.mxu0 0.0
    %1846 = vmatprep.subr.mxu0 0.0
    %1847 = vmatpush1.msra.mxu0 0.0
    %1848 = vmatprep.subr.mxu0 0.0
    %1849 = vmatpush1.msra.mxu0 0.0
    %1850 = vmatprep.subr.mxu0 0.0
    %1851 = vmatpush1.msra.mxu0 0.0
    %1852 = vmatprep.subr.mxu0 0.0
    %1853 = vmatpush1.msra.mxu0 0.0
    %1854 = vmatprep.subr.mxu0 0.0
    %1855 = vmatpush1.msra.mxu0 0.0
    %1856 = vmatprep.subr.mxu0 0.0
    %1857 = vmatpush1.msra.mxu0 0.0
    %1858 = vmatprep.subr.mxu0 0.0
    %1859 = vmatpush1.msra.mxu0 0.0
    %1860 = vmatprep.subr.mxu0 0.0
    %1861 = vmatpush1.msra.mxu0 0.0
    %1862 = vmatprep.subr.mxu0 0.0
    %1863 = vmatpush1.msra.mxu0 0.0
    %1864 = vmatprep.subr.mxu0 0.0
    %1865 = vmatpush1.msra.mxu0 0.0
    %1866 = vmatprep.subr.mxu0 0.0
    %1867 = vmatpush1.msra.mxu0 0.0
    %1868 = vmatprep.subr.mxu0 0.0
    %1869 = vmatpush1.msra.mxu0 0.0
    %1870 = vmatprep.subr.mxu0 0.0
    %1871 = vmatpush1.msra.mxu0 0.0
    %1872 = vmatprep.subr.mxu0 0.0
    %1873 = vmatpush1.msra.mxu0 0.0
    %1874 = vmatprep.subr.mxu0 0.0
    %1875 = vmatpush1.msra.mxu0 0.0
    %1876 = vmatprep.subr.mxu0 0.0
    %1877 = vmatpush1.msra.mxu0 0.0
    %1878 = vmatprep.subr.mxu0 0.0
    %1879 = vmatpush1.msra.mxu0 0.0
    %1880 = vmatprep.subr.mxu0 0.0
    %1881 = vmatpush1.msra.mxu0 0.0
    %1882 = vmatprep.subr.mxu0 0.0
    %1883 = vmatpush1.msra.mxu0 0.0
    %1884 = vmatprep.subr.mxu0 0.0
    %1885 = vmatpush1.msra.mxu0 0.0
    %1886 = vmatprep.subr.mxu0 0.0
    %1887 = vmatpush1.msra.mxu0 0.0
    %1888 = vmatprep.subr.mxu0 0.0
    %1889 = vmatpush1.msra.mxu0 0.0
    %1890 = vmatprep.subr.mxu0 0.0
    %1891 = vmatpush1.msra.mxu0 0.0
    %1892 = vmatprep.mubr.f32.mxu0 0.0
    %1893 = vmatmul.mubr.f32.gmra.mrb[0].mxu0 %v1826
    %v1894 = vpop.f32.mrb[0].mxu0
    %v1895 = vadd.f32 0.0, %v1894
    %v1896 = vpop.f32.mrb[0].mxu0
    %1897 = vdwg.mxu0
    %1900 = vrot.lane.b32.xlu0 %v1819, 16
    %v1901 = vpop.permute.xlu0 %1900
    %1902 = vrot.lane.b32.xlu0 %v1895, 16
    %v1903 = vpop.permute.xlu0 %1902
    %v1906 = vsel %vm189, %v1489, %v1901
    %v1907 = vsel %vm189, %v1565, %v1903
    %s1908 = scalar_lea.vmem %s5, 16
    %v1909 = vld [vmem:[%s1908] sm:$0xf]
    %v1910 = vld [vmem:[%s1908 + $0x4] sm:$0xf]
    %v1911 = vld [vmem:[%s1908 + $0x8] sm:$0xf]
    %v1912 = vld [vmem:[%s1908 + $0xc] sm:$0xf]
    %v1913 = vpack.c.bf16 %v1907, %v1906
    %v1914 = vld [vmem:[%s8 + $0xb] sm:$0x1]
    %v1915 = vlaneseq
    %v1916 = vshrl.u32 %v1915, 7
    %v1917 = vsub.s32 0, %v1916
    %v1918 = vrot.slane %v1914, %v1917
    %v1923 = vunpack.c.l.b16 %v1909
    %v1924 = vunpack.c.l.b16 %v1910
    %v1925 = vunpack.c.l.b16 %v1911
    %v1926 = vunpack.c.l.b16 %v1912
    %v1927 = vpack.c.b16 %v1924, %v1923
    %v1928 = vpack.c.b16 %v1926, %v1925
    %v1932 = vsel %vm44, %v1913, 0
    %1934 = vmatprep.subr.bf16.mxu0 0
    %1935 = vmatpush1.bf16.msra.mxu0 %v1927
    %1936 = vmatprep.subr.bf16.mxu0 0
    %1937 = vmatpush1.bf16.msra.mxu0 %v1928
    %1938 = vmatprep.subr.bf16.mxu0 0
    %1939 = vmatpush1.bf16.msra.mxu0 0
    %1940 = vmatprep.subr.bf16.mxu0 0
    %1941 = vmatpush1.bf16.msra.mxu0 0
    %1942 = vmatprep.subr.bf16.mxu0 0
    %1943 = vmatpush1.bf16.msra.mxu0 0
    %1944 = vmatprep.subr.bf16.mxu0 0
    %1945 = vmatpush1.bf16.msra.mxu0 0
    %1946 = vmatprep.subr.bf16.mxu0 0
    %1947 = vmatpush1.bf16.msra.mxu0 0
    %1948 = vmatprep.subr.bf16.mxu0 0
    %1949 = vmatpush1.bf16.msra.mxu0 0
    %1950 = vmatprep.subr.bf16.mxu0 0
    %1951 = vmatpush1.bf16.msra.mxu0 0
    %1952 = vmatprep.subr.bf16.mxu0 0
    %1953 = vmatpush1.bf16.msra.mxu0 0
    %1954 = vmatprep.subr.bf16.mxu0 0
    %1955 = vmatpush1.bf16.msra.mxu0 0
    %1956 = vmatprep.subr.bf16.mxu0 0
    %1957 = vmatpush1.bf16.msra.mxu0 0
    %1958 = vmatprep.subr.bf16.mxu0 0
    %1959 = vmatpush1.bf16.msra.mxu0 0
    %1960 = vmatprep.subr.bf16.mxu0 0
    %1961 = vmatpush1.bf16.msra.mxu0 0
    %1962 = vmatprep.subr.bf16.mxu0 0
    %1963 = vmatpush1.bf16.msra.mxu0 0
    %1964 = vmatprep.subr.bf16.mxu0 0
    %1965 = vmatpush1.bf16.msra.mxu0 0
    %1966 = vmatprep.mubr.bf16.mxu0 0
    %1967 = vmatmul.mubr.bf16.gmra.mrb[0].mxu0 %v1932
    %v1968 = vpop.f32.mrb[0].mxu0
    %v1969 = vadd.f32 %v1918, %v1968
    %v1970 = vpop.f32.mrb[0].mxu0
    %v1971 = vpop.f32.mrb[0].mxu0
    %v1972 = vadd.f32 %v1918, %v1971
    %v1973 = vpop.f32.mrb[0].mxu0
    %1974 = vdwg.mxu0
    %v1975 = vadd.f32 %v1969, %v1171
    %v1976 = vadd.f32 %v1972, %v1172
    %v1977 = vld [vmem:[%s8 + $0xc] sm:$0x1]
    %v1978 = vld [vmem:[%s8 + $0xd] sm:$0x1]
    %v1979 = vsel %vm44, %v1975, 0.0
    %1980 = vadd.xlane.f32.xlu0 %v1979
    %v1981 = vpop.xlane.xlu0 %1980
    %v1982 = vsel %vm44, %v1976, 0.0
    %1983 = vadd.xlane.f32.xlu0 %v1982
    %v1984 = vpop.xlane.xlu0 %1983
    %v1985 = vmul.f32 %v1981, %v51
    %v1986 = vmul.f32 %v1984, %v51
    %v1987 = vsub.f32 %v1975, %v1985
    %v1988 = vsub.f32 %v1976, %v1986
    %v1989 = vmul.f32 %v1987, %v1987
    %v1990 = vmul.f32 %v1988, %v1988
    %v1991 = vsel %vm44, %v1989, 0.0
    %1992 = vadd.xlane.f32.xlu0 %v1991
    %v1993 = vpop.xlane.xlu0 %1992
    %v1994 = vsel %vm44, %v1990, 0.0
    %1995 = vadd.xlane.f32.xlu0 %v1994
    %v1996 = vpop.xlane.xlu0 %1995
    %v1997 = vmul.f32 %v1993, %v51
    %v1998 = vmul.f32 %v1996, %v51
    %v1999 = vadd.f32 %v1997, 1e-12
    %v2000 = vadd.f32 %v1998, 1e-12
    %v2001 = vrsqrt.pop %v1999
    %v2002 = vrsqrt.pop %v2000
    %v2003 = vmul.f32 %v1987, %v2001
    %v2004 = vmul.f32 %v1988, %v2002
    %v2005 = vlaneseq
    %v2006 = vshrl.u32 %v2005, 7
    %v2007 = vsub.s32 0, %v2006
    %v2008 = vrot.slane %v1977, %v2007
    %v2009 = vmul.f32 %v2003, %v2008
    %v2010 = vmul.f32 %v2004, %v2008
    %v2011 = vlaneseq
    %v2012 = vshrl.u32 %v2011, 7
    %v2013 = vsub.s32 0, %v2012
    %v2014 = vrot.slane %v1978, %v2013
    %v2015 = vadd.f32 %v2009, %v2014
    %v2016 = vadd.f32 %v2010, %v2014
    %s2017 = scalar_lea.vmem %s6, 16
    %v2018 = vld [vmem:[%s2017] sm:$0xf]
    %v2019 = vld [vmem:[%s2017 + $0x4] sm:$0xf]
    %v2020 = vld [vmem:[%s2017 + $0x8] sm:$0xf]
    %v2021 = vld [vmem:[%s2017 + $0xc] sm:$0xf]
    %v2022 = vpack.c.bf16 %v2016, %v2015
    %v2023 = vld [vmem:[%s8 + $0xe] sm:$0x1]
    %v2024 = vlaneseq
    %v2025 = vshrl.u32 %v2024, 7
    %v2026 = vsub.s32 0, %v2025
    %v2027 = vrot.slane %v2023, %v2026
    %v2032 = vunpack.c.l.b16 %v2018
    %v2033 = vunpack.c.l.b16 %v2019
    %v2034 = vunpack.c.l.b16 %v2020
    %v2035 = vunpack.c.l.b16 %v2021
    %v2036 = vpack.c.b16 %v2033, %v2032
    %v2037 = vpack.c.b16 %v2035, %v2034
    %v2041 = vsel %vm44, %v2022, 0
    %2043 = vmatprep.subr.bf16.mxu0 0
    %2044 = vmatpush1.bf16.msra.mxu0 %v2036
    %2045 = vmatprep.subr.bf16.mxu0 0
    %2046 = vmatpush1.bf16.msra.mxu0 %v2037
    %2047 = vmatprep.subr.bf16.mxu0 0
    %2048 = vmatpush1.bf16.msra.mxu0 0
    %2049 = vmatprep.subr.bf16.mxu0 0
    %2050 = vmatpush1.bf16.msra.mxu0 0
    %2051 = vmatprep.subr.bf16.mxu0 0
    %2052 = vmatpush1.bf16.msra.mxu0 0
    %2053 = vmatprep.subr.bf16.mxu0 0
    %2054 = vmatpush1.bf16.msra.mxu0 0
    %2055 = vmatprep.subr.bf16.mxu0 0
    %2056 = vmatpush1.bf16.msra.mxu0 0
    %2057 = vmatprep.subr.bf16.mxu0 0
    %2058 = vmatpush1.bf16.msra.mxu0 0
    %2059 = vmatprep.subr.bf16.mxu0 0
    %2060 = vmatpush1.bf16.msra.mxu0 0
    %2061 = vmatprep.subr.bf16.mxu0 0
    %2062 = vmatpush1.bf16.msra.mxu0 0
    %2063 = vmatprep.subr.bf16.mxu0 0
    %2064 = vmatpush1.bf16.msra.mxu0 0
    %2065 = vmatprep.subr.bf16.mxu0 0
    %2066 = vmatpush1.bf16.msra.mxu0 0
    %2067 = vmatprep.subr.bf16.mxu0 0
    %2068 = vmatpush1.bf16.msra.mxu0 0
    %2069 = vmatprep.subr.bf16.mxu0 0
    %2070 = vmatpush1.bf16.msra.mxu0 0
    %2071 = vmatprep.subr.bf16.mxu0 0
    %2072 = vmatpush1.bf16.msra.mxu0 0
    %2073 = vmatprep.subr.bf16.mxu0 0
    %2074 = vmatpush1.bf16.msra.mxu0 0
    %2075 = vmatprep.mubr.bf16.mxu0 0
    %2076 = vmatmul.mubr.bf16.gmra.mrb[0].mxu0 %v2041
    %v2077 = vpop.f32.mrb[0].mxu0
    %v2078 = vadd.f32 %v2027, %v2077
    %v2079 = vpop.f32.mrb[0].mxu0
    %v2080 = vpop.f32.mrb[0].mxu0
    %v2081 = vadd.f32 %v2027, %v2080
    %v2082 = vpop.f32.mrb[0].mxu0
    %2083 = vdwg.mxu0
    %v2084 = vmul.f32 %v2078, %v2078
    %v2085 = vmul.f32 %v2081, %v2081
    %v2086 = vmul.f32 %v2078, %v2084
    %v2087 = vmul.f32 %v2081, %v2085
    %v2088 = vmul.f32 %v2086, 0.044715
    %v2089 = vmul.f32 %v2087, 0.044715
    %v2090 = vadd.f32 %v2078, %v2088
    %v2091 = vadd.f32 %v2081, %v2089
    %v2092 = vmul.f32 %v2090, 0.7978846
    %v2093 = vmul.f32 %v2091, 0.7978846
    %v2094 = vtanh.pop %v2092
    %v2095 = vtanh.pop %v2093
    %v2096 = vadd.f32 %v2094, 1.0
    %v2097 = vadd.f32 %v2095, 1.0
    %v2098 = vmul.f32 %v2096, 0.5
    %v2099 = vmul.f32 %v2097, 0.5
    %v2100 = vmul.f32 %v2078, %v2098
    %v2101 = vmul.f32 %v2081, %v2099
    %s2102 = scalar_lea.vmem %s7, 32
    %v2103 = vld [vmem:[%s2102] sm:$0xf]
    %v2104 = vld [vmem:[%s2102 + $0x4] sm:$0xf]
    %v2105 = vld [vmem:[%s2102 + $0x8] sm:$0xf]
    %v2106 = vld [vmem:[%s2102 + $0xc] sm:$0xf]
    %v2107 = vld [vmem:[%s2102 + $0x10] sm:$0xf]
    %v2108 = vld [vmem:[%s2102 + $0x14] sm:$0xf]
    %v2109 = vld [vmem:[%s2102 + $0x18] sm:$0xf]
    %v2110 = vld [vmem:[%s2102 + $0x1c] sm:$0xf]
    %v2111 = vpack.c.bf16 %v2101, %v2100
    %v2112 = vld [vmem:[%s8 + $0xf] sm:$0x1]
    %v2113 = vlaneseq
    %v2114 = vshrl.u32 %v2113, 7
    %v2115 = vsub.s32 0, %v2114
    %v2116 = vrot.slane %v2112, %v2115
    %v2125 = vunpack.c.l.b16 %v2103
    %v2126 = vunpack.c.l.b16 %v2104
    %v2127 = vunpack.c.l.b16 %v2105
    %v2128 = vunpack.c.l.b16 %v2106
    %v2129 = vunpack.c.l.b16 %v2107
    %v2130 = vunpack.c.l.b16 %v2108
    %v2131 = vunpack.c.l.b16 %v2109
    %v2132 = vunpack.c.l.b16 %v2110
    %v2133 = vpack.c.b16 %v2126, %v2125
    %v2134 = vpack.c.b16 %v2128, %v2127
    %v2135 = vpack.c.b16 %v2130, %v2129
    %v2136 = vpack.c.b16 %v2132, %v2131
    %v2142 = vsel %vm1086, %v2111, 0
    %2144 = vmatprep.subr.bf16.mxu0 0
    %2145 = vmatpush1.bf16.msra.mxu0 %v2133
    %2146 = vmatprep.subr.bf16.mxu0 0
    %2147 = vmatpush1.bf16.msra.mxu0 %v2134
    %2148 = vmatprep.subr.bf16.mxu0 0
    %2149 = vmatpush1.bf16.msra.mxu0 %v2135
    %2150 = vmatprep.subr.bf16.mxu0 0
    %2151 = vmatpush1.bf16.msra.mxu0 %v2136
    %2152 = vmatprep.subr.bf16.mxu0 0
    %2153 = vmatpush1.bf16.msra.mxu0 0
    %2154 = vmatprep.subr.bf16.mxu0 0
    %2155 = vmatpush1.bf16.msra.mxu0 0
    %2156 = vmatprep.subr.bf16.mxu0 0
    %2157 = vmatpush1.bf16.msra.mxu0 0
    %2158 = vmatprep.subr.bf16.mxu0 0
    %2159 = vmatpush1.bf16.msra.mxu0 0
    %2160 = vmatprep.subr.bf16.mxu0 0
    %2161 = vmatpush1.bf16.msra.mxu0 0
    %2162 = vmatprep.subr.bf16.mxu0 0
    %2163 = vmatpush1.bf16.msra.mxu0 0
    %2164 = vmatprep.subr.bf16.mxu0 0
    %2165 = vmatpush1.bf16.msra.mxu0 0
    %2166 = vmatprep.subr.bf16.mxu0 0
    %2167 = vmatpush1.bf16.msra.mxu0 0
    %2168 = vmatprep.subr.bf16.mxu0 0
    %2169 = vmatpush1.bf16.msra.mxu0 0
    %2170 = vmatprep.subr.bf16.mxu0 0
    %2171 = vmatpush1.bf16.msra.mxu0 0
    %2172 = vmatprep.subr.bf16.mxu0 0
    %2173 = vmatpush1.bf16.msra.mxu0 0
    %2174 = vmatprep.subr.bf16.mxu0 0
    %2175 = vmatpush1.bf16.msra.mxu0 0
    %2176 = vmatprep.mubr.bf16.mxu0 0
    %2177 = vmatmul.mubr.bf16.gmra.mrb[0].mxu0 %v2142
    %v2178 = vpop.f32.mrb[0].mxu0
    %v2179 = vadd.f32 %v2116, %v2178
    %v2180 = vpop.f32.mrb[0].mxu0
    %v2181 = vpop.f32.mrb[0].mxu0
    %v2182 = vadd.f32 %v2116, %v2181
    %v2183 = vpop.f32.mrb[0].mxu0
    %2184 = vdwg.mxu0
    %v2185 = vadd.f32 %v2179, %v2015
    %v2186 = vadd.f32 %v2182, %v2016
    %v2187 = vld [vmem:[%s8 + $0x10] sm:$0x1]
    %v2188 = vld [vmem:[%s8 + $0x11] sm:$0x1]
    %v2189 = vsel %vm44, %v2185, 0.0
    %2190 = vadd.xlane.f32.xlu0 %v2189
    %v2191 = vpop.xlane.xlu0 %2190
    %v2192 = vsel %vm44, %v2186, 0.0
    %2193 = vadd.xlane.f32.xlu0 %v2192
    %v2194 = vpop.xlane.xlu0 %2193
    %v2195 = vmul.f32 %v2191, %v51
    %v2196 = vmul.f32 %v2194, %v51
    %v2197 = vsub.f32 %v2185, %v2195
    %v2198 = vsub.f32 %v2186, %v2196
    %v2199 = vmul.f32 %v2197, %v2197
    %v2200 = vmul.f32 %v2198, %v2198
    %v2201 = vsel %vm44, %v2199, 0.0
    %2202 = vadd.xlane.f32.xlu0 %v2201
    %v2203 = vpop.xlane.xlu0 %2202
    %v2204 = vsel %vm44, %v2200, 0.0
    %2205 = vadd.xlane.f32.xlu0 %v2204
    %v2206 = vpop.xlane.xlu0 %2205
    %v2207 = vmul.f32 %v2203, %v51
    %v2208 = vmul.f32 %v2206, %v51
    %v2209 = vadd.f32 %v2207, 1e-12
    %v2210 = vadd.f32 %v2208, 1e-12
    %v2211 = vrsqrt.pop %v2209
    %v2212 = vrsqrt.pop %v2210
    %v2213 = vmul.f32 %v2197, %v2211
    %v2214 = vmul.f32 %v2198, %v2212
    %v2215 = vlaneseq
    %v2216 = vshrl.u32 %v2215, 7
    %v2217 = vsub.s32 0, %v2216
    %v2218 = vrot.slane %v2187, %v2217
    %v2219 = vmul.f32 %v2213, %v2218
    %v2220 = vmul.f32 %v2214, %v2218
    %v2221 = vlaneseq
    %v2222 = vshrl.u32 %v2221, 7
    %v2223 = vsub.s32 0, %v2222
    %v2224 = vrot.slane %v2188, %v2223
    %v2225 = vadd.f32 %v2219, %v2224
    %v2226 = vadd.f32 %v2220, %v2224
    %v2227 = vld [vmem:[%s9] sm:$0xff]
    %v2228 = vld [vmem:[%s9 + $0x8] sm:$0xff]
    %v2229 = vld [vmem:[%s9 + $0x10] sm:$0xff]
    %v2230 = vld [vmem:[%s9 + $0x18] sm:$0xff]
    %v2231 = vld [vmem:[%s8 + $0x12] sm:$0x1]
    %v2232 = vlaneseq
    %v2233 = vshrl.u32 %v2232, 7
    %v2234 = vsub.s32 0, %v2233
    %v2235 = vrot.slane %v2231, %v2234
    %v2238 = vrot.slane %v2226, 7
    %vm2239 = vcmask 1041409
    %v2240 = vsel %vm2239, %v2238, %v2225
    %v2241 = vsel %vm44, %v2240, 0
    %2243 = vmatprep.subr.mxu0 0.0
    %2244 = vmatpush1.msra.mxu0 %v2227
    %2245 = vmatprep.subr.mxu0 0.0
    %2246 = vmatpush1.msra.mxu0 %v2228
    %2247 = vmatprep.subr.mxu0 0.0
    %2248 = vmatpush1.msra.mxu0 %v2229
    %2249 = vmatprep.subr.mxu0 0.0
    %2250 = vmatpush1.msra.mxu0 %v2230
    %2251 = vmatprep.subr.mxu0 0.0
    %2252 = vmatpush1.msra.mxu0 0.0
    %2253 = vmatprep.subr.mxu0 0.0
    %2254 = vmatpush1.msra.mxu0 0.0
    %2255 = vmatprep.subr.mxu0 0.0
    %2256 = vmatpush1.msra.mxu0 0.0
    %2257 = vmatprep.subr.mxu0 0.0
    %2258 = vmatpush1.msra.mxu0 0.0
    %2259 = vmatprep.subr.mxu0 0.0
    %2260 = vmatpush1.msra.mxu0 0.0
    %2261 = vmatprep.subr.mxu0 0.0
    %2262 = vmatpush1.msra.mxu0 0.0
    %2263 = vmatprep.subr.mxu0 0.0
    %2264 = vmatpush1.msra.mxu0 0.0
    %2265 = vmatprep.subr.mxu0 0.0
    %2266 = vmatpush1.msra.mxu0 0.0
    %2267 = vmatprep.subr.mxu0 0.0
    %2268 = vmatpush1.msra.mxu0 0.0
    %2269 = vmatprep.subr.mxu0 0.0
    %2270 = vmatpush1.msra.mxu0 0.0
    %2271 = vmatprep.subr.mxu0 0.0
    %2272 = vmatpush1.msra.mxu0 0.0
    %2273 = vmatprep.subr.mxu0 0.0
    %2274 = vmatpush1.msra.mxu0 0.0
    %2275 = vmatprep.subr.mxu0 0.0
    %2276 = vmatpush1.msra.mxu0 0.0
    %2277 = vmatprep.subr.mxu0 0.0
    %2278 = vmatpush1.msra.mxu0 0.0
    %2279 = vmatprep.subr.mxu0 0.0
    %2280 = vmatpush1.msra.mxu0 0.0
    %2281 = vmatprep.subr.mxu0 0.0
    %2282 = vmatpush1.msra.mxu0 0.0
    %2283 = vmatprep.subr.mxu0 0.0
    %2284 = vmatpush1.msra.mxu0 0.0
    %2285 = vmatprep.subr.mxu0 0.0
    %2286 = vmatpush1.msra.mxu0 0.0
    %2287 = vmatprep.subr.mxu0 0.0
    %2288 = vmatpush1.msra.mxu0 0.0
    %2289 = vmatprep.subr.mxu0 0.0
    %2290 = vmatpush1.msra.mxu0 0.0
    %2291 = vmatprep.subr.mxu0 0.0
    %2292 = vmatpush1.msra.mxu0 0.0
    %2293 = vmatprep.subr.mxu0 0.0
    %2294 = vmatpush1.msra.mxu0 0.0
    %2295 = vmatprep.subr.mxu0 0.0
    %2296 = vmatpush1.msra.mxu0 0.0
    %2297 = vmatprep.subr.mxu0 0.0
    %2298 = vmatpush1.msra.mxu0 0.0
    %2299 = vmatprep.subr.mxu0 0.0
    %2300 = vmatpush1.msra.mxu0 0.0
    %2301 = vmatprep.subr.mxu0 0.0
    %2302 = vmatpush1.msra.mxu0 0.0
    %2303 = vmatprep.subr.mxu0 0.0
    %2304 = vmatpush1.msra.mxu0 0.0
    %2305 = vmatprep.subr.mxu0 0.0
    %2306 = vmatpush1.msra.mxu0 0.0
    %2307 = vmatprep.mubr.f32.mxu0 0.0
    %2308 = vmatmul.mubr.f32.gmra.mrb[0].mxu0 %v2241
    %v2309 = vpop.f32.mrb[0].mxu0
    %v2310 = vadd.f32 %v2235, %v2309
    %v2311 = vpop.f32.mrb[0].mxu0
    %2312 = vdwg.mxu0
    %v2313 = vtanh.pop %v2310
    %v2314 = vld [vmem:[%s3] sm:$0x3]
    %v2315 = vld [vmem:[%s8 + $0x13] sm:$0x1]
    %2317 = vset.pattern.permute.xlu0 0
    %2318 = vperm.xlu0 %2317, %v2314
    %v2319 = vpop.permute.xlu0 %2318
    %v2321 = vlaneseq
    %v2322 = vshrl.u32 %v2321, 7
    %v2323 = vsub.s32 0, %v2322
    %v2324 = vrot.slane %v2315, %v2323
    %v2325 = vmul.f32 %v2319, %v2324
    %v2326 = vld [vmem:[%s8 + $0x14] sm:$0x1]
    %v2327 = vlaneseq
    %v2328 = vshrl.u32 %v2327, 7
    %v2329 = vsub.s32 0, %v2328
    %v2330 = vrot.slane %v2326, %v2329
    %v2331 = vadd.f32 %v2325, %v2330
    %v2332 = vld [vmem:[%s10] sm:$0xff]
    %v2333 = vld [vmem:[%s10 + $0x8] sm:$0xff]
    %v2334 = vld [vmem:[%s10 + $0x10] sm:$0xff]
    %v2335 = vld [vmem:[%s10 + $0x18] sm:$0xff]
    %v2336 = vld [vmem:[%s2] sm:$0x3]
    %v2337 = vld [vmem:[%s10 + $0x20] sm:$0xff]
    %v2338 = vld [vmem:[%s10 + $0x28] sm:$0xff]
    %v2340 = vsel %vm189, %v2336, 0
    %2342 = vmatprep.subr.mxu0 0.0
    %2343 = vmatpush1.msra.mxu0 %v2337
    %2344 = vmatprep.subr.mxu0 0.0
    %2345 = vmatpush1.msra.mxu0 %v2338
    %2346 = vmatprep.subr.mxu0 0.0
    %2347 = vmatpush1.msra.mxu0 0.0
    %2348 = vmatprep.subr.mxu0 0.0
    %2349 = vmatpush1.msra.mxu0 0.0
    %2350 = vmatprep.subr.mxu0 0.0
    %2351 = vmatpush1.msra.mxu0 0.0
    %2352 = vmatprep.subr.mxu0 0.0
    %2353 = vmatpush1.msra.mxu0 0.0
    %2354 = vmatprep.subr.mxu0 0.0
    %2355 = vmatpush1.msra.mxu0 0.0
    %2356 = vmatprep.subr.mxu0 0.0
    %2357 = vmatpush1.msra.mxu0 0.0
    %2358 = vmatprep.subr.mxu0 0.0
    %2359 = vmatpush1.msra.mxu0 0.0
    %2360 = vmatprep.subr.mxu0 0.0
    %2361 = vmatpush1.msra.mxu0 0.0
    %2362 = vmatprep.subr.mxu0 0.0
    %2363 = vmatpush1.msra.mxu0 0.0
    %2364 = vmatprep.subr.mxu0 0.0
    %2365 = vmatpush1.msra.mxu0 0.0
    %2366 = vmatprep.subr.mxu0 0.0
    %2367 = vmatpush1.msra.mxu0 0.0
    %2368 = vmatprep.subr.mxu0 0.0
    %2369 = vmatpush1.msra.mxu0 0.0
    %2370 = vmatprep.subr.mxu0 0.0
    %2371 = vmatpush1.msra.mxu0 0.0
    %2372 = vmatprep.subr.mxu0 0.0
    %2373 = vmatpush1.msra.mxu0 0.0
    %2374 = vmatprep.subr.mxu0 0.0
    %2375 = vmatpush1.msra.mxu0 0.0
    %2376 = vmatprep.subr.mxu0 0.0
    %2377 = vmatpush1.msra.mxu0 0.0
    %2378 = vmatprep.subr.mxu0 0.0
    %2379 = vmatpush1.msra.mxu0 0.0
    %2380 = vmatprep.subr.mxu0 0.0
    %2381 = vmatpush1.msra.mxu0 0.0
    %2382 = vmatprep.subr.mxu0 0.0
    %2383 = vmatpush1.msra.mxu0 0.0
    %2384 = vmatprep.subr.mxu0 0.0
    %2385 = vmatpush1.msra.mxu0 0.0
    %2386 = vmatprep.subr.mxu0 0.0
    %2387 = vmatpush1.msra.mxu0 0.0
    %2388 = vmatprep.subr.mxu0 0.0
    %2389 = vmatpush1.msra.mxu0 0.0
    %2390 = vmatprep.subr.mxu0 0.0
    %2391 = vmatpush1.msra.mxu0 0.0
    %2392 = vmatprep.subr.mxu0 0.0
    %2393 = vmatpush1.msra.mxu0 0.0
    %2394 = vmatprep.subr.mxu0 0.0
    %2395 = vmatpush1.msra.mxu0 0.0
    %2396 = vmatprep.subr.mxu0 0.0
    %2397 = vmatpush1.msra.mxu0 0.0
    %2398 = vmatprep.subr.mxu0 0.0
    %2399 = vmatpush1.msra.mxu0 0.0
    %2400 = vmatprep.subr.mxu0 0.0
    %2401 = vmatpush1.msra.mxu0 0.0
    %2402 = vmatprep.subr.mxu0 0.0
    %2403 = vmatpush1.msra.mxu0 0.0
    %2404 = vmatprep.subr.mxu0 0.0
    %2405 = vmatpush1.msra.mxu0 0.0
    %2406 = vmatprep.mubr.f32.mxu0 0.0
    %2407 = vmatmul.mubr.f32.gmra.mrb[0].mxu0 %v2340
    %v2408 = vpop.f32.mrb[0].mxu0
    %v2409 = vadd.f32 0.0, %v2408
    %v2410 = vpop.f32.mrb[0].mxu0
    %2411 = vdwg.mxu0
    %v2413 = vsel %vm44, %v2313, 0
    %2415 = vmatprep.subr.mxu0 0.0
    %2416 = vmatpush1.msra.mxu0 %v2332
    %2417 = vmatprep.subr.mxu0 0.0
    %2418 = vmatpush1.msra.mxu0 %v2333
    %2419 = vmatprep.subr.mxu0 0.0
    %2420 = vmatpush1.msra.mxu0 %v2334
    %2421 = vmatprep.subr.mxu0 0.0
    %2422 = vmatpush1.msra.mxu0 %v2335
    %2423 = vmatprep.subr.mxu0 0.0
    %2424 = vmatpush1.msra.mxu0 0.0
    %2425 = vmatprep.subr.mxu0 0.0
    %2426 = vmatpush1.msra.mxu0 0.0
    %2427 = vmatprep.subr.mxu0 0.0
    %2428 = vmatpush1.msra.mxu0 0.0
    %2429 = vmatprep.subr.mxu0 0.0
    %2430 = vmatpush1.msra.mxu0 0.0
    %2431 = vmatprep.subr.mxu0 0.0
    %2432 = vmatpush1.msra.mxu0 0.0
    %2433 = vmatprep.subr.mxu0 0.0
    %2434 = vmatpush1.msra.mxu0 0.0
    %2435 = vmatprep.subr.mxu0 0.0
    %2436 = vmatpush1.msra.mxu0 0.0
    %2437 = vmatprep.subr.mxu0 0.0
    %2438 = vmatpush1.msra.mxu0 0.0
    %2439 = vmatprep.subr.mxu0 0.0
    %2440 = vmatpush1.msra.mxu0 0.0
    %2441 = vmatprep.subr.mxu0 0.0
    %2442 = vmatpush1.msra.mxu0 0.0
    %2443 = vmatprep.subr.mxu0 0.0
    %2444 = vmatpush1.msra.mxu0 0.0
    %2445 = vmatprep.subr.mxu0 0.0
    %2446 = vmatpush1.msra.mxu0 0.0
    %2447 = vmatprep.subr.mxu0 0.0
    %2448 = vmatpush1.msra.mxu0 0.0
    %2449 = vmatprep.subr.mxu0 0.0
    %2450 = vmatpush1.msra.mxu0 0.0
    %2451 = vmatprep.subr.mxu0 0.0
    %2452 = vmatpush1.msra.mxu0 0.0
    %2453 = vmatprep.subr.mxu0 0.0
    %2454 = vmatpush1.msra.mxu0 0.0
    %2455 = vmatprep.subr.mxu0 0.0
    %2456 = vmatpush1.msra.mxu0 0.0
    %2457 = vmatprep.subr.mxu0 0.0
    %2458 = vmatpush1.msra.mxu0 0.0
    %2459 = vmatprep.subr.mxu0 0.0
    %2460 = vmatpush1.msra.mxu0 0.0
    %2461 = vmatprep.subr.mxu0 0.0
    %2462 = vmatpush1.msra.mxu0 0.0
    %2463 = vmatprep.subr.mxu0 0.0
    %2464 = vmatpush1.msra.mxu0 0.0
    %2465 = vmatprep.subr.mxu0 0.0
    %2466 = vmatpush1.msra.mxu0 0.0
    %2467 = vmatprep.subr.mxu0 0.0
    %2468 = vmatpush1.msra.mxu0 0.0
    %2469 = vmatprep.subr.mxu0 0.0
    %2470 = vmatpush1.msra.mxu0 0.0
    %2471 = vmatprep.subr.mxu0 0.0
    %2472 = vmatpush1.msra.mxu0 0.0
    %2473 = vmatprep.subr.mxu0 0.0
    %2474 = vmatpush1.msra.mxu0 0.0
    %2475 = vmatprep.subr.mxu0 0.0
    %2476 = vmatpush1.msra.mxu0 0.0
    %2477 = vmatprep.subr.mxu0 0.0
    %2478 = vmatpush1.msra.mxu0 0.0
    %2479 = vmatprep.mubr.f32.mxu0 0.0
    %2480 = vmatmul.mubr.f32.gmra.mrb[0].mxu0 %v2413
    %v2481 = vpop.f32.mrb[0].mxu0
    %v2482 = vadd.f32 %v2409, %v2481
    %v2483 = vpop.f32.mrb[0].mxu0
    %2484 = vdwg.mxu0
    %v2485 = vld [vmem:[%s10 + $0x30] sm:$0xff]
    %v2486 = vld [vmem:[%s10 + $0x38] sm:$0xff]
    %v2487 = vld [vmem:[%s10 + $0x40] sm:$0xff]
    %v2488 = vld [vmem:[%s10 + $0x48] sm:$0xff]
    %v2490 = vsel %vm44, %v2331, 0
    %2492 = vmatprep.subr.mxu0 0.0
    %2493 = vmatpush1.msra.mxu0 %v2485
    %2494 = vmatprep.subr.mxu0 0.0
    %2495 = vmatpush1.msra.mxu0 %v2486
    %2496 = vmatprep.subr.mxu0 0.0
    %2497 = vmatpush1.msra.mxu0 %v2487
    %2498 = vmatprep.subr.mxu0 0.0
    %2499 = vmatpush1.msra.mxu0 %v2488
    %2500 = vmatprep.subr.mxu0 0.0
    %2501 = vmatpush1.msra.mxu0 0.0
    %2502 = vmatprep.subr.mxu0 0.0
    %2503 = vmatpush1.msra.mxu0 0.0
    %2504 = vmatprep.subr.mxu0 0.0
    %2505 = vmatpush1.msra.mxu0 0.0
    %2506 = vmatprep.subr.mxu0 0.0
    %2507 = vmatpush1.msra.mxu0 0.0
    %2508 = vmatprep.subr.mxu0 0.0
    %2509 = vmatpush1.msra.mxu0 0.0
    %2510 = vmatprep.subr.mxu0 0.0
    %2511 = vmatpush1.msra.mxu0 0.0
    %2512 = vmatprep.subr.mxu0 0.0
    %2513 = vmatpush1.msra.mxu0 0.0
    %2514 = vmatprep.subr.mxu0 0.0
    %2515 = vmatpush1.msra.mxu0 0.0
    %2516 = vmatprep.subr.mxu0 0.0
    %2517 = vmatpush1.msra.mxu0 0.0
    %2518 = vmatprep.subr.mxu0 0.0
    %2519 = vmatpush1.msra.mxu0 0.0
    %2520 = vmatprep.subr.mxu0 0.0
    %2521 = vmatpush1.msra.mxu0 0.0
    %2522 = vmatprep.subr.mxu0 0.0
    %2523 = vmatpush1.msra.mxu0 0.0
    %2524 = vmatprep.subr.mxu0 0.0
    %2525 = vmatpush1.msra.mxu0 0.0
    %2526 = vmatprep.subr.mxu0 0.0
    %2527 = vmatpush1.msra.mxu0 0.0
    %2528 = vmatprep.subr.mxu0 0.0
    %2529 = vmatpush1.msra.mxu0 0.0
    %2530 = vmatprep.subr.mxu0 0.0
    %2531 = vmatpush1.msra.mxu0 0.0
    %2532 = vmatprep.subr.mxu0 0.0
    %2533 = vmatpush1.msra.mxu0 0.0
    %2534 = vmatprep.subr.mxu0 0.0
    %2535 = vmatpush1.msra.mxu0 0.0
    %2536 = vmatprep.subr.mxu0 0.0
    %2537 = vmatpush1.msra.mxu0 0.0
    %2538 = vmatprep.subr.mxu0 0.0
    %2539 = vmatpush1.msra.mxu0 0.0
    %2540 = vmatprep.subr.mxu0 0.0
    %2541 = vmatpush1.msra.mxu0 0.0
    %2542 = vmatprep.subr.mxu0 0.0
    %2543 = vmatpush1.msra.mxu0 0.0
    %2544 = vmatprep.subr.mxu0 0.0
    %2545 = vmatpush1.msra.mxu0 0.0
    %2546 = vmatprep.subr.mxu0 0.0
    %2547 = vmatpush1.msra.mxu0 0.0
    %2548 = vmatprep.subr.mxu0 0.0
    %2549 = vmatpush1.msra.mxu0 0.0
    %2550 = vmatprep.subr.mxu0 0.0
    %2551 = vmatpush1.msra.mxu0 0.0
    %2552 = vmatprep.subr.mxu0 0.0
    %2553 = vmatpush1.msra.mxu0 0.0
    %2554 = vmatprep.subr.mxu0 0.0
    %2555 = vmatpush1.msra.mxu0 0.0
    %2556 = vmatprep.mubr.f32.mxu0 0.0
    %2557 = vmatmul.mubr.f32.gmra.mrb[0].mxu0 %v2490
    %v2558 = vpop.f32.mrb[0].mxu0
    %v2559 = vadd.f32 0.0, %v2558
    %v2560 = vpop.f32.mrb[0].mxu0
    %2561 = vdwg.mxu0
    %v2562 = vadd.f32 %v2482, %v2559
    %v2563 = vld [vmem:[%s8 + $0x15] sm:$0x1]
    %v2564 = vlaneseq
    %v2565 = vshrl.u32 %v2564, 7
    %v2566 = vsub.s32 0, %v2565
    %v2567 = vrot.slane %v2563, %v2566
    %v2568 = vadd.f32 %v2562, %v2567
    %vm2569 = vcmask 17408
    %2570 = vst.msk [vmem:[#allocation2] sm:$0x3] %vm2569, %v2568
    // Predicated region
    $region46: #{aspect_bert_classifier_forward.1} parent=1 // pred_check
      _
    $region47: #{aspect_bert_classifier_forward.1} parent=1 // pred_check_branch
      %2572 = sbr.rel (0) target = $region49
    $region48: #{aspect_bert_classifier_forward.1} parent=1 // pred_region
      %s2574 = ssub.s32 32, 32
      %2575 = vsyncadd [#allocation3], %s2574
      %s2577 = sshll.u32 [#allocation2], 4
      %s2578 = int_to_ptr.vmem [resolvable:$true] %s2577
      %2580 = dma.vmem_to_hbm [thread:$0]  %s2578, 32, %s11, [#allocation3]
    $region49: #{aspect_bert_classifier_forward.1} parent=1 // pred_fallthru
      _
    // Predicated region
    $region50: #{aspect_bert_classifier_forward.1} parent=1 // pred_check
      _
    $region51: #{aspect_bert_classifier_forward.1} parent=1 // pred_check_branch
      %2582 = sbr.rel (0) target = $region53
    $region52: #{aspect_bert_classifier_forward.1} parent=1 // pred_region
      %2583 = dma.done [#allocation3], 32
    $region53: #{aspect_bert_classifier_forward.1} parent=1 // pred_fallthru
      _
    %2584 = vsyncpa [#allocation3], 1

</llo_original>
